<compile_context>
chip_gen: v7x
topology: tpu7x:2x2x1
jax: 0.10.0
libtpu: 0.0.40
codegen_flags: <defaults>
</compile_context>

<pallas_src>
import functools

import jax
import jax.numpy as jnp
from jax.experimental import pallas as pl
from jax.experimental.pallas import tpu as pltpu

KERNEL_SIZE = 4
PADDING = 1
STRIDE = 2
BN_EPS = 1e-5

# stride-2 ConvT (k=4, pad=1) parity decomposition (xp = input padded by 1):
#   even output rows: out[2a]   = xp[a]  *W[3] + xp[a+1]*W[1]
#   odd  output rows: out[2a+1] = xp[a+1]*W[2] + xp[a+2]*W[0]
# Tuples are (window offset into xp, kernel index).
_S2_TAPS = {0: ((0, 3), (1, 1)),   # even parity
            1: ((1, 2), (2, 0))}   # odd parity


def _round_up(x, m):
    return -(-x // m) * m


# ----------------------------------------------------------------------------
# Fused per-layer Pallas kernel:
#   n_par independent matmuls (parities / output positions) -> lane-packed output,
#   fused BatchNorm (stats + normalize) and optional Tanh, all on the f32 accumulator.
# ----------------------------------------------------------------------------
def _fused_layer_kernel(*refs, n_par, use_bn, use_tanh, inv_count):
    if use_bn:
        p_ref, w_ref, gb_ref, o_ref = refs
    else:
        p_ref, w_ref, o_ref = refs

    share_lhs = (p_ref.shape[0] == 1)      # layer 0: one LHS shared by all 16 dots
    lhs0 = p_ref[0] if share_lhs else None

    accs = []
    for p in range(n_par):
        lhs = lhs0 if share_lhs else p_ref[p]
        accs.append(jnp.dot(lhs, w_ref[p], preferred_element_type=jnp.float32))

    if use_bn:
        # Per-channel biased batch statistics over all rows and all parities.
        ssum = accs[0].sum(axis=0, keepdims=True)
        ssq = (accs[0] * accs[0]).sum(axis=0, keepdims=True)
        for a in accs[1:]:
            ssum = ssum + a.sum(axis=0, keepdims=True)
            ssq = ssq + (a * a).sum(axis=0, keepdims=True)
        mean = ssum * inv_count
        var = jnp.maximum(ssq * inv_count - mean * mean, 0.0)
        gb = gb_ref[...]                              # (2, Co): gamma, beta
        scale = gb[0:1, :] * jax.lax.rsqrt(var + BN_EPS)
        shift = gb[1:2, :] - mean * scale
        accs = [a * scale + shift for a in accs]
        # NOTE: LeakyReLU(negative_slope=1.0) is the identity -> intentionally omitted.

    if use_tanh:
        accs = [jnp.tanh(a) for a in accs]

    co = accs[0].shape[-1]
    for p in range(n_par):
        o_ref[:, p * co:(p + 1) * co] = accs[p].astype(o_ref.dtype)


def _call_fused_layer(patches, weights, gb, *, use_bn, use_tanh, inv_count, out_dtype):
    """Single-grid-step fused layer call (everything is VMEM resident)."""
    n_par = weights.shape[0]
    _, m, _ = patches.shape
    co = weights.shape[-1]

    # Round the row axis up to a sublane multiple (only triggers for layer 0, M=N=2).
    # Zero rows contribute 0 to both BN partial sums -> statistics stay exact.
    m_pad = _round_up(m, 8)
    if m_pad != m:
        patches = jnp.pad(patches, ((0, 0), (0, m_pad - m), (0, 0)))

    inputs = [patches, weights]
    in_specs = [pl.BlockSpec(patches.shape, lambda i: (0, 0, 0)),
                pl.BlockSpec(weights.shape, lambda i: (0, 0, 0))]
    if use_bn:
        inputs.append(gb)
        in_specs.append(pl.BlockSpec(gb.shape, lambda i: (0, 0)))

    kern = functools.partial(_fused_layer_kernel, n_par=n_par, use_bn=use_bn,
                             use_tanh=use_tanh, inv_count=inv_count)
    return pl.pallas_call(
        kern,
        grid=(1,),
        in_specs=in_specs,
        out_specs=pl.BlockSpec((m_pad, n_par * co), lambda i: (0, 0)),
        out_shape=jax.ShapeDtypeStruct((m_pad, n_par * co), out_dtype),
        compiler_params=pltpu.CompilerParams(
            dimension_semantics=("arbitrary",)),
    )(*inputs)


# ----------------------------------------------------------------------------
# Plain-JAX glue: zero-FLOP relayouts (padding / window slices / interleave)
# ----------------------------------------------------------------------------
def _stride1_patches(x, k, pad):
    """im2col for stride-1 ConvT == flipped-kernel conv on a (k-1-pad)-padded input."""
    n, h, w, ci = x.shape
    pp = k - 1 - pad
    ho = h - 1 - 2 * pad + k
    wo = w - 1 - 2 * pad + k
    xp = jnp.pad(x, ((0, 0), (pp, pp), (pp, pp), (0, 0)))
    taps = [xp[:, dh:dh + ho, dw:dw + wo, :] for dh in range(k) for dw in range(k)]
    patches = jnp.concatenate(taps, axis=-1).reshape(1, n * ho * wo, k * k * ci)
    return patches, (n, ho, wo)


def _stride2_patches(x):
    """Parity-decomposed im2col for stride-2 ConvT (k=4, pad=1): no zero insertion."""
    n, h, w, ci = x.shape
    xp = jnp.pad(x, ((0, 0), (1, 1), (1, 1), (0, 0)))
    parities = []
    for ph in (0, 1):
        for pw in (0, 1):
            taps = [xp[:, dh:dh + h, dw:dw + w, :]
                    for (dh, _) in _S2_TAPS[ph] for (dw, _) in _S2_TAPS[pw]]
            parities.append(jnp.concatenate(taps, axis=-1).reshape(n * h * w, 4 * ci))
    return jnp.stack(parities, axis=0), (n, h, w)           # (4, M, 4*Ci)


# ----------------------------------------------------------------------------
# Weight re-layout, hoisted to parameter-build time (pre-flipped, bf16)
# ----------------------------------------------------------------------------
def _prep_initial_weights(w_pt):
    """PyTorch (Ci, Co, 4, 4) -> (16, Ci, Co): one (Ci, Co) block per output position."""
    ci, co, k = w_pt.shape[0], w_pt.shape[1], w_pt.shape[2]
    return (jnp.transpose(w_pt, (2, 3, 0, 1))
            .reshape(k * k, ci, co).astype(jnp.bfloat16))


def _prep_stride1_weights(w_pt, k):
    """PyTorch (Ci, Co, k, k) -> (1, k*k*Ci, Co), flipped to match _stride1_patches."""
    ci, co = w_pt.shape[0], w_pt.shape[1]
    slabs = [w_pt[:, :, k - 1 - dh, k - 1 - dw]
             for dh in range(k) for dw in range(k)]
    return (jnp.concatenate(slabs, axis=0)
            .reshape(1, k * k * ci, co).astype(jnp.bfloat16))


def _prep_stride2_weights(w_pt):
    """PyTorch (Ci, Co, 4, 4) -> (4, 4*Ci, Co) per-parity, matching _stride2_patches."""
    parities = []
    for ph in (0, 1):
        for pw in (0, 1):
            slabs = [w_pt[:, :, kh, kw]
                     for (_, kh) in _S2_TAPS[ph] for (_, kw) in _S2_TAPS[pw]]
            parities.append(jnp.concatenate(slabs, axis=0))
    return jnp.stack(parities, axis=0).astype(jnp.bfloat16)


# ----------------------------------------------------------------------------
# Layer forward = one fused pallas_call + tiny relayout
# ----------------------------------------------------------------------------
def convt_layer(x_nhwc, layer):
    kind = layer["kind"]
    w_mat = layer["w_mat"]
    co = w_mat.shape[-1]
    use_bn = layer["use_bn"]
    use_tanh = layer["use_tanh"]
    out_dtype = jnp.float32 if use_tanh else jnp.bfloat16
    x = x_nhwc.astype(jnp.bfloat16)

    if kind == "initial":
        # ConvT(k=4, s=1, p=0) on a 1x1 input: 16 lane-packed matmuls, shared LHS.
        n, z = x.shape[0], x.shape[-1]
        patches = x.reshape(1, n, z)
        y = _call_fused_layer(patches, w_mat, layer["gb"], use_bn=use_bn,
                              use_tanh=use_tanh, inv_count=1.0 / float(n * 16),
                              out_dtype=out_dtype)
        return y[:n].reshape(n, 4, 4, co)

    if kind == "s1":
        patches, (n, ho, wo) = _stride1_patches(x, layer["k"], layer["pad"])
        n_pix = n * ho * wo
        y = _call_fused_layer(patches, w_mat, layer["gb"], use_bn=use_bn,
                              use_tanh=use_tanh, inv_count=1.0 / float(n_pix),
                              out_dtype=out_dtype)
        return y[:n_pix].reshape(n, ho, wo, co)

    # stride-2 (pyramid / final) layer: 4 parity matmuls, lane-packed (M, 4*Co) output.
    patches, (n, h, w) = _stride2_patches(x)
    m = n * h * w
    y = _call_fused_layer(patches, w_mat, layer.get("gb"), use_bn=use_bn,
                          use_tanh=use_tanh, inv_count=1.0 / float(4 * m),
                          out_dtype=out_dtype)
    y = y[:m].reshape(n, h, w, 2, 2, co)                      # [n, y, x, ph, pw, c]
    y = jnp.transpose(y, (0, 1, 3, 2, 4, 5)).reshape(n, 2 * h, 2 * w, co)
    return y


# ----------------------------------------------------------------------------
# Decoder: parameter construction mirroring the PyTorch __init__ logic
# ----------------------------------------------------------------------------
def build_decoder_params(key, *, img_size, z_size, in_channels, out_channels,
                         n_extra_layers):
    out_enc = in_channels
    assert img_size % 16 == 0, "image size is not multiple of 16"

    def mk_w(k_, ci, co, ksz):
        bound = (1.0 / (ci * ksz * ksz)) ** 0.5
        return jax.random.uniform(k_, (ci, co, ksz, ksz), jnp.float32,
                                  -bound, bound)

    def gb(co):  # fresh BatchNorm2d: gamma = 1, beta = 0
        return jnp.stack([jnp.ones((co,), jnp.float32),
                          jnp.zeros((co,), jnp.float32)])

    keys = jax.random.split(key, 32)
    ki = 0
    layers = []

    conv_img_size, oc = 4, out_channels // 2
    while conv_img_size != img_size:
        conv_img_size *= 2
        oc *= 2

    # Initial ConvT (z_size -> oc, 1x1 -> 4x4, stride 1, pad 0, bias=False), BN, LeakyReLU(1.0)
    layers.append(dict(kind="initial",
                       w_mat=_prep_initial_weights(mk_w(keys[ki], z_size, oc,
                                                        KERNEL_SIZE)),
                       gb=gb(oc), use_bn=True, use_tanh=False))
    ki += 1

    # Pyramid layers: stride-2 ConvT, BN, LeakyReLU(1.0)
    conv_img_size = 4
    while conv_img_size < img_size // 2:
        ic, oc = oc, oc // 2
        layers.append(dict(kind="s2",
                           w_mat=_prep_stride2_weights(mk_w(keys[ki], ic, oc,
                                                            KERNEL_SIZE)),
                           gb=gb(oc), use_bn=True, use_tanh=False))
        ki += 1
        conv_img_size *= 2

    # Extra layers: 3x3, stride 1, pad 1, BN, LeakyReLU(1.0)
    for _ in range(n_extra_layers):
        layers.append(dict(kind="s1", k=3, pad=PADDING,
                           w_mat=_prep_stride1_weights(mk_w(keys[ki], oc, oc, 3), 3),
                           gb=gb(oc), use_bn=True, use_tanh=False))
        ki += 1

    # Final stride-2 ConvT (oc -> out_enc) -> Tanh (no BN, no bias)
    layers.append(dict(kind="s2",
                       w_mat=_prep_stride2_weights(mk_w(keys[ki], oc, out_enc,
                                                        KERNEL_SIZE)),
                       gb=None, use_bn=False, use_tanh=True))
    return layers


def decoder_forward(x_nchw, layers):
    # NCHW (PyTorch convention) -> NHWC internally
    x = jnp.transpose(x_nchw, (0, 2, 3, 1))
    for layer in layers:
        x = convt_layer(x, layer)
    return jnp.transpose(x, (0, 3, 1, 2)).astype(jnp.float32)


# ----------------------------------------------------------------------------
if __name__ == "__main__":
    # opt-equivalent config (small shapes)
    img_size = 16
    z_size = 32
    in_channels = 4        # decoder output channels (out_enc)
    out_channels = 8
    n_extra_layers = 1
    batch = 2

    key = jax.random.PRNGKey(0)
    k_params, k_x = jax.random.split(key)

    layers = build_decoder_params(k_params, img_size=img_size, z_size=z_size,
                                  in_channels=in_channels,
                                  out_channels=out_channels,
                                  n_extra_layers=n_extra_layers)

    # Decoder input: latent z, NCHW (N, z_size, 1, 1)
    x = jax.random.normal(k_x, (batch, z_size, 1, 1), jnp.float32)

    fwd = jax.jit(functools.partial(decoder_forward, layers=layers))
    out = jax.block_until_ready(fwd(x))

    assert out.shape == (batch, in_channels, img_size, img_size), out.shape
    assert bool(jnp.all(jnp.isfinite(out)))
    assert bool(jnp.all(jnp.abs(out) <= 1.0 + 1e-6))  # tanh output range

    print("KERNEL_OK")
</pallas_src>

<mosaic_0001>
module attributes {stable_mosaic.version = 11 : i64} {
  func.func @_fused_layer_kernel(%arg0: i32, %arg1: memref<1x8x32xbf16, #tpu.memory_space<vmem>>, %arg2: memref<16x32x16xbf16, #tpu.memory_space<vmem>>, %arg3: memref<2x16xf32, #tpu.memory_space<vmem>>, %arg4: memref<8x256xbf16, #tpu.memory_space<vmem>>) attributes {dimension_semantics = [#tpu.dimension_semantics<arbitrary>], iteration_bounds = array<i64: 1>, scalar_prefetch = 0 : i64, scratch_operands = 0 : i64, tpu.core_type = #tpu.core_type<tc>, window_params = [{pipeline_mode = #tpu.pipeline_mode<synchronous>, transform_indices = @transform_0, window_bounds = array<i64: 1, 8, 32>}, {pipeline_mode = #tpu.pipeline_mode<synchronous>, transform_indices = @transform_1, window_bounds = array<i64: 16, 32, 16>}, {pipeline_mode = #tpu.pipeline_mode<synchronous>, transform_indices = @transform_2, window_bounds = array<i64: 2, 16>}, {pipeline_mode = #tpu.pipeline_mode<synchronous>, transform_indices = @transform_3, window_bounds = array<i64: 8, 256>}]} {
    %c0 = arith.constant 0 : index
    %c0_0 = arith.constant 0 : index
    %c0_1 = arith.constant 0 : index
    %0 = vector.load %arg1[%c0, %c0_0, %c0_1] : memref<1x8x32xbf16, #tpu.memory_space<vmem>>, vector<1x8x32xbf16>
    %1 = vector.shape_cast %0 : vector<1x8x32xbf16> to vector<8x32xbf16>
    %c0_2 = arith.constant 0 : index
    %c0_3 = arith.constant 0 : index
    %c0_4 = arith.constant 0 : index
    %2 = vector.load %arg2[%c0_2, %c0_3, %c0_4] : memref<16x32x16xbf16, #tpu.memory_space<vmem>>, vector<1x32x16xbf16>
    %3 = vector.shape_cast %2 : vector<1x32x16xbf16> to vector<32x16xbf16>
    %cst = arith.constant dense<0.000000e+00> : vector<8x16xf32>
    %4 = tpu.matmul %1, %3, %cst {dimension_numbers = #tpu.dot_dimension_numbers<[1], [0], [0], [1], [0, 0, 1, 1], [], []>} : vector<8x32xbf16>, vector<32x16xbf16>, vector<8x16xf32> -> vector<8x16xf32>
    %c1 = arith.constant 1 : index
    %c0_5 = arith.constant 0 : index
    %c0_6 = arith.constant 0 : index
    %5 = vector.load %arg2[%c1, %c0_5, %c0_6] : memref<16x32x16xbf16, #tpu.memory_space<vmem>>, vector<1x32x16xbf16>
    %6 = vector.shape_cast %5 : vector<1x32x16xbf16> to vector<32x16xbf16>
    %cst_7 = arith.constant dense<0.000000e+00> : vector<8x16xf32>
    %7 = tpu.matmul %1, %6, %cst_7 {dimension_numbers = #tpu.dot_dimension_numbers<[1], [0], [0], [1], [0, 0, 1, 1], [], []>} : vector<8x32xbf16>, vector<32x16xbf16>, vector<8x16xf32> -> vector<8x16xf32>
    %c2 = arith.constant 2 : index
    %c0_8 = arith.constant 0 : index
    %c0_9 = arith.constant 0 : index
    %8 = vector.load %arg2[%c2, %c0_8, %c0_9] : memref<16x32x16xbf16, #tpu.memory_space<vmem>>, vector<1x32x16xbf16>
    %9 = vector.shape_cast %8 : vector<1x32x16xbf16> to vector<32x16xbf16>
    %cst_10 = arith.constant dense<0.000000e+00> : vector<8x16xf32>
    %10 = tpu.matmul %1, %9, %cst_10 {dimension_numbers = #tpu.dot_dimension_numbers<[1], [0], [0], [1], [0, 0, 1, 1], [], []>} : vector<8x32xbf16>, vector<32x16xbf16>, vector<8x16xf32> -> vector<8x16xf32>
    %c3 = arith.constant 3 : index
    %c0_11 = arith.constant 0 : index
    %c0_12 = arith.constant 0 : index
    %11 = vector.load %arg2[%c3, %c0_11, %c0_12] : memref<16x32x16xbf16, #tpu.memory_space<vmem>>, vector<1x32x16xbf16>
    %12 = vector.shape_cast %11 : vector<1x32x16xbf16> to vector<32x16xbf16>
    %cst_13 = arith.constant dense<0.000000e+00> : vector<8x16xf32>
    %13 = tpu.matmul %1, %12, %cst_13 {dimension_numbers = #tpu.dot_dimension_numbers<[1], [0], [0], [1], [0, 0, 1, 1], [], []>} : vector<8x32xbf16>, vector<32x16xbf16>, vector<8x16xf32> -> vector<8x16xf32>
    %c4 = arith.constant 4 : index
    %c0_14 = arith.constant 0 : index
    %c0_15 = arith.constant 0 : index
    %14 = vector.load %arg2[%c4, %c0_14, %c0_15] : memref<16x32x16xbf16, #tpu.memory_space<vmem>>, vector<1x32x16xbf16>
    %15 = vector.shape_cast %14 : vector<1x32x16xbf16> to vector<32x16xbf16>
    %cst_16 = arith.constant dense<0.000000e+00> : vector<8x16xf32>
    %16 = tpu.matmul %1, %15, %cst_16 {dimension_numbers = #tpu.dot_dimension_numbers<[1], [0], [0], [1], [0, 0, 1, 1], [], []>} : vector<8x32xbf16>, vector<32x16xbf16>, vector<8x16xf32> -> vector<8x16xf32>
    %c5 = arith.constant 5 : index
    %c0_17 = arith.constant 0 : index
    %c0_18 = arith.constant 0 : index
    %17 = vector.load %arg2[%c5, %c0_17, %c0_18] : memref<16x32x16xbf16, #tpu.memory_space<vmem>>, vector<1x32x16xbf16>
    %18 = vector.shape_cast %17 : vector<1x32x16xbf16> to vector<32x16xbf16>
    %cst_19 = arith.constant dense<0.000000e+00> : vector<8x16xf32>
    %19 = tpu.matmul %1, %18, %cst_19 {dimension_numbers = #tpu.dot_dimension_numbers<[1], [0], [0], [1], [0, 0, 1, 1], [], []>} : vector<8x32xbf16>, vector<32x16xbf16>, vector<8x16xf32> -> vector<8x16xf32>
    %c6 = arith.constant 6 : index
    %c0_20 = arith.constant 0 : index
    %c0_21 = arith.constant 0 : index
    %20 = vector.load %arg2[%c6, %c0_20, %c0_21] : memref<16x32x16xbf16, #tpu.memory_space<vmem>>, vector<1x32x16xbf16>
    %21 = vector.shape_cast %20 : vector<1x32x16xbf16> to vector<32x16xbf16>
    %cst_22 = arith.constant dense<0.000000e+00> : vector<8x16xf32>
    %22 = tpu.matmul %1, %21, %cst_22 {dimension_numbers = #tpu.dot_dimension_numbers<[1], [0], [0], [1], [0, 0, 1, 1], [], []>} : vector<8x32xbf16>, vector<32x16xbf16>, vector<8x16xf32> -> vector<8x16xf32>
    %c7 = arith.constant 7 : index
    %c0_23 = arith.constant 0 : index
    %c0_24 = arith.constant 0 : index
    %23 = vector.load %arg2[%c7, %c0_23, %c0_24] : memref<16x32x16xbf16, #tpu.memory_space<vmem>>, vector<1x32x16xbf16>
    %24 = vector.shape_cast %23 : vector<1x32x16xbf16> to vector<32x16xbf16>
    %cst_25 = arith.constant dense<0.000000e+00> : vector<8x16xf32>
    %25 = tpu.matmul %1, %24, %cst_25 {dimension_numbers = #tpu.dot_dimension_numbers<[1], [0], [0], [1], [0, 0, 1, 1], [], []>} : vector<8x32xbf16>, vector<32x16xbf16>, vector<8x16xf32> -> vector<8x16xf32>
    %c8 = arith.constant 8 : index
    %c0_26 = arith.constant 0 : index
    %c0_27 = arith.constant 0 : index
    %26 = vector.load %arg2[%c8, %c0_26, %c0_27] : memref<16x32x16xbf16, #tpu.memory_space<vmem>>, vector<1x32x16xbf16>
    %27 = vector.shape_cast %26 : vector<1x32x16xbf16> to vector<32x16xbf16>
    %cst_28 = arith.constant dense<0.000000e+00> : vector<8x16xf32>
    %28 = tpu.matmul %1, %27, %cst_28 {dimension_numbers = #tpu.dot_dimension_numbers<[1], [0], [0], [1], [0, 0, 1, 1], [], []>} : vector<8x32xbf16>, vector<32x16xbf16>, vector<8x16xf32> -> vector<8x16xf32>
    %c9 = arith.constant 9 : index
    %c0_29 = arith.constant 0 : index
    %c0_30 = arith.constant 0 : index
    %29 = vector.load %arg2[%c9, %c0_29, %c0_30] : memref<16x32x16xbf16, #tpu.memory_space<vmem>>, vector<1x32x16xbf16>
    %30 = vector.shape_cast %29 : vector<1x32x16xbf16> to vector<32x16xbf16>
    %cst_31 = arith.constant dense<0.000000e+00> : vector<8x16xf32>
    %31 = tpu.matmul %1, %30, %cst_31 {dimension_numbers = #tpu.dot_dimension_numbers<[1], [0], [0], [1], [0, 0, 1, 1], [], []>} : vector<8x32xbf16>, vector<32x16xbf16>, vector<8x16xf32> -> vector<8x16xf32>
    %c10 = arith.constant 10 : index
    %c0_32 = arith.constant 0 : index
    %c0_33 = arith.constant 0 : index
    %32 = vector.load %arg2[%c10, %c0_32, %c0_33] : memref<16x32x16xbf16, #tpu.memory_space<vmem>>, vector<1x32x16xbf16>
    %33 = vector.shape_cast %32 : vector<1x32x16xbf16> to vector<32x16xbf16>
    %cst_34 = arith.constant dense<0.000000e+00> : vector<8x16xf32>
    %34 = tpu.matmul %1, %33, %cst_34 {dimension_numbers = #tpu.dot_dimension_numbers<[1], [0], [0], [1], [0, 0, 1, 1], [], []>} : vector<8x32xbf16>, vector<32x16xbf16>, vector<8x16xf32> -> vector<8x16xf32>
    %c11 = arith.constant 11 : index
    %c0_35 = arith.constant 0 : index
    %c0_36 = arith.constant 0 : index
    %35 = vector.load %arg2[%c11, %c0_35, %c0_36] : memref<16x32x16xbf16, #tpu.memory_space<vmem>>, vector<1x32x16xbf16>
    %36 = vector.shape_cast %35 : vector<1x32x16xbf16> to vector<32x16xbf16>
    %cst_37 = arith.constant dense<0.000000e+00> : vector<8x16xf32>
    %37 = tpu.matmul %1, %36, %cst_37 {dimension_numbers = #tpu.dot_dimension_numbers<[1], [0], [0], [1], [0, 0, 1, 1], [], []>} : vector<8x32xbf16>, vector<32x16xbf16>, vector<8x16xf32> -> vector<8x16xf32>
    %c12 = arith.constant 12 : index
    %c0_38 = arith.constant 0 : index
    %c0_39 = arith.constant 0 : index
    %38 = vector.load %arg2[%c12, %c0_38, %c0_39] : memref<16x32x16xbf16, #tpu.memory_space<vmem>>, vector<1x32x16xbf16>
    %39 = vector.shape_cast %38 : vector<1x32x16xbf16> to vector<32x16xbf16>
    %cst_40 = arith.constant dense<0.000000e+00> : vector<8x16xf32>
    %40 = tpu.matmul %1, %39, %cst_40 {dimension_numbers = #tpu.dot_dimension_numbers<[1], [0], [0], [1], [0, 0, 1, 1], [], []>} : vector<8x32xbf16>, vector<32x16xbf16>, vector<8x16xf32> -> vector<8x16xf32>
    %c13 = arith.constant 13 : index
    %c0_41 = arith.constant 0 : index
    %c0_42 = arith.constant 0 : index
    %41 = vector.load %arg2[%c13, %c0_41, %c0_42] : memref<16x32x16xbf16, #tpu.memory_space<vmem>>, vector<1x32x16xbf16>
    %42 = vector.shape_cast %41 : vector<1x32x16xbf16> to vector<32x16xbf16>
    %cst_43 = arith.constant dense<0.000000e+00> : vector<8x16xf32>
    %43 = tpu.matmul %1, %42, %cst_43 {dimension_numbers = #tpu.dot_dimension_numbers<[1], [0], [0], [1], [0, 0, 1, 1], [], []>} : vector<8x32xbf16>, vector<32x16xbf16>, vector<8x16xf32> -> vector<8x16xf32>
    %c14 = arith.constant 14 : index
    %c0_44 = arith.constant 0 : index
    %c0_45 = arith.constant 0 : index
    %44 = vector.load %arg2[%c14, %c0_44, %c0_45] : memref<16x32x16xbf16, #tpu.memory_space<vmem>>, vector<1x32x16xbf16>
    %45 = vector.shape_cast %44 : vector<1x32x16xbf16> to vector<32x16xbf16>
    %cst_46 = arith.constant dense<0.000000e+00> : vector<8x16xf32>
    %46 = tpu.matmul %1, %45, %cst_46 {dimension_numbers = #tpu.dot_dimension_numbers<[1], [0], [0], [1], [0, 0, 1, 1], [], []>} : vector<8x32xbf16>, vector<32x16xbf16>, vector<8x16xf32> -> vector<8x16xf32>
    %c15 = arith.constant 15 : index
    %c0_47 = arith.constant 0 : index
    %c0_48 = arith.constant 0 : index
    %47 = vector.load %arg2[%c15, %c0_47, %c0_48] : memref<16x32x16xbf16, #tpu.memory_space<vmem>>, vector<1x32x16xbf16>
    %48 = vector.shape_cast %47 : vector<1x32x16xbf16> to vector<32x16xbf16>
    %cst_49 = arith.constant dense<0.000000e+00> : vector<8x16xf32>
    %49 = tpu.matmul %1, %48, %cst_49 {dimension_numbers = #tpu.dot_dimension_numbers<[1], [0], [0], [1], [0, 0, 1, 1], [], []>} : vector<8x32xbf16>, vector<32x16xbf16>, vector<8x16xf32> -> vector<8x16xf32>
    %cst_50 = arith.constant dense<0.000000e+00> : vector<16xf32>
    %50 = vector.multi_reduction <add>, %4, %cst_50 [0] : vector<8x16xf32> to vector<16xf32>
    %51 = vector.shape_cast %50 : vector<16xf32> to vector<1x16xf32>
    %52 = arith.mulf %4, %4 : vector<8x16xf32>
    %cst_51 = arith.constant dense<0.000000e+00> : vector<16xf32>
    %53 = vector.multi_reduction <add>, %52, %cst_51 [0] : vector<8x16xf32> to vector<16xf32>
    %54 = vector.shape_cast %53 : vector<16xf32> to vector<1x16xf32>
    %cst_52 = arith.constant dense<0.000000e+00> : vector<16xf32>
    %55 = vector.multi_reduction <add>, %7, %cst_52 [0] : vector<8x16xf32> to vector<16xf32>
    %56 = vector.shape_cast %55 : vector<16xf32> to vector<1x16xf32>
    %57 = arith.addf %51, %56 : vector<1x16xf32>
    %58 = arith.mulf %7, %7 : vector<8x16xf32>
    %cst_53 = arith.constant dense<0.000000e+00> : vector<16xf32>
    %59 = vector.multi_reduction <add>, %58, %cst_53 [0] : vector<8x16xf32> to vector<16xf32>
    %60 = vector.shape_cast %59 : vector<16xf32> to vector<1x16xf32>
    %61 = arith.addf %54, %60 : vector<1x16xf32>
    %cst_54 = arith.constant dense<0.000000e+00> : vector<16xf32>
    %62 = vector.multi_reduction <add>, %10, %cst_54 [0] : vector<8x16xf32> to vector<16xf32>
    %63 = vector.shape_cast %62 : vector<16xf32> to vector<1x16xf32>
    %64 = arith.addf %57, %63 : vector<1x16xf32>
    %65 = arith.mulf %10, %10 : vector<8x16xf32>
    %cst_55 = arith.constant dense<0.000000e+00> : vector<16xf32>
    %66 = vector.multi_reduction <add>, %65, %cst_55 [0] : vector<8x16xf32> to vector<16xf32>
    %67 = vector.shape_cast %66 : vector<16xf32> to vector<1x16xf32>
    %68 = arith.addf %61, %67 : vector<1x16xf32>
    %cst_56 = arith.constant dense<0.000000e+00> : vector<16xf32>
    %69 = vector.multi_reduction <add>, %13, %cst_56 [0] : vector<8x16xf32> to vector<16xf32>
    %70 = vector.shape_cast %69 : vector<16xf32> to vector<1x16xf32>
    %71 = arith.addf %64, %70 : vector<1x16xf32>
    %72 = arith.mulf %13, %13 : vector<8x16xf32>
    %cst_57 = arith.constant dense<0.000000e+00> : vector<16xf32>
    %73 = vector.multi_reduction <add>, %72, %cst_57 [0] : vector<8x16xf32> to vector<16xf32>
    %74 = vector.shape_cast %73 : vector<16xf32> to vector<1x16xf32>
    %75 = arith.addf %68, %74 : vector<1x16xf32>
    %cst_58 = arith.constant dense<0.000000e+00> : vector<16xf32>
    %76 = vector.multi_reduction <add>, %16, %cst_58 [0] : vector<8x16xf32> to vector<16xf32>
    %77 = vector.shape_cast %76 : vector<16xf32> to vector<1x16xf32>
    %78 = arith.addf %71, %77 : vector<1x16xf32>
    %79 = arith.mulf %16, %16 : vector<8x16xf32>
    %cst_59 = arith.constant dense<0.000000e+00> : vector<16xf32>
    %80 = vector.multi_reduction <add>, %79, %cst_59 [0] : vector<8x16xf32> to vector<16xf32>
    %81 = vector.shape_cast %80 : vector<16xf32> to vector<1x16xf32>
    %82 = arith.addf %75, %81 : vector<1x16xf32>
    %cst_60 = arith.constant dense<0.000000e+00> : vector<16xf32>
    %83 = vector.multi_reduction <add>, %19, %cst_60 [0] : vector<8x16xf32> to vector<16xf32>
    %84 = vector.shape_cast %83 : vector<16xf32> to vector<1x16xf32>
    %85 = arith.addf %78, %84 : vector<1x16xf32>
    %86 = arith.mulf %19, %19 : vector<8x16xf32>
    %cst_61 = arith.constant dense<0.000000e+00> : vector<16xf32>
    %87 = vector.multi_reduction <add>, %86, %cst_61 [0] : vector<8x16xf32> to vector<16xf32>
    %88 = vector.shape_cast %87 : vector<16xf32> to vector<1x16xf32>
    %89 = arith.addf %82, %88 : vector<1x16xf32>
    %cst_62 = arith.constant dense<0.000000e+00> : vector<16xf32>
    %90 = vector.multi_reduction <add>, %22, %cst_62 [0] : vector<8x16xf32> to vector<16xf32>
    %91 = vector.shape_cast %90 : vector<16xf32> to vector<1x16xf32>
    %92 = arith.addf %85, %91 : vector<1x16xf32>
    %93 = arith.mulf %22, %22 : vector<8x16xf32>
    %cst_63 = arith.constant dense<0.000000e+00> : vector<16xf32>
    %94 = vector.multi_reduction <add>, %93, %cst_63 [0] : vector<8x16xf32> to vector<16xf32>
    %95 = vector.shape_cast %94 : vector<16xf32> to vector<1x16xf32>
    %96 = arith.addf %89, %95 : vector<1x16xf32>
    %cst_64 = arith.constant dense<0.000000e+00> : vector<16xf32>
    %97 = vector.multi_reduction <add>, %25, %cst_64 [0] : vector<8x16xf32> to vector<16xf32>
    %98 = vector.shape_cast %97 : vector<16xf32> to vector<1x16xf32>
    %99 = arith.addf %92, %98 : vector<1x16xf32>
    %100 = arith.mulf %25, %25 : vector<8x16xf32>
    %cst_65 = arith.constant dense<0.000000e+00> : vector<16xf32>
    %101 = vector.multi_reduction <add>, %100, %cst_65 [0] : vector<8x16xf32> to vector<16xf32>
    %102 = vector.shape_cast %101 : vector<16xf32> to vector<1x16xf32>
    %103 = arith.addf %96, %102 : vector<1x16xf32>
    %cst_66 = arith.constant dense<0.000000e+00> : vector<16xf32>
    %104 = vector.multi_reduction <add>, %28, %cst_66 [0] : vector<8x16xf32> to vector<16xf32>
    %105 = vector.shape_cast %104 : vector<16xf32> to vector<1x16xf32>
    %106 = arith.addf %99, %105 : vector<1x16xf32>
    %107 = arith.mulf %28, %28 : vector<8x16xf32>
    %cst_67 = arith.constant dense<0.000000e+00> : vector<16xf32>
    %108 = vector.multi_reduction <add>, %107, %cst_67 [0] : vector<8x16xf32> to vector<16xf32>
    %109 = vector.shape_cast %108 : vector<16xf32> to vector<1x16xf32>
    %110 = arith.addf %103, %109 : vector<1x16xf32>
    %cst_68 = arith.constant dense<0.000000e+00> : vector<16xf32>
    %111 = vector.multi_reduction <add>, %31, %cst_68 [0] : vector<8x16xf32> to vector<16xf32>
    %112 = vector.shape_cast %111 : vector<16xf32> to vector<1x16xf32>
    %113 = arith.addf %106, %112 : vector<1x16xf32>
    %114 = arith.mulf %31, %31 : vector<8x16xf32>
    %cst_69 = arith.constant dense<0.000000e+00> : vector<16xf32>
    %115 = vector.multi_reduction <add>, %114, %cst_69 [0] : vector<8x16xf32> to vector<16xf32>
    %116 = vector.shape_cast %115 : vector<16xf32> to vector<1x16xf32>
    %117 = arith.addf %110, %116 : vector<1x16xf32>
    %cst_70 = arith.constant dense<0.000000e+00> : vector<16xf32>
    %118 = vector.multi_reduction <add>, %34, %cst_70 [0] : vector<8x16xf32> to vector<16xf32>
    %119 = vector.shape_cast %118 : vector<16xf32> to vector<1x16xf32>
    %120 = arith.addf %113, %119 : vector<1x16xf32>
    %121 = arith.mulf %34, %34 : vector<8x16xf32>
    %cst_71 = arith.constant dense<0.000000e+00> : vector<16xf32>
    %122 = vector.multi_reduction <add>, %121, %cst_71 [0] : vector<8x16xf32> to vector<16xf32>
    %123 = vector.shape_cast %122 : vector<16xf32> to vector<1x16xf32>
    %124 = arith.addf %117, %123 : vector<1x16xf32>
    %cst_72 = arith.constant dense<0.000000e+00> : vector<16xf32>
    %125 = vector.multi_reduction <add>, %37, %cst_72 [0] : vector<8x16xf32> to vector<16xf32>
    %126 = vector.shape_cast %125 : vector<16xf32> to vector<1x16xf32>
    %127 = arith.addf %120, %126 : vector<1x16xf32>
    %128 = arith.mulf %37, %37 : vector<8x16xf32>
    %cst_73 = arith.constant dense<0.000000e+00> : vector<16xf32>
    %129 = vector.multi_reduction <add>, %128, %cst_73 [0] : vector<8x16xf32> to vector<16xf32>
    %130 = vector.shape_cast %129 : vector<16xf32> to vector<1x16xf32>
    %131 = arith.addf %124, %130 : vector<1x16xf32>
    %cst_74 = arith.constant dense<0.000000e+00> : vector<16xf32>
    %132 = vector.multi_reduction <add>, %40, %cst_74 [0] : vector<8x16xf32> to vector<16xf32>
    %133 = vector.shape_cast %132 : vector<16xf32> to vector<1x16xf32>
    %134 = arith.addf %127, %133 : vector<1x16xf32>
    %135 = arith.mulf %40, %40 : vector<8x16xf32>
    %cst_75 = arith.constant dense<0.000000e+00> : vector<16xf32>
    %136 = vector.multi_reduction <add>, %135, %cst_75 [0] : vector<8x16xf32> to vector<16xf32>
    %137 = vector.shape_cast %136 : vector<16xf32> to vector<1x16xf32>
    %138 = arith.addf %131, %137 : vector<1x16xf32>
    %cst_76 = arith.constant dense<0.000000e+00> : vector<16xf32>
    %139 = vector.multi_reduction <add>, %43, %cst_76 [0] : vector<8x16xf32> to vector<16xf32>
    %140 = vector.shape_cast %139 : vector<16xf32> to vector<1x16xf32>
    %141 = arith.addf %134, %140 : vector<1x16xf32>
    %142 = arith.mulf %43, %43 : vector<8x16xf32>
    %cst_77 = arith.constant dense<0.000000e+00> : vector<16xf32>
    %143 = vector.multi_reduction <add>, %142, %cst_77 [0] : vector<8x16xf32> to vector<16xf32>
    %144 = vector.shape_cast %143 : vector<16xf32> to vector<1x16xf32>
    %145 = arith.addf %138, %144 : vector<1x16xf32>
    %cst_78 = arith.constant dense<0.000000e+00> : vector<16xf32>
    %146 = vector.multi_reduction <add>, %46, %cst_78 [0] : vector<8x16xf32> to vector<16xf32>
    %147 = vector.shape_cast %146 : vector<16xf32> to vector<1x16xf32>
    %148 = arith.addf %141, %147 : vector<1x16xf32>
    %149 = arith.mulf %46, %46 : vector<8x16xf32>
    %cst_79 = arith.constant dense<0.000000e+00> : vector<16xf32>
    %150 = vector.multi_reduction <add>, %149, %cst_79 [0] : vector<8x16xf32> to vector<16xf32>
    %151 = vector.shape_cast %150 : vector<16xf32> to vector<1x16xf32>
    %152 = arith.addf %145, %151 : vector<1x16xf32>
    %cst_80 = arith.constant dense<0.000000e+00> : vector<16xf32>
    %153 = vector.multi_reduction <add>, %49, %cst_80 [0] : vector<8x16xf32> to vector<16xf32>
    %154 = vector.shape_cast %153 : vector<16xf32> to vector<1x16xf32>
    %155 = arith.addf %148, %154 : vector<1x16xf32>
    %156 = arith.mulf %49, %49 : vector<8x16xf32>
    %cst_81 = arith.constant dense<0.000000e+00> : vector<16xf32>
    %157 = vector.multi_reduction <add>, %156, %cst_81 [0] : vector<8x16xf32> to vector<16xf32>
    %158 = vector.shape_cast %157 : vector<16xf32> to vector<1x16xf32>
    %159 = arith.addf %152, %158 : vector<1x16xf32>
    %cst_82 = arith.constant 3.125000e-02 : f32
    %160 = vector.broadcast %cst_82 : f32 to vector<1x16xf32>
    %161 = arith.mulf %155, %160 : vector<1x16xf32>
    %cst_83 = arith.constant 3.125000e-02 : f32
    %162 = vector.broadcast %cst_83 : f32 to vector<1x16xf32>
    %163 = arith.mulf %159, %162 : vector<1x16xf32>
    %164 = arith.mulf %161, %161 : vector<1x16xf32>
    %165 = arith.subf %163, %164 : vector<1x16xf32>
    %cst_84 = arith.constant 0.000000e+00 : f32
    %166 = vector.broadcast %cst_84 : f32 to vector<1x16xf32>
    %167 = arith.maximumf %165, %166 : vector<1x16xf32>
    %c0_85 = arith.constant 0 : index
    %c0_86 = arith.constant 0 : index
    %168 = vector.load %arg3[%c0_85, %c0_86] : memref<2x16xf32, #tpu.memory_space<vmem>>, vector<2x16xf32>
    %169 = vector.extract_strided_slice %168 {offsets = [0, 0], sizes = [1, 16], strides = [1, 1]} : vector<2x16xf32> to vector<1x16xf32>
    %cst_87 = arith.constant 9.99999974E-6 : f32
    %170 = vector.broadcast %cst_87 : f32 to vector<1x16xf32>
    %171 = arith.addf %167, %170 : vector<1x16xf32>
    %172 = math.rsqrt %171 : vector<1x16xf32>
    %173 = arith.mulf %169, %172 : vector<1x16xf32>
    %174 = vector.extract_strided_slice %168 {offsets = [1, 0], sizes = [1, 16], strides = [1, 1]} : vector<2x16xf32> to vector<1x16xf32>
    %175 = arith.mulf %161, %173 : vector<1x16xf32>
    %176 = arith.subf %174, %175 : vector<1x16xf32>
    %177 = vector.broadcast %173 : vector<1x16xf32> to vector<8x16xf32>
    %178 = arith.mulf %4, %177 : vector<8x16xf32>
    %179 = vector.broadcast %176 : vector<1x16xf32> to vector<8x16xf32>
    %180 = arith.addf %178, %179 : vector<8x16xf32>
    %181 = vector.broadcast %173 : vector<1x16xf32> to vector<8x16xf32>
    %182 = arith.mulf %7, %181 : vector<8x16xf32>
    %183 = vector.broadcast %176 : vector<1x16xf32> to vector<8x16xf32>
    %184 = arith.addf %182, %183 : vector<8x16xf32>
    %185 = vector.broadcast %173 : vector<1x16xf32> to vector<8x16xf32>
    %186 = arith.mulf %10, %185 : vector<8x16xf32>
    %187 = vector.broadcast %176 : vector<1x16xf32> to vector<8x16xf32>
    %188 = arith.addf %186, %187 : vector<8x16xf32>
    %189 = vector.broadcast %173 : vector<1x16xf32> to vector<8x16xf32>
    %190 = arith.mulf %13, %189 : vector<8x16xf32>
    %191 = vector.broadcast %176 : vector<1x16xf32> to vector<8x16xf32>
    %192 = arith.addf %190, %191 : vector<8x16xf32>
    %193 = vector.broadcast %173 : vector<1x16xf32> to vector<8x16xf32>
    %194 = arith.mulf %16, %193 : vector<8x16xf32>
    %195 = vector.broadcast %176 : vector<1x16xf32> to vector<8x16xf32>
    %196 = arith.addf %194, %195 : vector<8x16xf32>
    %197 = vector.broadcast %173 : vector<1x16xf32> to vector<8x16xf32>
    %198 = arith.mulf %19, %197 : vector<8x16xf32>
    %199 = vector.broadcast %176 : vector<1x16xf32> to vector<8x16xf32>
    %200 = arith.addf %198, %199 : vector<8x16xf32>
    %201 = vector.broadcast %173 : vector<1x16xf32> to vector<8x16xf32>
    %202 = arith.mulf %22, %201 : vector<8x16xf32>
    %203 = vector.broadcast %176 : vector<1x16xf32> to vector<8x16xf32>
    %204 = arith.addf %202, %203 : vector<8x16xf32>
    %205 = vector.broadcast %173 : vector<1x16xf32> to vector<8x16xf32>
    %206 = arith.mulf %25, %205 : vector<8x16xf32>
    %207 = vector.broadcast %176 : vector<1x16xf32> to vector<8x16xf32>
    %208 = arith.addf %206, %207 : vector<8x16xf32>
    %209 = vector.broadcast %173 : vector<1x16xf32> to vector<8x16xf32>
    %210 = arith.mulf %28, %209 : vector<8x16xf32>
    %211 = vector.broadcast %176 : vector<1x16xf32> to vector<8x16xf32>
    %212 = arith.addf %210, %211 : vector<8x16xf32>
    %213 = vector.broadcast %173 : vector<1x16xf32> to vector<8x16xf32>
    %214 = arith.mulf %31, %213 : vector<8x16xf32>
    %215 = vector.broadcast %176 : vector<1x16xf32> to vector<8x16xf32>
    %216 = arith.addf %214, %215 : vector<8x16xf32>
    %217 = vector.broadcast %173 : vector<1x16xf32> to vector<8x16xf32>
    %218 = arith.mulf %34, %217 : vector<8x16xf32>
    %219 = vector.broadcast %176 : vector<1x16xf32> to vector<8x16xf32>
    %220 = arith.addf %218, %219 : vector<8x16xf32>
    %221 = vector.broadcast %173 : vector<1x16xf32> to vector<8x16xf32>
    %222 = arith.mulf %37, %221 : vector<8x16xf32>
    %223 = vector.broadcast %176 : vector<1x16xf32> to vector<8x16xf32>
    %224 = arith.addf %222, %223 : vector<8x16xf32>
    %225 = vector.broadcast %173 : vector<1x16xf32> to vector<8x16xf32>
    %226 = arith.mulf %40, %225 : vector<8x16xf32>
    %227 = vector.broadcast %176 : vector<1x16xf32> to vector<8x16xf32>
    %228 = arith.addf %226, %227 : vector<8x16xf32>
    %229 = vector.broadcast %173 : vector<1x16xf32> to vector<8x16xf32>
    %230 = arith.mulf %43, %229 : vector<8x16xf32>
    %231 = vector.broadcast %176 : vector<1x16xf32> to vector<8x16xf32>
    %232 = arith.addf %230, %231 : vector<8x16xf32>
    %233 = vector.broadcast %173 : vector<1x16xf32> to vector<8x16xf32>
    %234 = arith.mulf %46, %233 : vector<8x16xf32>
    %235 = vector.broadcast %176 : vector<1x16xf32> to vector<8x16xf32>
    %236 = arith.addf %234, %235 : vector<8x16xf32>
    %237 = vector.broadcast %173 : vector<1x16xf32> to vector<8x16xf32>
    %238 = arith.mulf %49, %237 : vector<8x16xf32>
    %239 = vector.broadcast %176 : vector<1x16xf32> to vector<8x16xf32>
    %240 = arith.addf %238, %239 : vector<8x16xf32>
    %241 = arith.truncf %180 : vector<8x16xf32> to vector<8x16xbf16>
    %c0_88 = arith.constant 0 : index
    %c0_89 = arith.constant 0 : index
    %242 = vector.load %arg4[%c0_88, %c0_89] : memref<8x256xbf16, #tpu.memory_space<vmem>>, vector<8x16xbf16>
    tpu.vector_store %arg4[%c0_88, %c0_89], %241 {strides = array<i32>} : memref<8x256xbf16, #tpu.memory_space<vmem>>, vector<8x16xbf16>,
    %243 = arith.truncf %184 : vector<8x16xf32> to vector<8x16xbf16>
    %c0_90 = arith.constant 0 : index
    %c16 = arith.constant 16 : index
    %244 = vector.load %arg4[%c0_90, %c16] : memref<8x256xbf16, #tpu.memory_space<vmem>>, vector<8x16xbf16>
    tpu.vector_store %arg4[%c0_90, %c16], %243 {strides = array<i32>} : memref<8x256xbf16, #tpu.memory_space<vmem>>, vector<8x16xbf16>,
    %245 = arith.truncf %188 : vector<8x16xf32> to vector<8x16xbf16>
    %c0_91 = arith.constant 0 : index
    %c32 = arith.constant 32 : index
    %246 = vector.load %arg4[%c0_91, %c32] : memref<8x256xbf16, #tpu.memory_space<vmem>>, vector<8x16xbf16>
    tpu.vector_store %arg4[%c0_91, %c32], %245 {strides = array<i32>} : memref<8x256xbf16, #tpu.memory_space<vmem>>, vector<8x16xbf16>,
    %247 = arith.truncf %192 : vector<8x16xf32> to vector<8x16xbf16>
    %c0_92 = arith.constant 0 : index
    %c48 = arith.constant 48 : index
    %248 = vector.load %arg4[%c0_92, %c48] : memref<8x256xbf16, #tpu.memory_space<vmem>>, vector<8x16xbf16>
    tpu.vector_store %arg4[%c0_92, %c48], %247 {strides = array<i32>} : memref<8x256xbf16, #tpu.memory_space<vmem>>, vector<8x16xbf16>,
    %249 = arith.truncf %196 : vector<8x16xf32> to vector<8x16xbf16>
    %c0_93 = arith.constant 0 : index
    %c64 = arith.constant 64 : index
    %250 = vector.load %arg4[%c0_93, %c64] : memref<8x256xbf16, #tpu.memory_space<vmem>>, vector<8x16xbf16>
    tpu.vector_store %arg4[%c0_93, %c64], %249 {strides = array<i32>} : memref<8x256xbf16, #tpu.memory_space<vmem>>, vector<8x16xbf16>,
    %251 = arith.truncf %200 : vector<8x16xf32> to vector<8x16xbf16>
    %c0_94 = arith.constant 0 : index
    %c80 = arith.constant 80 : index
    %252 = vector.load %arg4[%c0_94, %c80] : memref<8x256xbf16, #tpu.memory_space<vmem>>, vector<8x16xbf16>
    tpu.vector_store %arg4[%c0_94, %c80], %251 {strides = array<i32>} : memref<8x256xbf16, #tpu.memory_space<vmem>>, vector<8x16xbf16>,
    %253 = arith.truncf %204 : vector<8x16xf32> to vector<8x16xbf16>
    %c0_95 = arith.constant 0 : index
    %c96 = arith.constant 96 : index
    %254 = vector.load %arg4[%c0_95, %c96] : memref<8x256xbf16, #tpu.memory_space<vmem>>, vector<8x16xbf16>
    tpu.vector_store %arg4[%c0_95, %c96], %253 {strides = array<i32>} : memref<8x256xbf16, #tpu.memory_space<vmem>>, vector<8x16xbf16>,
    %255 = arith.truncf %208 : vector<8x16xf32> to vector<8x16xbf16>
    %c0_96 = arith.constant 0 : index
    %c112 = arith.constant 112 : index
    %256 = vector.load %arg4[%c0_96, %c112] : memref<8x256xbf16, #tpu.memory_space<vmem>>, vector<8x16xbf16>
    tpu.vector_store %arg4[%c0_96, %c112], %255 {strides = array<i32>} : memref<8x256xbf16, #tpu.memory_space<vmem>>, vector<8x16xbf16>,
    %257 = arith.truncf %212 : vector<8x16xf32> to vector<8x16xbf16>
    %c0_97 = arith.constant 0 : index
    %c128 = arith.constant 128 : index
    %258 = vector.load %arg4[%c0_97, %c128] : memref<8x256xbf16, #tpu.memory_space<vmem>>, vector<8x16xbf16>
    tpu.vector_store %arg4[%c0_97, %c128], %257 {strides = array<i32>} : memref<8x256xbf16, #tpu.memory_space<vmem>>, vector<8x16xbf16>,
    %259 = arith.truncf %216 : vector<8x16xf32> to vector<8x16xbf16>
    %c0_98 = arith.constant 0 : index
    %c144 = arith.constant 144 : index
    %260 = vector.load %arg4[%c0_98, %c144] : memref<8x256xbf16, #tpu.memory_space<vmem>>, vector<8x16xbf16>
    tpu.vector_store %arg4[%c0_98, %c144], %259 {strides = array<i32>} : memref<8x256xbf16, #tpu.memory_space<vmem>>, vector<8x16xbf16>,
    %261 = arith.truncf %220 : vector<8x16xf32> to vector<8x16xbf16>
    %c0_99 = arith.constant 0 : index
    %c160 = arith.constant 160 : index
    %262 = vector.load %arg4[%c0_99, %c160] : memref<8x256xbf16, #tpu.memory_space<vmem>>, vector<8x16xbf16>
    tpu.vector_store %arg4[%c0_99, %c160], %261 {strides = array<i32>} : memref<8x256xbf16, #tpu.memory_space<vmem>>, vector<8x16xbf16>,
    %263 = arith.truncf %224 : vector<8x16xf32> to vector<8x16xbf16>
    %c0_100 = arith.constant 0 : index
    %c176 = arith.constant 176 : index
    %264 = vector.load %arg4[%c0_100, %c176] : memref<8x256xbf16, #tpu.memory_space<vmem>>, vector<8x16xbf16>
    tpu.vector_store %arg4[%c0_100, %c176], %263 {strides = array<i32>} : memref<8x256xbf16, #tpu.memory_space<vmem>>, vector<8x16xbf16>,
    %265 = arith.truncf %228 : vector<8x16xf32> to vector<8x16xbf16>
    %c0_101 = arith.constant 0 : index
    %c192 = arith.constant 192 : index
    %266 = vector.load %arg4[%c0_101, %c192] : memref<8x256xbf16, #tpu.memory_space<vmem>>, vector<8x16xbf16>
    tpu.vector_store %arg4[%c0_101, %c192], %265 {strides = array<i32>} : memref<8x256xbf16, #tpu.memory_space<vmem>>, vector<8x16xbf16>,
    %267 = arith.truncf %232 : vector<8x16xf32> to vector<8x16xbf16>
    %c0_102 = arith.constant 0 : index
    %c208 = arith.constant 208 : index
    %268 = vector.load %arg4[%c0_102, %c208] : memref<8x256xbf16, #tpu.memory_space<vmem>>, vector<8x16xbf16>
    tpu.vector_store %arg4[%c0_102, %c208], %267 {strides = array<i32>} : memref<8x256xbf16, #tpu.memory_space<vmem>>, vector<8x16xbf16>,
    %269 = arith.truncf %236 : vector<8x16xf32> to vector<8x16xbf16>
    %c0_103 = arith.constant 0 : index
    %c224 = arith.constant 224 : index
    %270 = vector.load %arg4[%c0_103, %c224] : memref<8x256xbf16, #tpu.memory_space<vmem>>, vector<8x16xbf16>
    tpu.vector_store %arg4[%c0_103, %c224], %269 {strides = array<i32>} : memref<8x256xbf16, #tpu.memory_space<vmem>>, vector<8x16xbf16>,
    %271 = arith.truncf %240 : vector<8x16xf32> to vector<8x16xbf16>
    %c0_104 = arith.constant 0 : index
    %c240 = arith.constant 240 : index
    %272 = vector.load %arg4[%c0_104, %c240] : memref<8x256xbf16, #tpu.memory_space<vmem>>, vector<8x16xbf16>
    tpu.vector_store %arg4[%c0_104, %c240], %271 {strides = array<i32>} : memref<8x256xbf16, #tpu.memory_space<vmem>>, vector<8x16xbf16>,
    return
  }
  func.func @transform_0(%arg0: i32) -> (i32, i32, i32) {
    %c0_i32 = arith.constant 0 : i32
    %c0_i32_0 = arith.constant 0 : i32
    %c0_i32_1 = arith.constant 0 : i32
    %c0_i32_2 = arith.constant 0 : i32
    return %c0_i32, %c0_i32_0, %c0_i32_1 : i32, i32, i32
  }
  func.func @transform_1(%arg0: i32) -> (i32, i32, i32) {
    %c0_i32 = arith.constant 0 : i32
    %c0_i32_0 = arith.constant 0 : i32
    %c0_i32_1 = arith.constant 0 : i32
    %c0_i32_2 = arith.constant 0 : i32
    return %c0_i32, %c0_i32_0, %c0_i32_1 : i32, i32, i32
  }
  func.func @transform_2(%arg0: i32) -> (i32, i32) {
    %c0_i32 = arith.constant 0 : i32
    %c0_i32_0 = arith.constant 0 : i32
    %c0_i32_1 = arith.constant 0 : i32
    return %c0_i32, %c0_i32_0 : i32, i32
  }
  func.func @transform_3(%arg0: i32) -> (i32, i32) {
    %c0_i32 = arith.constant 0 : i32
    %c0_i32_0 = arith.constant 0 : i32
    %c0_i32_1 = arith.constant 0 : i32
    return %c0_i32, %c0_i32_0 : i32, i32
  }
}

module attributes {stable_mosaic.version = 11 : i64} {
  func.func @_fused_layer_kernel(%arg0: i32, %arg1: memref<4x32x64xbf16, #tpu.memory_space<vmem>>, %arg2: memref<4x64x8xbf16, #tpu.memory_space<vmem>>, %arg3: memref<2x8xf32, #tpu.memory_space<vmem>>, %arg4: memref<32x32xbf16, #tpu.memory_space<vmem>>) attributes {dimension_semantics = [#tpu.dimension_semantics<arbitrary>], iteration_bounds = array<i64: 1>, scalar_prefetch = 0 : i64, scratch_operands = 0 : i64, tpu.core_type = #tpu.core_type<tc>, window_params = [{pipeline_mode = #tpu.pipeline_mode<synchronous>, transform_indices = @transform_0, window_bounds = array<i64: 4, 32, 64>}, {pipeline_mode = #tpu.pipeline_mode<synchronous>, transform_indices = @transform_1, window_bounds = array<i64: 4, 64, 8>}, {pipeline_mode = #tpu.pipeline_mode<synchronous>, transform_indices = @transform_2, window_bounds = array<i64: 2, 8>}, {pipeline_mode = #tpu.pipeline_mode<synchronous>, transform_indices = @transform_3, window_bounds = array<i64: 32, 32>}]} {
    %c0 = arith.constant 0 : index
    %c0_0 = arith.constant 0 : index
    %c0_1 = arith.constant 0 : index
    %0 = vector.load %arg1[%c0, %c0_0, %c0_1] : memref<4x32x64xbf16, #tpu.memory_space<vmem>>, vector<1x32x64xbf16>
    %1 = vector.shape_cast %0 : vector<1x32x64xbf16> to vector<32x64xbf16>
    %c0_2 = arith.constant 0 : index
    %c0_3 = arith.constant 0 : index
    %c0_4 = arith.constant 0 : index
    %2 = vector.load %arg2[%c0_2, %c0_3, %c0_4] : memref<4x64x8xbf16, #tpu.memory_space<vmem>>, vector<1x64x8xbf16>
    %3 = vector.shape_cast %2 : vector<1x64x8xbf16> to vector<64x8xbf16>
    %cst = arith.constant dense<0.000000e+00> : vector<32x8xf32>
    %4 = tpu.matmul %1, %3, %cst {dimension_numbers = #tpu.dot_dimension_numbers<[1], [0], [0], [1], [0, 0, 1, 1], [], []>} : vector<32x64xbf16>, vector<64x8xbf16>, vector<32x8xf32> -> vector<32x8xf32>
    %c1 = arith.constant 1 : index
    %c0_5 = arith.constant 0 : index
    %c0_6 = arith.constant 0 : index
    %5 = vector.load %arg1[%c1, %c0_5, %c0_6] : memref<4x32x64xbf16, #tpu.memory_space<vmem>>, vector<1x32x64xbf16>
    %6 = vector.shape_cast %5 : vector<1x32x64xbf16> to vector<32x64xbf16>
    %c1_7 = arith.constant 1 : index
    %c0_8 = arith.constant 0 : index
    %c0_9 = arith.constant 0 : index
    %7 = vector.load %arg2[%c1_7, %c0_8, %c0_9] : memref<4x64x8xbf16, #tpu.memory_space<vmem>>, vector<1x64x8xbf16>
    %8 = vector.shape_cast %7 : vector<1x64x8xbf16> to vector<64x8xbf16>
    %cst_10 = arith.constant dense<0.000000e+00> : vector<32x8xf32>
    %9 = tpu.matmul %6, %8, %cst_10 {dimension_numbers = #tpu.dot_dimension_numbers<[1], [0], [0], [1], [0, 0, 1, 1], [], []>} : vector<32x64xbf16>, vector<64x8xbf16>, vector<32x8xf32> -> vector<32x8xf32>
    %c2 = arith.constant 2 : index
    %c0_11 = arith.constant 0 : index
    %c0_12 = arith.constant 0 : index
    %10 = vector.load %arg1[%c2, %c0_11, %c0_12] : memref<4x32x64xbf16, #tpu.memory_space<vmem>>, vector<1x32x64xbf16>
    %11 = vector.shape_cast %10 : vector<1x32x64xbf16> to vector<32x64xbf16>
    %c2_13 = arith.constant 2 : index
    %c0_14 = arith.constant 0 : index
    %c0_15 = arith.constant 0 : index
    %12 = vector.load %arg2[%c2_13, %c0_14, %c0_15] : memref<4x64x8xbf16, #tpu.memory_space<vmem>>, vector<1x64x8xbf16>
    %13 = vector.shape_cast %12 : vector<1x64x8xbf16> to vector<64x8xbf16>
    %cst_16 = arith.constant dense<0.000000e+00> : vector<32x8xf32>
    %14 = tpu.matmul %11, %13, %cst_16 {dimension_numbers = #tpu.dot_dimension_numbers<[1], [0], [0], [1], [0, 0, 1, 1], [], []>} : vector<32x64xbf16>, vector<64x8xbf16>, vector<32x8xf32> -> vector<32x8xf32>
    %c3 = arith.constant 3 : index
    %c0_17 = arith.constant 0 : index
    %c0_18 = arith.constant 0 : index
    %15 = vector.load %arg1[%c3, %c0_17, %c0_18] : memref<4x32x64xbf16, #tpu.memory_space<vmem>>, vector<1x32x64xbf16>
    %16 = vector.shape_cast %15 : vector<1x32x64xbf16> to vector<32x64xbf16>
    %c3_19 = arith.constant 3 : index
    %c0_20 = arith.constant 0 : index
    %c0_21 = arith.constant 0 : index
    %17 = vector.load %arg2[%c3_19, %c0_20, %c0_21] : memref<4x64x8xbf16, #tpu.memory_space<vmem>>, vector<1x64x8xbf16>
    %18 = vector.shape_cast %17 : vector<1x64x8xbf16> to vector<64x8xbf16>
    %cst_22 = arith.constant dense<0.000000e+00> : vector<32x8xf32>
    %19 = tpu.matmul %16, %18, %cst_22 {dimension_numbers = #tpu.dot_dimension_numbers<[1], [0], [0], [1], [0, 0, 1, 1], [], []>} : vector<32x64xbf16>, vector<64x8xbf16>, vector<32x8xf32> -> vector<32x8xf32>
    %cst_23 = arith.constant dense<0.000000e+00> : vector<8xf32>
    %20 = vector.multi_reduction <add>, %4, %cst_23 [0] : vector<32x8xf32> to vector<8xf32>
    %21 = vector.shape_cast %20 : vector<8xf32> to vector<1x8xf32>
    %22 = arith.mulf %4, %4 : vector<32x8xf32>
    %cst_24 = arith.constant dense<0.000000e+00> : vector<8xf32>
    %23 = vector.multi_reduction <add>, %22, %cst_24 [0] : vector<32x8xf32> to vector<8xf32>
    %24 = vector.shape_cast %23 : vector<8xf32> to vector<1x8xf32>
    %cst_25 = arith.constant dense<0.000000e+00> : vector<8xf32>
    %25 = vector.multi_reduction <add>, %9, %cst_25 [0] : vector<32x8xf32> to vector<8xf32>
    %26 = vector.shape_cast %25 : vector<8xf32> to vector<1x8xf32>
    %27 = arith.addf %21, %26 : vector<1x8xf32>
    %28 = arith.mulf %9, %9 : vector<32x8xf32>
    %cst_26 = arith.constant dense<0.000000e+00> : vector<8xf32>
    %29 = vector.multi_reduction <add>, %28, %cst_26 [0] : vector<32x8xf32> to vector<8xf32>
    %30 = vector.shape_cast %29 : vector<8xf32> to vector<1x8xf32>
    %31 = arith.addf %24, %30 : vector<1x8xf32>
    %cst_27 = arith.constant dense<0.000000e+00> : vector<8xf32>
    %32 = vector.multi_reduction <add>, %14, %cst_27 [0] : vector<32x8xf32> to vector<8xf32>
    %33 = vector.shape_cast %32 : vector<8xf32> to vector<1x8xf32>
    %34 = arith.addf %27, %33 : vector<1x8xf32>
    %35 = arith.mulf %14, %14 : vector<32x8xf32>
    %cst_28 = arith.constant dense<0.000000e+00> : vector<8xf32>
    %36 = vector.multi_reduction <add>, %35, %cst_28 [0] : vector<32x8xf32> to vector<8xf32>
    %37 = vector.shape_cast %36 : vector<8xf32> to vector<1x8xf32>
    %38 = arith.addf %31, %37 : vector<1x8xf32>
    %cst_29 = arith.constant dense<0.000000e+00> : vector<8xf32>
    %39 = vector.multi_reduction <add>, %19, %cst_29 [0] : vector<32x8xf32> to vector<8xf32>
    %40 = vector.shape_cast %39 : vector<8xf32> to vector<1x8xf32>
    %41 = arith.addf %34, %40 : vector<1x8xf32>
    %42 = arith.mulf %19, %19 : vector<32x8xf32>
    %cst_30 = arith.constant dense<0.000000e+00> : vector<8xf32>
    %43 = vector.multi_reduction <add>, %42, %cst_30 [0] : vector<32x8xf32> to vector<8xf32>
    %44 = vector.shape_cast %43 : vector<8xf32> to vector<1x8xf32>
    %45 = arith.addf %38, %44 : vector<1x8xf32>
    %cst_31 = arith.constant 7.812500e-03 : f32
    %46 = vector.broadcast %cst_31 : f32 to vector<1x8xf32>
    %47 = arith.mulf %41, %46 : vector<1x8xf32>
    %cst_32 = arith.constant 7.812500e-03 : f32
    %48 = vector.broadcast %cst_32 : f32 to vector<1x8xf32>
    %49 = arith.mulf %45, %48 : vector<1x8xf32>
    %50 = arith.mulf %47, %47 : vector<1x8xf32>
    %51 = arith.subf %49, %50 : vector<1x8xf32>
    %cst_33 = arith.constant 0.000000e+00 : f32
    %52 = vector.broadcast %cst_33 : f32 to vector<1x8xf32>
    %53 = arith.maximumf %51, %52 : vector<1x8xf32>
    %c0_34 = arith.constant 0 : index
    %c0_35 = arith.constant 0 : index
    %54 = vector.load %arg3[%c0_34, %c0_35] : memref<2x8xf32, #tpu.memory_space<vmem>>, vector<2x8xf32>
    %55 = vector.extract_strided_slice %54 {offsets = [0, 0], sizes = [1, 8], strides = [1, 1]} : vector<2x8xf32> to vector<1x8xf32>
    %cst_36 = arith.constant 9.99999974E-6 : f32
    %56 = vector.broadcast %cst_36 : f32 to vector<1x8xf32>
    %57 = arith.addf %53, %56 : vector<1x8xf32>
    %58 = math.rsqrt %57 : vector<1x8xf32>
    %59 = arith.mulf %55, %58 : vector<1x8xf32>
    %60 = vector.extract_strided_slice %54 {offsets = [1, 0], sizes = [1, 8], strides = [1, 1]} : vector<2x8xf32> to vector<1x8xf32>
    %61 = arith.mulf %47, %59 : vector<1x8xf32>
    %62 = arith.subf %60, %61 : vector<1x8xf32>
    %63 = vector.broadcast %59 : vector<1x8xf32> to vector<32x8xf32>
    %64 = arith.mulf %4, %63 : vector<32x8xf32>
    %65 = vector.broadcast %62 : vector<1x8xf32> to vector<32x8xf32>
    %66 = arith.addf %64, %65 : vector<32x8xf32>
    %67 = vector.broadcast %59 : vector<1x8xf32> to vector<32x8xf32>
    %68 = arith.mulf %9, %67 : vector<32x8xf32>
    %69 = vector.broadcast %62 : vector<1x8xf32> to vector<32x8xf32>
    %70 = arith.addf %68, %69 : vector<32x8xf32>
    %71 = vector.broadcast %59 : vector<1x8xf32> to vector<32x8xf32>
    %72 = arith.mulf %14, %71 : vector<32x8xf32>
    %73 = vector.broadcast %62 : vector<1x8xf32> to vector<32x8xf32>
    %74 = arith.addf %72, %73 : vector<32x8xf32>
    %75 = vector.broadcast %59 : vector<1x8xf32> to vector<32x8xf32>
    %76 = arith.mulf %19, %75 : vector<32x8xf32>
    %77 = vector.broadcast %62 : vector<1x8xf32> to vector<32x8xf32>
    %78 = arith.addf %76, %77 : vector<32x8xf32>
    %79 = arith.truncf %66 : vector<32x8xf32> to vector<32x8xbf16>
    %c0_37 = arith.constant 0 : index
    %c0_38 = arith.constant 0 : index
    %80 = vector.load %arg4[%c0_37, %c0_38] : memref<32x32xbf16, #tpu.memory_space<vmem>>, vector<32x8xbf16>
    tpu.vector_store %arg4[%c0_37, %c0_38], %79 {strides = array<i32>} : memref<32x32xbf16, #tpu.memory_space<vmem>>, vector<32x8xbf16>,
    %81 = arith.truncf %70 : vector<32x8xf32> to vector<32x8xbf16>
    %c0_39 = arith.constant 0 : index
    %c8 = arith.constant 8 : index
    %82 = vector.load %arg4[%c0_39, %c8] : memref<32x32xbf16, #tpu.memory_space<vmem>>, vector<32x8xbf16>
    tpu.vector_store %arg4[%c0_39, %c8], %81 {strides = array<i32>} : memref<32x32xbf16, #tpu.memory_space<vmem>>, vector<32x8xbf16>,
    %83 = arith.truncf %74 : vector<32x8xf32> to vector<32x8xbf16>
    %c0_40 = arith.constant 0 : index
    %c16 = arith.constant 16 : index
    %84 = vector.load %arg4[%c0_40, %c16] : memref<32x32xbf16, #tpu.memory_space<vmem>>, vector<32x8xbf16>
    tpu.vector_store %arg4[%c0_40, %c16], %83 {strides = array<i32>} : memref<32x32xbf16, #tpu.memory_space<vmem>>, vector<32x8xbf16>,
    %85 = arith.truncf %78 : vector<32x8xf32> to vector<32x8xbf16>
    %c0_41 = arith.constant 0 : index
    %c24 = arith.constant 24 : index
    %86 = vector.load %arg4[%c0_41, %c24] : memref<32x32xbf16, #tpu.memory_space<vmem>>, vector<32x8xbf16>
    tpu.vector_store %arg4[%c0_41, %c24], %85 {strides = array<i32>} : memref<32x32xbf16, #tpu.memory_space<vmem>>, vector<32x8xbf16>,
    return
  }
  func.func @transform_0(%arg0: i32) -> (i32, i32, i32) {
    %c0_i32 = arith.constant 0 : i32
    %c0_i32_0 = arith.constant 0 : i32
    %c0_i32_1 = arith.constant 0 : i32
    %c0_i32_2 = arith.constant 0 : i32
    return %c0_i32, %c0_i32_0, %c0_i32_1 : i32, i32, i32
  }
  func.func @transform_1(%arg0: i32) -> (i32, i32, i32) {
    %c0_i32 = arith.constant 0 : i32
    %c0_i32_0 = arith.constant 0 : i32
    %c0_i32_1 = arith.constant 0 : i32
    %c0_i32_2 = arith.constant 0 : i32
    return %c0_i32, %c0_i32_0, %c0_i32_1 : i32, i32, i32
  }
  func.func @transform_2(%arg0: i32) -> (i32, i32) {
    %c0_i32 = arith.constant 0 : i32
    %c0_i32_0 = arith.constant 0 : i32
    %c0_i32_1 = arith.constant 0 : i32
    return %c0_i32, %c0_i32_0 : i32, i32
  }
  func.func @transform_3(%arg0: i32) -> (i32, i32) {
    %c0_i32 = arith.constant 0 : i32
    %c0_i32_0 = arith.constant 0 : i32
    %c0_i32_1 = arith.constant 0 : i32
    return %c0_i32, %c0_i32_0 : i32, i32
  }
}

module attributes {stable_mosaic.version = 11 : i64} {
  func.func @_fused_layer_kernel(%arg0: i32, %arg1: memref<1x128x72xbf16, #tpu.memory_space<vmem>>, %arg2: memref<1x72x8xbf16, #tpu.memory_space<vmem>>, %arg3: memref<2x8xf32, #tpu.memory_space<vmem>>, %arg4: memref<128x8xbf16, #tpu.memory_space<vmem>>) attributes {dimension_semantics = [#tpu.dimension_semantics<arbitrary>], iteration_bounds = array<i64: 1>, scalar_prefetch = 0 : i64, scratch_operands = 0 : i64, tpu.core_type = #tpu.core_type<tc>, window_params = [{pipeline_mode = #tpu.pipeline_mode<synchronous>, transform_indices = @transform_0, window_bounds = array<i64: 1, 128, 72>}, {pipeline_mode = #tpu.pipeline_mode<synchronous>, transform_indices = @transform_1, window_bounds = array<i64: 1, 72, 8>}, {pipeline_mode = #tpu.pipeline_mode<synchronous>, transform_indices = @transform_2, window_bounds = array<i64: 2, 8>}, {pipeline_mode = #tpu.pipeline_mode<synchronous>, transform_indices = @transform_3, window_bounds = array<i64: 128, 8>}]} {
    %c0 = arith.constant 0 : index
    %c0_0 = arith.constant 0 : index
    %c0_1 = arith.constant 0 : index
    %0 = vector.load %arg1[%c0, %c0_0, %c0_1] : memref<1x128x72xbf16, #tpu.memory_space<vmem>>, vector<1x128x72xbf16>
    %1 = vector.shape_cast %0 : vector<1x128x72xbf16> to vector<128x72xbf16>
    %c0_2 = arith.constant 0 : index
    %c0_3 = arith.constant 0 : index
    %c0_4 = arith.constant 0 : index
    %2 = vector.load %arg2[%c0_2, %c0_3, %c0_4] : memref<1x72x8xbf16, #tpu.memory_space<vmem>>, vector<1x72x8xbf16>
    %3 = vector.shape_cast %2 : vector<1x72x8xbf16> to vector<72x8xbf16>
    %cst = arith.constant dense<0.000000e+00> : vector<128x8xf32>
    %4 = tpu.matmul %1, %3, %cst {dimension_numbers = #tpu.dot_dimension_numbers<[1], [0], [0], [1], [0, 0, 1, 1], [], []>} : vector<128x72xbf16>, vector<72x8xbf16>, vector<128x8xf32> -> vector<128x8xf32>
    %cst_5 = arith.constant dense<0.000000e+00> : vector<8xf32>
    %5 = vector.multi_reduction <add>, %4, %cst_5 [0] : vector<128x8xf32> to vector<8xf32>
    %6 = vector.shape_cast %5 : vector<8xf32> to vector<1x8xf32>
    %7 = arith.mulf %4, %4 : vector<128x8xf32>
    %cst_6 = arith.constant dense<0.000000e+00> : vector<8xf32>
    %8 = vector.multi_reduction <add>, %7, %cst_6 [0] : vector<128x8xf32> to vector<8xf32>
    %9 = vector.shape_cast %8 : vector<8xf32> to vector<1x8xf32>
    %cst_7 = arith.constant 7.812500e-03 : f32
    %10 = vector.broadcast %cst_7 : f32 to vector<1x8xf32>
    %11 = arith.mulf %6, %10 : vector<1x8xf32>
    %cst_8 = arith.constant 7.812500e-03 : f32
    %12 = vector.broadcast %cst_8 : f32 to vector<1x8xf32>
    %13 = arith.mulf %9, %12 : vector<1x8xf32>
    %14 = arith.mulf %11, %11 : vector<1x8xf32>
    %15 = arith.subf %13, %14 : vector<1x8xf32>
    %cst_9 = arith.constant 0.000000e+00 : f32
    %16 = vector.broadcast %cst_9 : f32 to vector<1x8xf32>
    %17 = arith.maximumf %15, %16 : vector<1x8xf32>
    %c0_10 = arith.constant 0 : index
    %c0_11 = arith.constant 0 : index
    %18 = vector.load %arg3[%c0_10, %c0_11] : memref<2x8xf32, #tpu.memory_space<vmem>>, vector<2x8xf32>
    %19 = vector.extract_strided_slice %18 {offsets = [0, 0], sizes = [1, 8], strides = [1, 1]} : vector<2x8xf32> to vector<1x8xf32>
    %cst_12 = arith.constant 9.99999974E-6 : f32
    %20 = vector.broadcast %cst_12 : f32 to vector<1x8xf32>
    %21 = arith.addf %17, %20 : vector<1x8xf32>
    %22 = math.rsqrt %21 : vector<1x8xf32>
    %23 = arith.mulf %19, %22 : vector<1x8xf32>
    %24 = vector.extract_strided_slice %18 {offsets = [1, 0], sizes = [1, 8], strides = [1, 1]} : vector<2x8xf32> to vector<1x8xf32>
    %25 = arith.mulf %11, %23 : vector<1x8xf32>
    %26 = arith.subf %24, %25 : vector<1x8xf32>
    %27 = vector.broadcast %23 : vector<1x8xf32> to vector<128x8xf32>
    %28 = arith.mulf %4, %27 : vector<128x8xf32>
    %29 = vector.broadcast %26 : vector<1x8xf32> to vector<128x8xf32>
    %30 = arith.addf %28, %29 : vector<128x8xf32>
    %31 = arith.truncf %30 : vector<128x8xf32> to vector<128x8xbf16>
    %c0_13 = arith.constant 0 : index
    %c0_14 = arith.constant 0 : index
    %32 = vector.load %arg4[%c0_13, %c0_14] : memref<128x8xbf16, #tpu.memory_space<vmem>>, vector<128x8xbf16>
    tpu.vector_store %arg4[%c0_13, %c0_14], %31 {strides = array<i32>} : memref<128x8xbf16, #tpu.memory_space<vmem>>, vector<128x8xbf16>,
    return
  }
  func.func @transform_0(%arg0: i32) -> (i32, i32, i32) {
    %c0_i32 = arith.constant 0 : i32
    %c0_i32_0 = arith.constant 0 : i32
    %c0_i32_1 = arith.constant 0 : i32
    %c0_i32_2 = arith.constant 0 : i32
    return %c0_i32, %c0_i32_0, %c0_i32_1 : i32, i32, i32
  }
  func.func @transform_1(%arg0: i32) -> (i32, i32, i32) {
    %c0_i32 = arith.constant 0 : i32
    %c0_i32_0 = arith.constant 0 : i32
    %c0_i32_1 = arith.constant 0 : i32
    %c0_i32_2 = arith.constant 0 : i32
    return %c0_i32, %c0_i32_0, %c0_i32_1 : i32, i32, i32
  }
  func.func @transform_2(%arg0: i32) -> (i32, i32) {
    %c0_i32 = arith.constant 0 : i32
    %c0_i32_0 = arith.constant 0 : i32
    %c0_i32_1 = arith.constant 0 : i32
    return %c0_i32, %c0_i32_0 : i32, i32
  }
  func.func @transform_3(%arg0: i32) -> (i32, i32) {
    %c0_i32 = arith.constant 0 : i32
    %c0_i32_0 = arith.constant 0 : i32
    %c0_i32_1 = arith.constant 0 : i32
    return %c0_i32, %c0_i32_0 : i32, i32
  }
}

module attributes {stable_mosaic.version = 11 : i64} {
  func.func @_fused_layer_kernel(%arg0: i32, %arg1: memref<4x128x32xbf16, #tpu.memory_space<vmem>>, %arg2: memref<4x32x4xbf16, #tpu.memory_space<vmem>>, %arg3: memref<128x16xf32, #tpu.memory_space<vmem>>) attributes {dimension_semantics = [#tpu.dimension_semantics<arbitrary>], iteration_bounds = array<i64: 1>, scalar_prefetch = 0 : i64, scratch_operands = 0 : i64, tpu.core_type = #tpu.core_type<tc>, window_params = [{pipeline_mode = #tpu.pipeline_mode<synchronous>, transform_indices = @transform_0, window_bounds = array<i64: 4, 128, 32>}, {pipeline_mode = #tpu.pipeline_mode<synchronous>, transform_indices = @transform_1, window_bounds = array<i64: 4, 32, 4>}, {pipeline_mode = #tpu.pipeline_mode<synchronous>, transform_indices = @transform_2, window_bounds = array<i64: 128, 16>}]} {
    %c0 = arith.constant 0 : index
    %c0_0 = arith.constant 0 : index
    %c0_1 = arith.constant 0 : index
    %0 = vector.load %arg1[%c0, %c0_0, %c0_1] : memref<4x128x32xbf16, #tpu.memory_space<vmem>>, vector<1x128x32xbf16>
    %1 = vector.shape_cast %0 : vector<1x128x32xbf16> to vector<128x32xbf16>
    %c0_2 = arith.constant 0 : index
    %c0_3 = arith.constant 0 : index
    %c0_4 = arith.constant 0 : index
    %2 = vector.load %arg2[%c0_2, %c0_3, %c0_4] : memref<4x32x4xbf16, #tpu.memory_space<vmem>>, vector<1x32x4xbf16>
    %3 = vector.shape_cast %2 : vector<1x32x4xbf16> to vector<32x4xbf16>
    %cst = arith.constant dense<0.000000e+00> : vector<128x4xf32>
    %4 = tpu.matmul %1, %3, %cst {dimension_numbers = #tpu.dot_dimension_numbers<[1], [0], [0], [1], [0, 0, 1, 1], [], []>} : vector<128x32xbf16>, vector<32x4xbf16>, vector<128x4xf32> -> vector<128x4xf32>
    %c1 = arith.constant 1 : index
    %c0_5 = arith.constant 0 : index
    %c0_6 = arith.constant 0 : index
    %5 = vector.load %arg1[%c1, %c0_5, %c0_6] : memref<4x128x32xbf16, #tpu.memory_space<vmem>>, vector<1x128x32xbf16>
    %6 = vector.shape_cast %5 : vector<1x128x32xbf16> to vector<128x32xbf16>
    %c1_7 = arith.constant 1 : index
    %c0_8 = arith.constant 0 : index
    %c0_9 = arith.constant 0 : index
    %7 = vector.load %arg2[%c1_7, %c0_8, %c0_9] : memref<4x32x4xbf16, #tpu.memory_space<vmem>>, vector<1x32x4xbf16>
    %8 = vector.shape_cast %7 : vector<1x32x4xbf16> to vector<32x4xbf16>
    %cst_10 = arith.constant dense<0.000000e+00> : vector<128x4xf32>
    %9 = tpu.matmul %6, %8, %cst_10 {dimension_numbers = #tpu.dot_dimension_numbers<[1], [0], [0], [1], [0, 0, 1, 1], [], []>} : vector<128x32xbf16>, vector<32x4xbf16>, vector<128x4xf32> -> vector<128x4xf32>
    %c2 = arith.constant 2 : index
    %c0_11 = arith.constant 0 : index
    %c0_12 = arith.constant 0 : index
    %10 = vector.load %arg1[%c2, %c0_11, %c0_12] : memref<4x128x32xbf16, #tpu.memory_space<vmem>>, vector<1x128x32xbf16>
    %11 = vector.shape_cast %10 : vector<1x128x32xbf16> to vector<128x32xbf16>
    %c2_13 = arith.constant 2 : index
    %c0_14 = arith.constant 0 : index
    %c0_15 = arith.constant 0 : index
    %12 = vector.load %arg2[%c2_13, %c0_14, %c0_15] : memref<4x32x4xbf16, #tpu.memory_space<vmem>>, vector<1x32x4xbf16>
    %13 = vector.shape_cast %12 : vector<1x32x4xbf16> to vector<32x4xbf16>
    %cst_16 = arith.constant dense<0.000000e+00> : vector<128x4xf32>
    %14 = tpu.matmul %11, %13, %cst_16 {dimension_numbers = #tpu.dot_dimension_numbers<[1], [0], [0], [1], [0, 0, 1, 1], [], []>} : vector<128x32xbf16>, vector<32x4xbf16>, vector<128x4xf32> -> vector<128x4xf32>
    %c3 = arith.constant 3 : index
    %c0_17 = arith.constant 0 : index
    %c0_18 = arith.constant 0 : index
    %15 = vector.load %arg1[%c3, %c0_17, %c0_18] : memref<4x128x32xbf16, #tpu.memory_space<vmem>>, vector<1x128x32xbf16>
    %16 = vector.shape_cast %15 : vector<1x128x32xbf16> to vector<128x32xbf16>
    %c3_19 = arith.constant 3 : index
    %c0_20 = arith.constant 0 : index
    %c0_21 = arith.constant 0 : index
    %17 = vector.load %arg2[%c3_19, %c0_20, %c0_21] : memref<4x32x4xbf16, #tpu.memory_space<vmem>>, vector<1x32x4xbf16>
    %18 = vector.shape_cast %17 : vector<1x32x4xbf16> to vector<32x4xbf16>
    %cst_22 = arith.constant dense<0.000000e+00> : vector<128x4xf32>
    %19 = tpu.matmul %16, %18, %cst_22 {dimension_numbers = #tpu.dot_dimension_numbers<[1], [0], [0], [1], [0, 0, 1, 1], [], []>} : vector<128x32xbf16>, vector<32x4xbf16>, vector<128x4xf32> -> vector<128x4xf32>
    %20 = math.tanh %4 : vector<128x4xf32>
    %21 = math.tanh %9 : vector<128x4xf32>
    %22 = math.tanh %14 : vector<128x4xf32>
    %23 = math.tanh %19 : vector<128x4xf32>
    %c0_23 = arith.constant 0 : index
    %c0_24 = arith.constant 0 : index
    %24 = vector.load %arg3[%c0_23, %c0_24] : memref<128x16xf32, #tpu.memory_space<vmem>>, vector<128x4xf32>
    tpu.vector_store %arg3[%c0_23, %c0_24], %20 {strides = array<i32>} : memref<128x16xf32, #tpu.memory_space<vmem>>, vector<128x4xf32>,
    %c0_25 = arith.constant 0 : index
    %c4 = arith.constant 4 : index
    %25 = vector.load %arg3[%c0_25, %c4] : memref<128x16xf32, #tpu.memory_space<vmem>>, vector<128x4xf32>
    tpu.vector_store %arg3[%c0_25, %c4], %21 {strides = array<i32>} : memref<128x16xf32, #tpu.memory_space<vmem>>, vector<128x4xf32>,
    %c0_26 = arith.constant 0 : index
    %c8 = arith.constant 8 : index
    %26 = vector.load %arg3[%c0_26, %c8] : memref<128x16xf32, #tpu.memory_space<vmem>>, vector<128x4xf32>
    tpu.vector_store %arg3[%c0_26, %c8], %22 {strides = array<i32>} : memref<128x16xf32, #tpu.memory_space<vmem>>, vector<128x4xf32>,
    %c0_27 = arith.constant 0 : index
    %c12 = arith.constant 12 : index
    %27 = vector.load %arg3[%c0_27, %c12] : memref<128x16xf32, #tpu.memory_space<vmem>>, vector<128x4xf32>
    tpu.vector_store %arg3[%c0_27, %c12], %23 {strides = array<i32>} : memref<128x16xf32, #tpu.memory_space<vmem>>, vector<128x4xf32>,
    return
  }
  func.func @transform_0(%arg0: i32) -> (i32, i32, i32) {
    %c0_i32 = arith.constant 0 : i32
    %c0_i32_0 = arith.constant 0 : i32
    %c0_i32_1 = arith.constant 0 : i32
    %c0_i32_2 = arith.constant 0 : i32
    return %c0_i32, %c0_i32_0, %c0_i32_1 : i32, i32, i32
  }
  func.func @transform_1(%arg0: i32) -> (i32, i32, i32) {
    %c0_i32 = arith.constant 0 : i32
    %c0_i32_0 = arith.constant 0 : i32
    %c0_i32_1 = arith.constant 0 : i32
    %c0_i32_2 = arith.constant 0 : i32
    return %c0_i32, %c0_i32_0, %c0_i32_1 : i32, i32, i32
  }
  func.func @transform_2(%arg0: i32) -> (i32, i32) {
    %c0_i32 = arith.constant 0 : i32
    %c0_i32_0 = arith.constant 0 : i32
    %c0_i32_1 = arith.constant 0 : i32
    return %c0_i32, %c0_i32_0 : i32, i32
  }
}

</mosaic_0001>

<llo_original>
// kernel: decoder_forward.5
$region0: #{decoder_forward.5}
  #allocation0 [shape = 'u32[]', space=smem, size = 0x4, offset = 0x4, fixed_abs, tag = 'smem constant byte address 0x4 - core index']
  #allocation1 [shape = 'u32[144,128]{1,0:T(1,128)}', space=vmem, size = 0x12000, scoped, tag = 'internal scratch']
  %s0 = inlined_call_operand.vmem [shape: bf16[4,32,64], index: 0, kind: input, shape index: {}]
  %s1 = inlined_call_operand.vmem [shape: bf16[4,64,8], index: 1, kind: input, shape index: {}]
  %s2 = inlined_call_operand.vmem [shape: f32[2,8], index: 2, kind: input, shape index: {}]
  %s3 = inlined_call_operand.vmem [shape: bf16[32,32], index: 3, kind: output, shape index: {}]
  %s4 = sld [smem:[#allocation0]]
  $region22: #{decoder_forward.5} parent=0
    _
  %s6 = ssub.s32 1, %s4
  %s7 = scalar_select 0, %s6, %s4
  // Predicated region
  $region2: #{decoder_forward.5} parent=0 // pred_check
    _
  $region3: #{decoder_forward.5} parent=0 // pred_check_branch
    %9 = sbr.rel (0) target = $region5
  $region4: #{decoder_forward.5} parent=0 // pred_region
    _
  $region5: #{decoder_forward.5} parent=0 // pred_fallthru
    _
  // Predicated region
  $region6: #{decoder_forward.5} parent=0 // pred_check
    _
  $region7: #{decoder_forward.5} parent=0 // pred_check_branch
    %11 = sbr.rel (0) target = $region9
  $region8: #{decoder_forward.5} parent=0 // pred_region
    _
  $region9: #{decoder_forward.5} parent=0 // pred_fallthru
    _
  // Predicated region
  $region10: #{decoder_forward.5} parent=0 // pred_check
    _
  $region11: #{decoder_forward.5} parent=0 // pred_check_branch
    %13 = sbr.rel (0) target = $region13
  $region12: #{decoder_forward.5} parent=0 // pred_region
    _
  $region13: #{decoder_forward.5} parent=0 // pred_fallthru
    _
  %v15 = vld [vmem:[%s0] sm:$0xf]
  %v16 = vld [vmem:[%s0 + $0x4] sm:$0xf]
  %v17 = vld [vmem:[%s0 + $0x8] sm:$0xf]
  %v18 = vld [vmem:[%s0 + $0xc] sm:$0xf]
  %v19 = vld [vmem:[%s1] sm:$0xf]
  %v20 = vld [vmem:[%s1 + $0x4] sm:$0xf]
  %v21 = vld [vmem:[%s1 + $0x8] sm:$0xf]
  %v22 = vld [vmem:[%s1 + $0xc] sm:$0xf]
  %v23 = vld [vmem:[%s1 + $0x10] sm:$0xf]
  %v24 = vld [vmem:[%s1 + $0x14] sm:$0xf]
  %v25 = vld [vmem:[%s1 + $0x18] sm:$0xf]
  %v26 = vld [vmem:[%s1 + $0x1c] sm:$0xf]
  %v31 = vunpack.c.l.b16 %v15
  %v32 = vunpack.c.l.b16 %v16
  %v33 = vunpack.c.l.b16 %v17
  %v34 = vunpack.c.l.b16 %v18
  %v35 = vpack.c.b16 %v32, %v31
  %v36 = vpack.c.b16 %v34, %v33
  %v45 = vunpack.c.l.b16 %v19
  %v46 = vunpack.c.l.b16 %v20
  %v47 = vunpack.c.l.b16 %v21
  %v48 = vunpack.c.l.b16 %v22
  %v49 = vunpack.c.l.b16 %v23
  %v50 = vunpack.c.l.b16 %v24
  %v51 = vunpack.c.l.b16 %v25
  %v52 = vunpack.c.l.b16 %v26
  %v53 = vpack.c.b16 %v46, %v45
  %v54 = vpack.c.b16 %v48, %v47
  %v55 = vpack.c.b16 %v50, %v49
  %v56 = vpack.c.b16 %v52, %v51
  %vm61 = vcmask 523264
  %v63 = vsel %vm61, %v35, 0
  %v66 = vsel %vm61, %v36, 0
  %68 = vmatprep.subr.bf16.mxu0 0
  %69 = vmatpush1.bf16.msra.mxu0 %v53
  %70 = vmatprep.subr.bf16.mxu0 0
  %71 = vmatpush1.bf16.msra.mxu0 %v54
  %72 = vmatprep.subr.bf16.mxu0 0
  %73 = vmatpush1.bf16.msra.mxu0 %v55
  %74 = vmatprep.subr.bf16.mxu0 0
  %75 = vmatpush1.bf16.msra.mxu0 %v56
  %76 = vmatprep.subr.bf16.mxu0 0
  %77 = vmatpush1.bf16.msra.mxu0 0
  %78 = vmatprep.subr.bf16.mxu0 0
  %79 = vmatpush1.bf16.msra.mxu0 0
  %80 = vmatprep.subr.bf16.mxu0 0
  %81 = vmatpush1.bf16.msra.mxu0 0
  %82 = vmatprep.subr.bf16.mxu0 0
  %83 = vmatpush1.bf16.msra.mxu0 0
  %84 = vmatprep.subr.bf16.mxu0 0
  %85 = vmatpush1.bf16.msra.mxu0 0
  %86 = vmatprep.subr.bf16.mxu0 0
  %87 = vmatpush1.bf16.msra.mxu0 0
  %88 = vmatprep.subr.bf16.mxu0 0
  %89 = vmatpush1.bf16.msra.mxu0 0
  %90 = vmatprep.subr.bf16.mxu0 0
  %91 = vmatpush1.bf16.msra.mxu0 0
  %92 = vmatprep.subr.bf16.mxu0 0
  %93 = vmatpush1.bf16.msra.mxu0 0
  %94 = vmatprep.subr.bf16.mxu0 0
  %95 = vmatpush1.bf16.msra.mxu0 0
  %96 = vmatprep.subr.bf16.mxu0 0
  %97 = vmatpush1.bf16.msra.mxu0 0
  %98 = vmatprep.subr.bf16.mxu0 0
  %99 = vmatpush1.bf16.msra.mxu0 0
  %100 = vmatprep.mubr.bf16.mxu0 0
  %101 = vmatmul.mubr.bf16.gmra.mrb[0].mxu0 %v63
  %v102 = vpop.f32.mrb[0].mxu0
  %v103 = vadd.f32 0.0, %v102
  %v104 = vpop.f32.mrb[0].mxu0
  %v105 = vpop.f32.mrb[0].mxu0
  %v106 = vadd.f32 0.0, %v105
  %v107 = vpop.f32.mrb[0].mxu0
  %108 = vmatprep.mubr.bf16.mxu0 0
  %109 = vmatmul.mubr.bf16.gmra.mrb[0].mxu0 %v66
  %v110 = vpop.f32.mrb[0].mxu0
  %v111 = vadd.f32 0.0, %v110
  %v112 = vpop.f32.mrb[0].mxu0
  %v113 = vpop.f32.mrb[0].mxu0
  %v114 = vadd.f32 0.0, %v113
  %v115 = vpop.f32.mrb[0].mxu0
  %116 = vdwg.mxu0
  %s117 = scalar_lea.vmem %s0, 16
  %v118 = vld [vmem:[%s117] sm:$0xf]
  %v119 = vld [vmem:[%s117 + $0x4] sm:$0xf]
  %v120 = vld [vmem:[%s117 + $0x8] sm:$0xf]
  %v121 = vld [vmem:[%s117 + $0xc] sm:$0xf]
  %s122 = scalar_lea.vmem %s1, 32
  %v123 = vld [vmem:[%s122] sm:$0xf]
  %v124 = vld [vmem:[%s122 + $0x4] sm:$0xf]
  %v125 = vld [vmem:[%s122 + $0x8] sm:$0xf]
  %v126 = vld [vmem:[%s122 + $0xc] sm:$0xf]
  %v127 = vld [vmem:[%s122 + $0x10] sm:$0xf]
  %v128 = vld [vmem:[%s122 + $0x14] sm:$0xf]
  %v129 = vld [vmem:[%s122 + $0x18] sm:$0xf]
  %v130 = vld [vmem:[%s122 + $0x1c] sm:$0xf]
  %v135 = vunpack.c.l.b16 %v118
  %v136 = vunpack.c.l.b16 %v119
  %v137 = vunpack.c.l.b16 %v120
  %v138 = vunpack.c.l.b16 %v121
  %v139 = vpack.c.b16 %v136, %v135
  %v140 = vpack.c.b16 %v138, %v137
  %v149 = vunpack.c.l.b16 %v123
  %v150 = vunpack.c.l.b16 %v124
  %v151 = vunpack.c.l.b16 %v125
  %v152 = vunpack.c.l.b16 %v126
  %v153 = vunpack.c.l.b16 %v127
  %v154 = vunpack.c.l.b16 %v128
  %v155 = vunpack.c.l.b16 %v129
  %v156 = vunpack.c.l.b16 %v130
  %v157 = vpack.c.b16 %v150, %v149
  %v158 = vpack.c.b16 %v152, %v151
  %v159 = vpack.c.b16 %v154, %v153
  %v160 = vpack.c.b16 %v156, %v155
  %v166 = vsel %vm61, %v139, 0
  %v169 = vsel %vm61, %v140, 0
  %171 = vmatprep.subr.bf16.mxu0 0
  %172 = vmatpush1.bf16.msra.mxu0 %v157
  %173 = vmatprep.subr.bf16.mxu0 0
  %174 = vmatpush1.bf16.msra.mxu0 %v158
  %175 = vmatprep.subr.bf16.mxu0 0
  %176 = vmatpush1.bf16.msra.mxu0 %v159
  %177 = vmatprep.subr.bf16.mxu0 0
  %178 = vmatpush1.bf16.msra.mxu0 %v160
  %179 = vmatprep.subr.bf16.mxu0 0
  %180 = vmatpush1.bf16.msra.mxu0 0
  %181 = vmatprep.subr.bf16.mxu0 0
  %182 = vmatpush1.bf16.msra.mxu0 0
  %183 = vmatprep.subr.bf16.mxu0 0
  %184 = vmatpush1.bf16.msra.mxu0 0
  %185 = vmatprep.subr.bf16.mxu0 0
  %186 = vmatpush1.bf16.msra.mxu0 0
  %187 = vmatprep.subr.bf16.mxu0 0
  %188 = vmatpush1.bf16.msra.mxu0 0
  %189 = vmatprep.subr.bf16.mxu0 0
  %190 = vmatpush1.bf16.msra.mxu0 0
  %191 = vmatprep.subr.bf16.mxu0 0
  %192 = vmatpush1.bf16.msra.mxu0 0
  %193 = vmatprep.subr.bf16.mxu0 0
  %194 = vmatpush1.bf16.msra.mxu0 0
  %195 = vmatprep.subr.bf16.mxu0 0
  %196 = vmatpush1.bf16.msra.mxu0 0
  %197 = vmatprep.subr.bf16.mxu0 0
  %198 = vmatpush1.bf16.msra.mxu0 0
  %199 = vmatprep.subr.bf16.mxu0 0
  %200 = vmatpush1.bf16.msra.mxu0 0
  %201 = vmatprep.subr.bf16.mxu0 0
  %202 = vmatpush1.bf16.msra.mxu0 0
  %203 = vmatprep.mubr.bf16.mxu0 0
  %204 = vmatmul.mubr.bf16.gmra.mrb[0].mxu0 %v166
  %v205 = vpop.f32.mrb[0].mxu0
  %v206 = vadd.f32 0.0, %v205
  %v207 = vpop.f32.mrb[0].mxu0
  %v208 = vpop.f32.mrb[0].mxu0
  %v209 = vadd.f32 0.0, %v208
  %v210 = vpop.f32.mrb[0].mxu0
  %211 = vmatprep.mubr.bf16.mxu0 0
  %212 = vmatmul.mubr.bf16.gmra.mrb[0].mxu0 %v169
  %v213 = vpop.f32.mrb[0].mxu0
  %v214 = vadd.f32 0.0, %v213
  %v215 = vpop.f32.mrb[0].mxu0
  %v216 = vpop.f32.mrb[0].mxu0
  %v217 = vadd.f32 0.0, %v216
  %v218 = vpop.f32.mrb[0].mxu0
  %219 = vdwg.mxu0
  %s220 = scalar_lea.vmem %s0, 32
  %v221 = vld [vmem:[%s220] sm:$0xf]
  %v222 = vld [vmem:[%s220 + $0x4] sm:$0xf]
  %v223 = vld [vmem:[%s220 + $0x8] sm:$0xf]
  %v224 = vld [vmem:[%s220 + $0xc] sm:$0xf]
  %s225 = scalar_lea.vmem %s1, 64
  %v226 = vld [vmem:[%s225] sm:$0xf]
  %v227 = vld [vmem:[%s225 + $0x4] sm:$0xf]
  %v228 = vld [vmem:[%s225 + $0x8] sm:$0xf]
  %v229 = vld [vmem:[%s225 + $0xc] sm:$0xf]
  %v230 = vld [vmem:[%s225 + $0x10] sm:$0xf]
  %v231 = vld [vmem:[%s225 + $0x14] sm:$0xf]
  %v232 = vld [vmem:[%s225 + $0x18] sm:$0xf]
  %v233 = vld [vmem:[%s225 + $0x1c] sm:$0xf]
  %v238 = vunpack.c.l.b16 %v221
  %v239 = vunpack.c.l.b16 %v222
  %v240 = vunpack.c.l.b16 %v223
  %v241 = vunpack.c.l.b16 %v224
  %v242 = vpack.c.b16 %v239, %v238
  %v243 = vpack.c.b16 %v241, %v240
  %v252 = vunpack.c.l.b16 %v226
  %v253 = vunpack.c.l.b16 %v227
  %v254 = vunpack.c.l.b16 %v228
  %v255 = vunpack.c.l.b16 %v229
  %v256 = vunpack.c.l.b16 %v230
  %v257 = vunpack.c.l.b16 %v231
  %v258 = vunpack.c.l.b16 %v232
  %v259 = vunpack.c.l.b16 %v233
  %v260 = vpack.c.b16 %v253, %v252
  %v261 = vpack.c.b16 %v255, %v254
  %v262 = vpack.c.b16 %v257, %v256
  %v263 = vpack.c.b16 %v259, %v258
  %v269 = vsel %vm61, %v242, 0
  %v272 = vsel %vm61, %v243, 0
  %274 = vmatprep.subr.bf16.mxu0 0
  %275 = vmatpush1.bf16.msra.mxu0 %v260
  %276 = vmatprep.subr.bf16.mxu0 0
  %277 = vmatpush1.bf16.msra.mxu0 %v261
  %278 = vmatprep.subr.bf16.mxu0 0
  %279 = vmatpush1.bf16.msra.mxu0 %v262
  %280 = vmatprep.subr.bf16.mxu0 0
  %281 = vmatpush1.bf16.msra.mxu0 %v263
  %282 = vmatprep.subr.bf16.mxu0 0
  %283 = vmatpush1.bf16.msra.mxu0 0
  %284 = vmatprep.subr.bf16.mxu0 0
  %285 = vmatpush1.bf16.msra.mxu0 0
  %286 = vmatprep.subr.bf16.mxu0 0
  %287 = vmatpush1.bf16.msra.mxu0 0
  %288 = vmatprep.subr.bf16.mxu0 0
  %289 = vmatpush1.bf16.msra.mxu0 0
  %290 = vmatprep.subr.bf16.mxu0 0
  %291 = vmatpush1.bf16.msra.mxu0 0
  %292 = vmatprep.subr.bf16.mxu0 0
  %293 = vmatpush1.bf16.msra.mxu0 0
  %294 = vmatprep.subr.bf16.mxu0 0
  %295 = vmatpush1.bf16.msra.mxu0 0
  %296 = vmatprep.subr.bf16.mxu0 0
  %297 = vmatpush1.bf16.msra.mxu0 0
  %298 = vmatprep.subr.bf16.mxu0 0
  %299 = vmatpush1.bf16.msra.mxu0 0
  %300 = vmatprep.subr.bf16.mxu0 0
  %301 = vmatpush1.bf16.msra.mxu0 0
  %302 = vmatprep.subr.bf16.mxu0 0
  %303 = vmatpush1.bf16.msra.mxu0 0
  %304 = vmatprep.subr.bf16.mxu0 0
  %305 = vmatpush1.bf16.msra.mxu0 0
  %306 = vmatprep.mubr.bf16.mxu0 0
  %307 = vmatmul.mubr.bf16.gmra.mrb[0].mxu0 %v269
  %v308 = vpop.f32.mrb[0].mxu0
  %v309 = vadd.f32 0.0, %v308
  %v310 = vpop.f32.mrb[0].mxu0
  %v311 = vpop.f32.mrb[0].mxu0
  %v312 = vadd.f32 0.0, %v311
  %v313 = vpop.f32.mrb[0].mxu0
  %314 = vmatprep.mubr.bf16.mxu0 0
  %315 = vmatmul.mubr.bf16.gmra.mrb[0].mxu0 %v272
  %v316 = vpop.f32.mrb[0].mxu0
  %v317 = vadd.f32 0.0, %v316
  %v318 = vpop.f32.mrb[0].mxu0
  %v319 = vpop.f32.mrb[0].mxu0
  %v320 = vadd.f32 0.0, %v319
  %v321 = vpop.f32.mrb[0].mxu0
  %322 = vdwg.mxu0
  %s323 = scalar_lea.vmem %s0, 48
  %v324 = vld [vmem:[%s323] sm:$0xf]
  %v325 = vld [vmem:[%s323 + $0x4] sm:$0xf]
  %v326 = vld [vmem:[%s323 + $0x8] sm:$0xf]
  %v327 = vld [vmem:[%s323 + $0xc] sm:$0xf]
  %s328 = scalar_lea.vmem %s1, 96
  %v329 = vld [vmem:[%s328] sm:$0xf]
  %v330 = vld [vmem:[%s328 + $0x4] sm:$0xf]
  %v331 = vld [vmem:[%s328 + $0x8] sm:$0xf]
  %v332 = vld [vmem:[%s328 + $0xc] sm:$0xf]
  %v333 = vld [vmem:[%s328 + $0x10] sm:$0xf]
  %v334 = vld [vmem:[%s328 + $0x14] sm:$0xf]
  %v335 = vld [vmem:[%s328 + $0x18] sm:$0xf]
  %v336 = vld [vmem:[%s328 + $0x1c] sm:$0xf]
  %v341 = vunpack.c.l.b16 %v324
  %v342 = vunpack.c.l.b16 %v325
  %v343 = vunpack.c.l.b16 %v326
  %v344 = vunpack.c.l.b16 %v327
  %v345 = vpack.c.b16 %v342, %v341
  %v346 = vpack.c.b16 %v344, %v343
  %v355 = vunpack.c.l.b16 %v329
  %v356 = vunpack.c.l.b16 %v330
  %v357 = vunpack.c.l.b16 %v331
  %v358 = vunpack.c.l.b16 %v332
  %v359 = vunpack.c.l.b16 %v333
  %v360 = vunpack.c.l.b16 %v334
  %v361 = vunpack.c.l.b16 %v335
  %v362 = vunpack.c.l.b16 %v336
  %v363 = vpack.c.b16 %v356, %v355
  %v364 = vpack.c.b16 %v358, %v357
  %v365 = vpack.c.b16 %v360, %v359
  %v366 = vpack.c.b16 %v362, %v361
  %v372 = vsel %vm61, %v345, 0
  %v375 = vsel %vm61, %v346, 0
  %377 = vmatprep.subr.bf16.mxu0 0
  %378 = vmatpush1.bf16.msra.mxu0 %v363
  %379 = vmatprep.subr.bf16.mxu0 0
  %380 = vmatpush1.bf16.msra.mxu0 %v364
  %381 = vmatprep.subr.bf16.mxu0 0
  %382 = vmatpush1.bf16.msra.mxu0 %v365
  %383 = vmatprep.subr.bf16.mxu0 0
  %384 = vmatpush1.bf16.msra.mxu0 %v366
  %385 = vmatprep.subr.bf16.mxu0 0
  %386 = vmatpush1.bf16.msra.mxu0 0
  %387 = vmatprep.subr.bf16.mxu0 0
  %388 = vmatpush1.bf16.msra.mxu0 0
  %389 = vmatprep.subr.bf16.mxu0 0
  %390 = vmatpush1.bf16.msra.mxu0 0
  %391 = vmatprep.subr.bf16.mxu0 0
  %392 = vmatpush1.bf16.msra.mxu0 0
  %393 = vmatprep.subr.bf16.mxu0 0
  %394 = vmatpush1.bf16.msra.mxu0 0
  %395 = vmatprep.subr.bf16.mxu0 0
  %396 = vmatpush1.bf16.msra.mxu0 0
  %397 = vmatprep.subr.bf16.mxu0 0
  %398 = vmatpush1.bf16.msra.mxu0 0
  %399 = vmatprep.subr.bf16.mxu0 0
  %400 = vmatpush1.bf16.msra.mxu0 0
  %401 = vmatprep.subr.bf16.mxu0 0
  %402 = vmatpush1.bf16.msra.mxu0 0
  %403 = vmatprep.subr.bf16.mxu0 0
  %404 = vmatpush1.bf16.msra.mxu0 0
  %405 = vmatprep.subr.bf16.mxu0 0
  %406 = vmatpush1.bf16.msra.mxu0 0
  %407 = vmatprep.subr.bf16.mxu0 0
  %408 = vmatpush1.bf16.msra.mxu0 0
  %409 = vmatprep.mubr.bf16.mxu0 0
  %410 = vmatmul.mubr.bf16.gmra.mrb[0].mxu0 %v372
  %v411 = vpop.f32.mrb[0].mxu0
  %v412 = vadd.f32 0.0, %v411
  %v413 = vpop.f32.mrb[0].mxu0
  %v414 = vpop.f32.mrb[0].mxu0
  %v415 = vadd.f32 0.0, %v414
  %v416 = vpop.f32.mrb[0].mxu0
  %417 = vmatprep.mubr.bf16.mxu0 0
  %418 = vmatmul.mubr.bf16.gmra.mrb[0].mxu0 %v375
  %v419 = vpop.f32.mrb[0].mxu0
  %v420 = vadd.f32 0.0, %v419
  %v421 = vpop.f32.mrb[0].mxu0
  %v422 = vpop.f32.mrb[0].mxu0
  %v423 = vadd.f32 0.0, %v422
  %v424 = vpop.f32.mrb[0].mxu0
  %425 = vdwg.mxu0
  %vm426 = vcmask 64512
  %v427 = vsel %vm426, %v103, 0.0
  %v428 = vsel %vm426, %v106, 0.0
  %v429 = vadd.f32 %v427, %v428
  %v430 = vsel %vm426, %v111, 0.0
  %v431 = vadd.f32 %v429, %v430
  %v432 = vsel %vm426, %v114, 0.0
  %v433 = vadd.f32 %v431, %v432
  %v434 = vrot.slane %v433, 4
  %v435 = vadd.f32 %v433, %v434
  %v436 = vrot.slane %v435, 2
  %v437 = vadd.f32 %v435, %v436
  %v438 = vrot.slane %v437, 1
  %v439 = vadd.f32 %v437, %v438
  %v440 = vmul.f32 %v103, %v103
  %v441 = vmul.f32 %v106, %v106
  %v442 = vmul.f32 %v111, %v111
  %v443 = vmul.f32 %v114, %v114
  %v444 = vsel %vm426, %v440, 0.0
  %v445 = vsel %vm426, %v441, 0.0
  %v446 = vadd.f32 %v444, %v445
  %v447 = vsel %vm426, %v442, 0.0
  %v448 = vadd.f32 %v446, %v447
  %v449 = vsel %vm426, %v443, 0.0
  %v450 = vadd.f32 %v448, %v449
  %v451 = vrot.slane %v450, 4
  %v452 = vadd.f32 %v450, %v451
  %v453 = vrot.slane %v452, 2
  %v454 = vadd.f32 %v452, %v453
  %v455 = vrot.slane %v454, 1
  %v456 = vadd.f32 %v454, %v455
  %v457 = vsel %vm426, %v206, 0.0
  %v458 = vsel %vm426, %v209, 0.0
  %v459 = vadd.f32 %v457, %v458
  %v460 = vsel %vm426, %v214, 0.0
  %v461 = vadd.f32 %v459, %v460
  %v462 = vsel %vm426, %v217, 0.0
  %v463 = vadd.f32 %v461, %v462
  %v464 = vrot.slane %v463, 4
  %v465 = vadd.f32 %v463, %v464
  %v466 = vrot.slane %v465, 2
  %v467 = vadd.f32 %v465, %v466
  %v468 = vrot.slane %v467, 1
  %v469 = vadd.f32 %v467, %v468
  %v470 = vadd.f32 %v439, %v469
  %v471 = vmul.f32 %v206, %v206
  %v472 = vmul.f32 %v209, %v209
  %v473 = vmul.f32 %v214, %v214
  %v474 = vmul.f32 %v217, %v217
  %v475 = vsel %vm426, %v471, 0.0
  %v476 = vsel %vm426, %v472, 0.0
  %v477 = vadd.f32 %v475, %v476
  %v478 = vsel %vm426, %v473, 0.0
  %v479 = vadd.f32 %v477, %v478
  %v480 = vsel %vm426, %v474, 0.0
  %v481 = vadd.f32 %v479, %v480
  %v482 = vrot.slane %v481, 4
  %v483 = vadd.f32 %v481, %v482
  %v484 = vrot.slane %v483, 2
  %v485 = vadd.f32 %v483, %v484
  %v486 = vrot.slane %v485, 1
  %v487 = vadd.f32 %v485, %v486
  %v488 = vadd.f32 %v456, %v487
  %v489 = vsel %vm426, %v309, 0.0
  %v490 = vsel %vm426, %v312, 0.0
  %v491 = vadd.f32 %v489, %v490
  %v492 = vsel %vm426, %v317, 0.0
  %v493 = vadd.f32 %v491, %v492
  %v494 = vsel %vm426, %v320, 0.0
  %v495 = vadd.f32 %v493, %v494
  %v496 = vrot.slane %v495, 4
  %v497 = vadd.f32 %v495, %v496
  %v498 = vrot.slane %v497, 2
  %v499 = vadd.f32 %v497, %v498
  %v500 = vrot.slane %v499, 1
  %v501 = vadd.f32 %v499, %v500
  %v502 = vadd.f32 %v470, %v501
  %v503 = vmul.f32 %v309, %v309
  %v504 = vmul.f32 %v312, %v312
  %v505 = vmul.f32 %v317, %v317
  %v506 = vmul.f32 %v320, %v320
  %v507 = vsel %vm426, %v503, 0.0
  %v508 = vsel %vm426, %v504, 0.0
  %v509 = vadd.f32 %v507, %v508
  %v510 = vsel %vm426, %v505, 0.0
  %v511 = vadd.f32 %v509, %v510
  %v512 = vsel %vm426, %v506, 0.0
  %v513 = vadd.f32 %v511, %v512
  %v514 = vrot.slane %v513, 4
  %v515 = vadd.f32 %v513, %v514
  %v516 = vrot.slane %v515, 2
  %v517 = vadd.f32 %v515, %v516
  %v518 = vrot.slane %v517, 1
  %v519 = vadd.f32 %v517, %v518
  %v520 = vadd.f32 %v488, %v519
  %v521 = vsel %vm426, %v412, 0.0
  %v522 = vsel %vm426, %v415, 0.0
  %v523 = vadd.f32 %v521, %v522
  %v524 = vsel %vm426, %v420, 0.0
  %v525 = vadd.f32 %v523, %v524
  %v526 = vsel %vm426, %v423, 0.0
  %v527 = vadd.f32 %v525, %v526
  %v528 = vrot.slane %v527, 4
  %v529 = vadd.f32 %v527, %v528
  %v530 = vrot.slane %v529, 2
  %v531 = vadd.f32 %v529, %v530
  %v532 = vrot.slane %v531, 1
  %v533 = vadd.f32 %v531, %v532
  %v534 = vadd.f32 %v502, %v533
  %v535 = vmul.f32 %v412, %v412
  %v536 = vmul.f32 %v415, %v415
  %v537 = vmul.f32 %v420, %v420
  %v538 = vmul.f32 %v423, %v423
  %v539 = vsel %vm426, %v535, 0.0
  %v540 = vsel %vm426, %v536, 0.0
  %v541 = vadd.f32 %v539, %v540
  %v542 = vsel %vm426, %v537, 0.0
  %v543 = vadd.f32 %v541, %v542
  %v544 = vsel %vm426, %v538, 0.0
  %v545 = vadd.f32 %v543, %v544
  %v546 = vrot.slane %v545, 4
  %v547 = vadd.f32 %v545, %v546
  %v548 = vrot.slane %v547, 2
  %v549 = vadd.f32 %v547, %v548
  %v550 = vrot.slane %v549, 1
  %v551 = vadd.f32 %v549, %v550
  %v552 = vadd.f32 %v520, %v551
  %v553 = vmul.f32 %v534, 0.0078125
  %v554 = vmul.f32 %v552, 0.0078125
  %v555 = vmul.f32 %v553, %v553
  %v556 = vsub.f32 %v554, %v555
  %v557 = vmax.f32 %v556, 0.0
  %v558 = vld [vmem:[%s2] sm:$0x3]
  %v559 = vadd.f32 %v557, 1e-05
  %v560 = vrsqrt.pop %v559
  %v561 = vmul.f32 %v558, %v560
  %v562 = vmul.f32 %v553, %v561
  %v564 = vrot.slane %v562, 7
  %v566 = vsub.f32 %v558, %v564
  %v567 = vlaneseq
  %v568 = vshrl.u32 %v567, 7
  %v569 = vsub.s32 0, %v568
  %v570 = vrot.slane %v561, %v569
  %v571 = vmul.f32 %v103, %v570
  %v572 = vmul.f32 %v106, %v570
  %v573 = vmul.f32 %v111, %v570
  %v574 = vmul.f32 %v114, %v570
  %v575 = vlaneseq
  %v576 = vshrl.u32 %v575, 7
  %v577 = vsub.s32 1, %v576
  %v578 = vrot.slane %v566, %v577
  %v579 = vadd.f32 %v571, %v578
  %v580 = vadd.f32 %v572, %v578
  %v581 = vadd.f32 %v573, %v578
  %v582 = vadd.f32 %v574, %v578
  %v583 = vmul.f32 %v206, %v570
  %v584 = vmul.f32 %v209, %v570
  %v585 = vmul.f32 %v214, %v570
  %v586 = vmul.f32 %v217, %v570
  %v587 = vadd.f32 %v583, %v578
  %v588 = vadd.f32 %v584, %v578
  %v589 = vadd.f32 %v585, %v578
  %v590 = vadd.f32 %v586, %v578
  %v591 = vmul.f32 %v309, %v570
  %v592 = vmul.f32 %v312, %v570
  %v593 = vmul.f32 %v317, %v570
  %v594 = vmul.f32 %v320, %v570
  %v595 = vadd.f32 %v591, %v578
  %v596 = vadd.f32 %v592, %v578
  %v597 = vadd.f32 %v593, %v578
  %v598 = vadd.f32 %v594, %v578
  %v599 = vmul.f32 %v412, %v570
  %v600 = vmul.f32 %v415, %v570
  %v601 = vmul.f32 %v420, %v570
  %v602 = vmul.f32 %v423, %v570
  %v603 = vadd.f32 %v599, %v578
  %v604 = vadd.f32 %v600, %v578
  %v605 = vadd.f32 %v601, %v578
  %v606 = vadd.f32 %v602, %v578
  %v607 = vpack.c.bf16 %v580, %v579
  %v608 = vpack.c.bf16 %v582, %v581
  %v611 = vunpack.c.l.b16 %v607
  %v612 = vunpack.c.h.b16 %v607
  %v613 = vunpack.c.l.b16 %v608
  %v614 = vunpack.c.h.b16 %v608
  %v615 = vpack.c.b16 %v611, %v611
  %v616 = vpack.c.b16 %v612, %v612
  %v617 = vpack.c.b16 %v613, %v613
  %v618 = vpack.c.b16 %v614, %v614
  %vm623 = vcmask 60416
  %624 = vst.msk [vmem:[%s3] sm:$0xf] %vm623, %v615
  %625 = vst.msk [vmem:[%s3 + $0x4] sm:$0xf] %vm623, %v616
  %626 = vst.msk [vmem:[%s3 + $0x8] sm:$0xf] %vm623, %v617
  %627 = vst.msk [vmem:[%s3 + $0xc] sm:$0xf] %vm623, %v618
  %v628 = vpack.c.bf16 %v588, %v587
  %v629 = vpack.c.bf16 %v590, %v589
  %v632 = vunpack.c.l.b16 %v628
  %v633 = vunpack.c.h.b16 %v628
  %v634 = vunpack.c.l.b16 %v629
  %v635 = vunpack.c.h.b16 %v629
  %v636 = vpack.c.b16 %v632, %v632
  %v637 = vpack.c.b16 %v633, %v633
  %v638 = vpack.c.b16 %v634, %v634
  %v639 = vpack.c.b16 %v635, %v635
  %640 = vrot.lane.b32.xlu0 %v636, 8
  %v641 = vpop.permute.xlu0 %640
  %642 = vrot.lane.b32.xlu0 %v637, 8
  %v643 = vpop.permute.xlu0 %642
  %644 = vrot.lane.b32.xlu0 %v638, 8
  %v645 = vpop.permute.xlu0 %644
  %646 = vrot.lane.b32.xlu0 %v639, 8
  %v647 = vpop.permute.xlu0 %646
  %vm652 = vcmask 126016
  %653 = vst.msk [vmem:[%s3] sm:$0xf] %vm652, %v641
  %654 = vst.msk [vmem:[%s3 + $0x4] sm:$0xf] %vm652, %v643
  %655 = vst.msk [vmem:[%s3 + $0x8] sm:$0xf] %vm652, %v645
  %656 = vst.msk [vmem:[%s3 + $0xc] sm:$0xf] %vm652, %v647
  %v657 = vpack.c.bf16 %v596, %v595
  %v658 = vpack.c.bf16 %v598, %v597
  %v661 = vunpack.c.l.b16 %v657
  %v662 = vunpack.c.h.b16 %v657
  %v663 = vunpack.c.l.b16 %v658
  %v664 = vunpack.c.h.b16 %v658
  %v665 = vpack.c.b16 %v661, %v661
  %v666 = vpack.c.b16 %v662, %v662
  %v667 = vpack.c.b16 %v663, %v663
  %v668 = vpack.c.b16 %v664, %v664
  %669 = vrot.lane.b32.xlu0 %v665, 16
  %v670 = vpop.permute.xlu0 %669
  %671 = vrot.lane.b32.xlu0 %v666, 16
  %v672 = vpop.permute.xlu0 %671
  %673 = vrot.lane.b32.xlu0 %v667, 16
  %v674 = vpop.permute.xlu0 %673
  %675 = vrot.lane.b32.xlu0 %v668, 16
  %v676 = vpop.permute.xlu0 %675
  %vm681 = vcmask 191616
  %682 = vst.msk [vmem:[%s3] sm:$0xf] %vm681, %v670
  %683 = vst.msk [vmem:[%s3 + $0x4] sm:$0xf] %vm681, %v672
  %684 = vst.msk [vmem:[%s3 + $0x8] sm:$0xf] %vm681, %v674
  %685 = vst.msk [vmem:[%s3 + $0xc] sm:$0xf] %vm681, %v676
  %v686 = vpack.c.bf16 %v604, %v603
  %v687 = vpack.c.bf16 %v606, %v605
  %v690 = vunpack.c.l.b16 %v686
  %v691 = vunpack.c.h.b16 %v686
  %v692 = vunpack.c.l.b16 %v687
  %v693 = vunpack.c.h.b16 %v687
  %v694 = vpack.c.b16 %v690, %v690
  %v695 = vpack.c.b16 %v691, %v691
  %v696 = vpack.c.b16 %v692, %v692
  %v697 = vpack.c.b16 %v693, %v693
  %698 = vrot.lane.b32.xlu0 %v694, 24
  %v699 = vpop.permute.xlu0 %698
  %700 = vrot.lane.b32.xlu0 %v695, 24
  %v701 = vpop.permute.xlu0 %700
  %702 = vrot.lane.b32.xlu0 %v696, 24
  %v703 = vpop.permute.xlu0 %702
  %704 = vrot.lane.b32.xlu0 %v697, 24
  %v705 = vpop.permute.xlu0 %704
  %vm710 = vcmask 257216
  %711 = vst.msk [vmem:[%s3] sm:$0xf] %vm710, %v699
  %712 = vst.msk [vmem:[%s3 + $0x4] sm:$0xf] %vm710, %v701
  %713 = vst.msk [vmem:[%s3 + $0x8] sm:$0xf] %vm710, %v703
  %714 = vst.msk [vmem:[%s3 + $0xc] sm:$0xf] %vm710, %v705
  // Predicated region
  $region14: #{decoder_forward.5} parent=0 // pred_check
    _
  $region15: #{decoder_forward.5} parent=0 // pred_check_branch
    %716 = sbr.rel (0) target = $region17
  $region16: #{decoder_forward.5} parent=0 // pred_region
    _
  $region17: #{decoder_forward.5} parent=0 // pred_fallthru
    _
  // Predicated region
  $region18: #{decoder_forward.5} parent=0 // pred_check
    _
  $region19: #{decoder_forward.5} parent=0 // pred_check_branch
    %718 = sbr.rel (0) target = $region21
  $region20: #{decoder_forward.5} parent=0 // pred_region
    _
  $region21: #{decoder_forward.5} parent=0 // pred_fallthru
    _

// kernel: decoder_forward.4
$region0: #{decoder_forward.4}
  #allocation0 [shape = 'u32[]', space=smem, size = 0x4, offset = 0x4, fixed_abs, tag = 'smem constant byte address 0x4 - core index']
  #allocation1 [shape = 'u32[144,128]{1,0:T(1,128)}', space=vmem, size = 0x12000, scoped, tag = 'internal scratch']
  %s0 = inlined_call_operand.vmem [shape: bf16[1,8,32], index: 0, kind: input, shape index: {}]
  %s1 = inlined_call_operand.hbm [shape: bf16[16,32,16], index: 1, kind: input, shape index: {}]
  %s2 = inlined_call_operand.vmem [shape: f32[2,16], index: 2, kind: input, shape index: {}]
  %s3 = inlined_call_operand.vmem [shape: bf16[8,256], index: 3, kind: output, shape index: {}]
  %s4 = sld [smem:[#allocation0]]
  $region26: #{decoder_forward.4} parent=0
    _
  %s6 = ssub.s32 1, %s4
  %s7 = scalar_select 0, %s6, %s4
  $region1: #{decoder_forward.4} parent=0
    #allocation2 [shape = 'u8[131072]{0}', space=vmem, size = 0x20000, scoped, tag = 'input window, operand 1, single buffered']
    #allocation3 [shape = 's32[1]{0}', space=sflag, size = 0x4, scoped, tag = 'scoped memory for decoder_forward.4']
    %8 = vsyncpa [#allocation3], 0
    // Predicated region
    $region2: #{decoder_forward.4} parent=1 // pred_check
      _
    $region3: #{decoder_forward.4} parent=1 // pred_check_branch
      %10 = sbr.rel (0) target = $region5
    $region4: #{decoder_forward.4} parent=1 // pred_region
      _
    $region5: #{decoder_forward.4} parent=1 // pred_fallthru
      _
    // Predicated region
    $region6: #{decoder_forward.4} parent=1 // pred_check
      _
    $region7: #{decoder_forward.4} parent=1 // pred_check_branch
      %12 = sbr.rel (0) target = $region9
    $region8: #{decoder_forward.4} parent=1 // pred_region
      %s14 = ssub.s32 4096, 4096
      %15 = vsyncadd [#allocation3], %s14
      %s16 = sshll.u32 [#allocation2], 4
      %s17 = int_to_ptr.vmem [resolvable:$true] %s16
      %22 = dma.hbm_to_vmem [thread:$0]  %s1, 4096, %s17, [#allocation3], 64, 64, 4
    $region9: #{decoder_forward.4} parent=1 // pred_fallthru
      _
    // Predicated region
    $region10: #{decoder_forward.4} parent=1 // pred_check
      _
    $region11: #{decoder_forward.4} parent=1 // pred_check_branch
      %24 = sbr.rel (0) target = $region13
    $region12: #{decoder_forward.4} parent=1 // pred_region
      _
    $region13: #{decoder_forward.4} parent=1 // pred_fallthru
      _
    // Predicated region
    $region14: #{decoder_forward.4} parent=1 // pred_check
      _
    $region15: #{decoder_forward.4} parent=1 // pred_check_branch
      %26 = sbr.rel (0) target = $region17
    $region16: #{decoder_forward.4} parent=1 // pred_region
      %27 = dma.done [#allocation3], 4096
    $region17: #{decoder_forward.4} parent=1 // pred_fallthru
      _
    %v29 = vld [vmem:[%s0] sm:$0xf]
    %v30 = vld [vmem:[#allocation2] sm:$0xf]
    %v31 = vld [vmem:[#allocation2 + $0x4] sm:$0xf]
    %v32 = vld [vmem:[#allocation2 + $0x8] sm:$0xf]
    %v33 = vld [vmem:[#allocation2 + $0xc] sm:$0xf]
    %v38 = vunpack.c.l.b16 %v30
    %v39 = vunpack.c.l.b16 %v31
    %v40 = vunpack.c.l.b16 %v32
    %v41 = vunpack.c.l.b16 %v33
    %v42 = vpack.c.b16 %v39, %v38
    %v43 = vpack.c.b16 %v41, %v40
    %vm46 = vcmask 261120
    %v48 = vsel %vm46, %v29, 0
    %50 = vmatprep.subr.bf16.mxu0 0
    %51 = vmatpush1.bf16.msra.mxu0 %v42
    %52 = vmatprep.subr.bf16.mxu0 0
    %53 = vmatpush1.bf16.msra.mxu0 %v43
    %54 = vmatprep.subr.bf16.mxu0 0
    %55 = vmatpush1.bf16.msra.mxu0 0
    %56 = vmatprep.subr.bf16.mxu0 0
    %57 = vmatpush1.bf16.msra.mxu0 0
    %58 = vmatprep.subr.bf16.mxu0 0
    %59 = vmatpush1.bf16.msra.mxu0 0
    %60 = vmatprep.subr.bf16.mxu0 0
    %61 = vmatpush1.bf16.msra.mxu0 0
    %62 = vmatprep.subr.bf16.mxu0 0
    %63 = vmatpush1.bf16.msra.mxu0 0
    %64 = vmatprep.subr.bf16.mxu0 0
    %65 = vmatpush1.bf16.msra.mxu0 0
    %66 = vmatprep.subr.bf16.mxu0 0
    %67 = vmatpush1.bf16.msra.mxu0 0
    %68 = vmatprep.subr.bf16.mxu0 0
    %69 = vmatpush1.bf16.msra.mxu0 0
    %70 = vmatprep.subr.bf16.mxu0 0
    %71 = vmatpush1.bf16.msra.mxu0 0
    %72 = vmatprep.subr.bf16.mxu0 0
    %73 = vmatpush1.bf16.msra.mxu0 0
    %74 = vmatprep.subr.bf16.mxu0 0
    %75 = vmatpush1.bf16.msra.mxu0 0
    %76 = vmatprep.subr.bf16.mxu0 0
    %77 = vmatpush1.bf16.msra.mxu0 0
    %78 = vmatprep.subr.bf16.mxu0 0
    %79 = vmatpush1.bf16.msra.mxu0 0
    %80 = vmatprep.subr.bf16.mxu0 0
    %81 = vmatpush1.bf16.msra.mxu0 0
    %82 = vmatprep.mubr.bf16.mxu0 0
    %83 = vmatmul.mubr.bf16.gmra.mrb[0].mxu0 %v48
    %v84 = vpop.f32.mrb[0].mxu0
    %v85 = vadd.f32 0.0, %v84
    %v86 = vpop.f32.mrb[0].mxu0
    %v87 = vpop.f32.mrb[0].mxu0
    %v88 = vpop.f32.mrb[0].mxu0
    %89 = vdwg.mxu0
    %s90 = scalar_lea.vmem [#allocation2], 16
    %v91 = vld [vmem:[%s90] sm:$0xf]
    %v92 = vld [vmem:[%s90 + $0x4] sm:$0xf]
    %v93 = vld [vmem:[%s90 + $0x8] sm:$0xf]
    %v94 = vld [vmem:[%s90 + $0xc] sm:$0xf]
    %v99 = vunpack.c.l.b16 %v91
    %v100 = vunpack.c.l.b16 %v92
    %v101 = vunpack.c.l.b16 %v93
    %v102 = vunpack.c.l.b16 %v94
    %v103 = vpack.c.b16 %v100, %v99
    %v104 = vpack.c.b16 %v102, %v101
    %107 = vmatprep.subr.bf16.mxu0 0
    %108 = vmatpush1.bf16.msra.mxu0 %v103
    %109 = vmatprep.subr.bf16.mxu0 0
    %110 = vmatpush1.bf16.msra.mxu0 %v104
    %111 = vmatprep.subr.bf16.mxu0 0
    %112 = vmatpush1.bf16.msra.mxu0 0
    %113 = vmatprep.subr.bf16.mxu0 0
    %114 = vmatpush1.bf16.msra.mxu0 0
    %115 = vmatprep.subr.bf16.mxu0 0
    %116 = vmatpush1.bf16.msra.mxu0 0
    %117 = vmatprep.subr.bf16.mxu0 0
    %118 = vmatpush1.bf16.msra.mxu0 0
    %119 = vmatprep.subr.bf16.mxu0 0
    %120 = vmatpush1.bf16.msra.mxu0 0
    %121 = vmatprep.subr.bf16.mxu0 0
    %122 = vmatpush1.bf16.msra.mxu0 0
    %123 = vmatprep.subr.bf16.mxu0 0
    %124 = vmatpush1.bf16.msra.mxu0 0
    %125 = vmatprep.subr.bf16.mxu0 0
    %126 = vmatpush1.bf16.msra.mxu0 0
    %127 = vmatprep.subr.bf16.mxu0 0
    %128 = vmatpush1.bf16.msra.mxu0 0
    %129 = vmatprep.subr.bf16.mxu0 0
    %130 = vmatpush1.bf16.msra.mxu0 0
    %131 = vmatprep.subr.bf16.mxu0 0
    %132 = vmatpush1.bf16.msra.mxu0 0
    %133 = vmatprep.subr.bf16.mxu0 0
    %134 = vmatpush1.bf16.msra.mxu0 0
    %135 = vmatprep.subr.bf16.mxu0 0
    %136 = vmatpush1.bf16.msra.mxu0 0
    %137 = vmatprep.subr.bf16.mxu0 0
    %138 = vmatpush1.bf16.msra.mxu0 0
    %139 = vmatprep.mubr.bf16.mxu0 0
    %140 = vmatmul.mubr.bf16.gmra.mrb[0].mxu0 %v48
    %v141 = vpop.f32.mrb[0].mxu0
    %v142 = vadd.f32 0.0, %v141
    %v143 = vpop.f32.mrb[0].mxu0
    %v144 = vpop.f32.mrb[0].mxu0
    %v145 = vpop.f32.mrb[0].mxu0
    %146 = vdwg.mxu0
    %s147 = scalar_lea.vmem [#allocation2], 32
    %v148 = vld [vmem:[%s147] sm:$0xf]
    %v149 = vld [vmem:[%s147 + $0x4] sm:$0xf]
    %v150 = vld [vmem:[%s147 + $0x8] sm:$0xf]
    %v151 = vld [vmem:[%s147 + $0xc] sm:$0xf]
    %v156 = vunpack.c.l.b16 %v148
    %v157 = vunpack.c.l.b16 %v149
    %v158 = vunpack.c.l.b16 %v150
    %v159 = vunpack.c.l.b16 %v151
    %v160 = vpack.c.b16 %v157, %v156
    %v161 = vpack.c.b16 %v159, %v158
    %164 = vmatprep.subr.bf16.mxu0 0
    %165 = vmatpush1.bf16.msra.mxu0 %v160
    %166 = vmatprep.subr.bf16.mxu0 0
    %167 = vmatpush1.bf16.msra.mxu0 %v161
    %168 = vmatprep.subr.bf16.mxu0 0
    %169 = vmatpush1.bf16.msra.mxu0 0
    %170 = vmatprep.subr.bf16.mxu0 0
    %171 = vmatpush1.bf16.msra.mxu0 0
    %172 = vmatprep.subr.bf16.mxu0 0
    %173 = vmatpush1.bf16.msra.mxu0 0
    %174 = vmatprep.subr.bf16.mxu0 0
    %175 = vmatpush1.bf16.msra.mxu0 0
    %176 = vmatprep.subr.bf16.mxu0 0
    %177 = vmatpush1.bf16.msra.mxu0 0
    %178 = vmatprep.subr.bf16.mxu0 0
    %179 = vmatpush1.bf16.msra.mxu0 0
    %180 = vmatprep.subr.bf16.mxu0 0
    %181 = vmatpush1.bf16.msra.mxu0 0
    %182 = vmatprep.subr.bf16.mxu0 0
    %183 = vmatpush1.bf16.msra.mxu0 0
    %184 = vmatprep.subr.bf16.mxu0 0
    %185 = vmatpush1.bf16.msra.mxu0 0
    %186 = vmatprep.subr.bf16.mxu0 0
    %187 = vmatpush1.bf16.msra.mxu0 0
    %188 = vmatprep.subr.bf16.mxu0 0
    %189 = vmatpush1.bf16.msra.mxu0 0
    %190 = vmatprep.subr.bf16.mxu0 0
    %191 = vmatpush1.bf16.msra.mxu0 0
    %192 = vmatprep.subr.bf16.mxu0 0
    %193 = vmatpush1.bf16.msra.mxu0 0
    %194 = vmatprep.subr.bf16.mxu0 0
    %195 = vmatpush1.bf16.msra.mxu0 0
    %196 = vmatprep.mubr.bf16.mxu0 0
    %197 = vmatmul.mubr.bf16.gmra.mrb[0].mxu0 %v48
    %v198 = vpop.f32.mrb[0].mxu0
    %v199 = vadd.f32 0.0, %v198
    %v200 = vpop.f32.mrb[0].mxu0
    %v201 = vpop.f32.mrb[0].mxu0
    %v202 = vpop.f32.mrb[0].mxu0
    %203 = vdwg.mxu0
    %s204 = scalar_lea.vmem [#allocation2], 48
    %v205 = vld [vmem:[%s204] sm:$0xf]
    %v206 = vld [vmem:[%s204 + $0x4] sm:$0xf]
    %v207 = vld [vmem:[%s204 + $0x8] sm:$0xf]
    %v208 = vld [vmem:[%s204 + $0xc] sm:$0xf]
    %v213 = vunpack.c.l.b16 %v205
    %v214 = vunpack.c.l.b16 %v206
    %v215 = vunpack.c.l.b16 %v207
    %v216 = vunpack.c.l.b16 %v208
    %v217 = vpack.c.b16 %v214, %v213
    %v218 = vpack.c.b16 %v216, %v215
    %221 = vmatprep.subr.bf16.mxu0 0
    %222 = vmatpush1.bf16.msra.mxu0 %v217
    %223 = vmatprep.subr.bf16.mxu0 0
    %224 = vmatpush1.bf16.msra.mxu0 %v218
    %225 = vmatprep.subr.bf16.mxu0 0
    %226 = vmatpush1.bf16.msra.mxu0 0
    %227 = vmatprep.subr.bf16.mxu0 0
    %228 = vmatpush1.bf16.msra.mxu0 0
    %229 = vmatprep.subr.bf16.mxu0 0
    %230 = vmatpush1.bf16.msra.mxu0 0
    %231 = vmatprep.subr.bf16.mxu0 0
    %232 = vmatpush1.bf16.msra.mxu0 0
    %233 = vmatprep.subr.bf16.mxu0 0
    %234 = vmatpush1.bf16.msra.mxu0 0
    %235 = vmatprep.subr.bf16.mxu0 0
    %236 = vmatpush1.bf16.msra.mxu0 0
    %237 = vmatprep.subr.bf16.mxu0 0
    %238 = vmatpush1.bf16.msra.mxu0 0
    %239 = vmatprep.subr.bf16.mxu0 0
    %240 = vmatpush1.bf16.msra.mxu0 0
    %241 = vmatprep.subr.bf16.mxu0 0
    %242 = vmatpush1.bf16.msra.mxu0 0
    %243 = vmatprep.subr.bf16.mxu0 0
    %244 = vmatpush1.bf16.msra.mxu0 0
    %245 = vmatprep.subr.bf16.mxu0 0
    %246 = vmatpush1.bf16.msra.mxu0 0
    %247 = vmatprep.subr.bf16.mxu0 0
    %248 = vmatpush1.bf16.msra.mxu0 0
    %249 = vmatprep.subr.bf16.mxu0 0
    %250 = vmatpush1.bf16.msra.mxu0 0
    %251 = vmatprep.subr.bf16.mxu0 0
    %252 = vmatpush1.bf16.msra.mxu0 0
    %253 = vmatprep.mubr.bf16.mxu0 0
    %254 = vmatmul.mubr.bf16.gmra.mrb[0].mxu0 %v48
    %v255 = vpop.f32.mrb[0].mxu0
    %v256 = vadd.f32 0.0, %v255
    %v257 = vpop.f32.mrb[0].mxu0
    %v258 = vpop.f32.mrb[0].mxu0
    %v259 = vpop.f32.mrb[0].mxu0
    %260 = vdwg.mxu0
    %s261 = scalar_lea.vmem [#allocation2], 64
    %v262 = vld [vmem:[%s261] sm:$0xf]
    %v263 = vld [vmem:[%s261 + $0x4] sm:$0xf]
    %v264 = vld [vmem:[%s261 + $0x8] sm:$0xf]
    %v265 = vld [vmem:[%s261 + $0xc] sm:$0xf]
    %v270 = vunpack.c.l.b16 %v262
    %v271 = vunpack.c.l.b16 %v263
    %v272 = vunpack.c.l.b16 %v264
    %v273 = vunpack.c.l.b16 %v265
    %v274 = vpack.c.b16 %v271, %v270
    %v275 = vpack.c.b16 %v273, %v272
    %278 = vmatprep.subr.bf16.mxu0 0
    %279 = vmatpush1.bf16.msra.mxu0 %v274
    %280 = vmatprep.subr.bf16.mxu0 0
    %281 = vmatpush1.bf16.msra.mxu0 %v275
    %282 = vmatprep.subr.bf16.mxu0 0
    %283 = vmatpush1.bf16.msra.mxu0 0
    %284 = vmatprep.subr.bf16.mxu0 0
    %285 = vmatpush1.bf16.msra.mxu0 0
    %286 = vmatprep.subr.bf16.mxu0 0
    %287 = vmatpush1.bf16.msra.mxu0 0
    %288 = vmatprep.subr.bf16.mxu0 0
    %289 = vmatpush1.bf16.msra.mxu0 0
    %290 = vmatprep.subr.bf16.mxu0 0
    %291 = vmatpush1.bf16.msra.mxu0 0
    %292 = vmatprep.subr.bf16.mxu0 0
    %293 = vmatpush1.bf16.msra.mxu0 0
    %294 = vmatprep.subr.bf16.mxu0 0
    %295 = vmatpush1.bf16.msra.mxu0 0
    %296 = vmatprep.subr.bf16.mxu0 0
    %297 = vmatpush1.bf16.msra.mxu0 0
    %298 = vmatprep.subr.bf16.mxu0 0
    %299 = vmatpush1.bf16.msra.mxu0 0
    %300 = vmatprep.subr.bf16.mxu0 0
    %301 = vmatpush1.bf16.msra.mxu0 0
    %302 = vmatprep.subr.bf16.mxu0 0
    %303 = vmatpush1.bf16.msra.mxu0 0
    %304 = vmatprep.subr.bf16.mxu0 0
    %305 = vmatpush1.bf16.msra.mxu0 0
    %306 = vmatprep.subr.bf16.mxu0 0
    %307 = vmatpush1.bf16.msra.mxu0 0
    %308 = vmatprep.subr.bf16.mxu0 0
    %309 = vmatpush1.bf16.msra.mxu0 0
    %310 = vmatprep.mubr.bf16.mxu0 0
    %311 = vmatmul.mubr.bf16.gmra.mrb[0].mxu0 %v48
    %v312 = vpop.f32.mrb[0].mxu0
    %v313 = vadd.f32 0.0, %v312
    %v314 = vpop.f32.mrb[0].mxu0
    %v315 = vpop.f32.mrb[0].mxu0
    %v316 = vpop.f32.mrb[0].mxu0
    %317 = vdwg.mxu0
    %s318 = scalar_lea.vmem [#allocation2], 80
    %v319 = vld [vmem:[%s318] sm:$0xf]
    %v320 = vld [vmem:[%s318 + $0x4] sm:$0xf]
    %v321 = vld [vmem:[%s318 + $0x8] sm:$0xf]
    %v322 = vld [vmem:[%s318 + $0xc] sm:$0xf]
    %v327 = vunpack.c.l.b16 %v319
    %v328 = vunpack.c.l.b16 %v320
    %v329 = vunpack.c.l.b16 %v321
    %v330 = vunpack.c.l.b16 %v322
    %v331 = vpack.c.b16 %v328, %v327
    %v332 = vpack.c.b16 %v330, %v329
    %335 = vmatprep.subr.bf16.mxu0 0
    %336 = vmatpush1.bf16.msra.mxu0 %v331
    %337 = vmatprep.subr.bf16.mxu0 0
    %338 = vmatpush1.bf16.msra.mxu0 %v332
    %339 = vmatprep.subr.bf16.mxu0 0
    %340 = vmatpush1.bf16.msra.mxu0 0
    %341 = vmatprep.subr.bf16.mxu0 0
    %342 = vmatpush1.bf16.msra.mxu0 0
    %343 = vmatprep.subr.bf16.mxu0 0
    %344 = vmatpush1.bf16.msra.mxu0 0
    %345 = vmatprep.subr.bf16.mxu0 0
    %346 = vmatpush1.bf16.msra.mxu0 0
    %347 = vmatprep.subr.bf16.mxu0 0
    %348 = vmatpush1.bf16.msra.mxu0 0
    %349 = vmatprep.subr.bf16.mxu0 0
    %350 = vmatpush1.bf16.msra.mxu0 0
    %351 = vmatprep.subr.bf16.mxu0 0
    %352 = vmatpush1.bf16.msra.mxu0 0
    %353 = vmatprep.subr.bf16.mxu0 0
    %354 = vmatpush1.bf16.msra.mxu0 0
    %355 = vmatprep.subr.bf16.mxu0 0
    %356 = vmatpush1.bf16.msra.mxu0 0
    %357 = vmatprep.subr.bf16.mxu0 0
    %358 = vmatpush1.bf16.msra.mxu0 0
    %359 = vmatprep.subr.bf16.mxu0 0
    %360 = vmatpush1.bf16.msra.mxu0 0
    %361 = vmatprep.subr.bf16.mxu0 0
    %362 = vmatpush1.bf16.msra.mxu0 0
    %363 = vmatprep.subr.bf16.mxu0 0
    %364 = vmatpush1.bf16.msra.mxu0 0
    %365 = vmatprep.subr.bf16.mxu0 0
    %366 = vmatpush1.bf16.msra.mxu0 0
    %367 = vmatprep.mubr.bf16.mxu0 0
    %368 = vmatmul.mubr.bf16.gmra.mrb[0].mxu0 %v48
    %v369 = vpop.f32.mrb[0].mxu0
    %v370 = vadd.f32 0.0, %v369
    %v371 = vpop.f32.mrb[0].mxu0
    %v372 = vpop.f32.mrb[0].mxu0
    %v373 = vpop.f32.mrb[0].mxu0
    %374 = vdwg.mxu0
    %s375 = scalar_lea.vmem [#allocation2], 96
    %v376 = vld [vmem:[%s375] sm:$0xf]
    %v377 = vld [vmem:[%s375 + $0x4] sm:$0xf]
    %v378 = vld [vmem:[%s375 + $0x8] sm:$0xf]
    %v379 = vld [vmem:[%s375 + $0xc] sm:$0xf]
    %v384 = vunpack.c.l.b16 %v376
    %v385 = vunpack.c.l.b16 %v377
    %v386 = vunpack.c.l.b16 %v378
    %v387 = vunpack.c.l.b16 %v379
    %v388 = vpack.c.b16 %v385, %v384
    %v389 = vpack.c.b16 %v387, %v386
    %392 = vmatprep.subr.bf16.mxu0 0
    %393 = vmatpush1.bf16.msra.mxu0 %v388
    %394 = vmatprep.subr.bf16.mxu0 0
    %395 = vmatpush1.bf16.msra.mxu0 %v389
    %396 = vmatprep.subr.bf16.mxu0 0
    %397 = vmatpush1.bf16.msra.mxu0 0
    %398 = vmatprep.subr.bf16.mxu0 0
    %399 = vmatpush1.bf16.msra.mxu0 0
    %400 = vmatprep.subr.bf16.mxu0 0
    %401 = vmatpush1.bf16.msra.mxu0 0
    %402 = vmatprep.subr.bf16.mxu0 0
    %403 = vmatpush1.bf16.msra.mxu0 0
    %404 = vmatprep.subr.bf16.mxu0 0
    %405 = vmatpush1.bf16.msra.mxu0 0
    %406 = vmatprep.subr.bf16.mxu0 0
    %407 = vmatpush1.bf16.msra.mxu0 0
    %408 = vmatprep.subr.bf16.mxu0 0
    %409 = vmatpush1.bf16.msra.mxu0 0
    %410 = vmatprep.subr.bf16.mxu0 0
    %411 = vmatpush1.bf16.msra.mxu0 0
    %412 = vmatprep.subr.bf16.mxu0 0
    %413 = vmatpush1.bf16.msra.mxu0 0
    %414 = vmatprep.subr.bf16.mxu0 0
    %415 = vmatpush1.bf16.msra.mxu0 0
    %416 = vmatprep.subr.bf16.mxu0 0
    %417 = vmatpush1.bf16.msra.mxu0 0
    %418 = vmatprep.subr.bf16.mxu0 0
    %419 = vmatpush1.bf16.msra.mxu0 0
    %420 = vmatprep.subr.bf16.mxu0 0
    %421 = vmatpush1.bf16.msra.mxu0 0
    %422 = vmatprep.subr.bf16.mxu0 0
    %423 = vmatpush1.bf16.msra.mxu0 0
    %424 = vmatprep.mubr.bf16.mxu0 0
    %425 = vmatmul.mubr.bf16.gmra.mrb[0].mxu0 %v48
    %v426 = vpop.f32.mrb[0].mxu0
    %v427 = vadd.f32 0.0, %v426
    %v428 = vpop.f32.mrb[0].mxu0
    %v429 = vpop.f32.mrb[0].mxu0
    %v430 = vpop.f32.mrb[0].mxu0
    %431 = vdwg.mxu0
    %s432 = scalar_lea.vmem [#allocation2], 112
    %v433 = vld [vmem:[%s432] sm:$0xf]
    %v434 = vld [vmem:[%s432 + $0x4] sm:$0xf]
    %v435 = vld [vmem:[%s432 + $0x8] sm:$0xf]
    %v436 = vld [vmem:[%s432 + $0xc] sm:$0xf]
    %v441 = vunpack.c.l.b16 %v433
    %v442 = vunpack.c.l.b16 %v434
    %v443 = vunpack.c.l.b16 %v435
    %v444 = vunpack.c.l.b16 %v436
    %v445 = vpack.c.b16 %v442, %v441
    %v446 = vpack.c.b16 %v444, %v443
    %449 = vmatprep.subr.bf16.mxu0 0
    %450 = vmatpush1.bf16.msra.mxu0 %v445
    %451 = vmatprep.subr.bf16.mxu0 0
    %452 = vmatpush1.bf16.msra.mxu0 %v446
    %453 = vmatprep.subr.bf16.mxu0 0
    %454 = vmatpush1.bf16.msra.mxu0 0
    %455 = vmatprep.subr.bf16.mxu0 0
    %456 = vmatpush1.bf16.msra.mxu0 0
    %457 = vmatprep.subr.bf16.mxu0 0
    %458 = vmatpush1.bf16.msra.mxu0 0
    %459 = vmatprep.subr.bf16.mxu0 0
    %460 = vmatpush1.bf16.msra.mxu0 0
    %461 = vmatprep.subr.bf16.mxu0 0
    %462 = vmatpush1.bf16.msra.mxu0 0
    %463 = vmatprep.subr.bf16.mxu0 0
    %464 = vmatpush1.bf16.msra.mxu0 0
    %465 = vmatprep.subr.bf16.mxu0 0
    %466 = vmatpush1.bf16.msra.mxu0 0
    %467 = vmatprep.subr.bf16.mxu0 0
    %468 = vmatpush1.bf16.msra.mxu0 0
    %469 = vmatprep.subr.bf16.mxu0 0
    %470 = vmatpush1.bf16.msra.mxu0 0
    %471 = vmatprep.subr.bf16.mxu0 0
    %472 = vmatpush1.bf16.msra.mxu0 0
    %473 = vmatprep.subr.bf16.mxu0 0
    %474 = vmatpush1.bf16.msra.mxu0 0
    %475 = vmatprep.subr.bf16.mxu0 0
    %476 = vmatpush1.bf16.msra.mxu0 0
    %477 = vmatprep.subr.bf16.mxu0 0
    %478 = vmatpush1.bf16.msra.mxu0 0
    %479 = vmatprep.subr.bf16.mxu0 0
    %480 = vmatpush1.bf16.msra.mxu0 0
    %481 = vmatprep.mubr.bf16.mxu0 0
    %482 = vmatmul.mubr.bf16.gmra.mrb[0].mxu0 %v48
    %v483 = vpop.f32.mrb[0].mxu0
    %v484 = vadd.f32 0.0, %v483
    %v485 = vpop.f32.mrb[0].mxu0
    %v486 = vpop.f32.mrb[0].mxu0
    %v487 = vpop.f32.mrb[0].mxu0
    %488 = vdwg.mxu0
    %s489 = scalar_lea.vmem [#allocation2], 128
    %v490 = vld [vmem:[%s489] sm:$0xf]
    %v491 = vld [vmem:[%s489 + $0x4] sm:$0xf]
    %v492 = vld [vmem:[%s489 + $0x8] sm:$0xf]
    %v493 = vld [vmem:[%s489 + $0xc] sm:$0xf]
    %v498 = vunpack.c.l.b16 %v490
    %v499 = vunpack.c.l.b16 %v491
    %v500 = vunpack.c.l.b16 %v492
    %v501 = vunpack.c.l.b16 %v493
    %v502 = vpack.c.b16 %v499, %v498
    %v503 = vpack.c.b16 %v501, %v500
    %506 = vmatprep.subr.bf16.mxu0 0
    %507 = vmatpush1.bf16.msra.mxu0 %v502
    %508 = vmatprep.subr.bf16.mxu0 0
    %509 = vmatpush1.bf16.msra.mxu0 %v503
    %510 = vmatprep.subr.bf16.mxu0 0
    %511 = vmatpush1.bf16.msra.mxu0 0
    %512 = vmatprep.subr.bf16.mxu0 0
    %513 = vmatpush1.bf16.msra.mxu0 0
    %514 = vmatprep.subr.bf16.mxu0 0
    %515 = vmatpush1.bf16.msra.mxu0 0
    %516 = vmatprep.subr.bf16.mxu0 0
    %517 = vmatpush1.bf16.msra.mxu0 0
    %518 = vmatprep.subr.bf16.mxu0 0
    %519 = vmatpush1.bf16.msra.mxu0 0
    %520 = vmatprep.subr.bf16.mxu0 0
    %521 = vmatpush1.bf16.msra.mxu0 0
    %522 = vmatprep.subr.bf16.mxu0 0
    %523 = vmatpush1.bf16.msra.mxu0 0
    %524 = vmatprep.subr.bf16.mxu0 0
    %525 = vmatpush1.bf16.msra.mxu0 0
    %526 = vmatprep.subr.bf16.mxu0 0
    %527 = vmatpush1.bf16.msra.mxu0 0
    %528 = vmatprep.subr.bf16.mxu0 0
    %529 = vmatpush1.bf16.msra.mxu0 0
    %530 = vmatprep.subr.bf16.mxu0 0
    %531 = vmatpush1.bf16.msra.mxu0 0
    %532 = vmatprep.subr.bf16.mxu0 0
    %533 = vmatpush1.bf16.msra.mxu0 0
    %534 = vmatprep.subr.bf16.mxu0 0
    %535 = vmatpush1.bf16.msra.mxu0 0
    %536 = vmatprep.subr.bf16.mxu0 0
    %537 = vmatpush1.bf16.msra.mxu0 0
    %538 = vmatprep.mubr.bf16.mxu0 0
    %539 = vmatmul.mubr.bf16.gmra.mrb[0].mxu0 %v48
    %v540 = vpop.f32.mrb[0].mxu0
    %v541 = vadd.f32 0.0, %v540
    %v542 = vpop.f32.mrb[0].mxu0
    %v543 = vpop.f32.mrb[0].mxu0
    %v544 = vpop.f32.mrb[0].mxu0
    %545 = vdwg.mxu0
    %s546 = scalar_lea.vmem [#allocation2], 144
    %v547 = vld [vmem:[%s546] sm:$0xf]
    %v548 = vld [vmem:[%s546 + $0x4] sm:$0xf]
    %v549 = vld [vmem:[%s546 + $0x8] sm:$0xf]
    %v550 = vld [vmem:[%s546 + $0xc] sm:$0xf]
    %v555 = vunpack.c.l.b16 %v547
    %v556 = vunpack.c.l.b16 %v548
    %v557 = vunpack.c.l.b16 %v549
    %v558 = vunpack.c.l.b16 %v550
    %v559 = vpack.c.b16 %v556, %v555
    %v560 = vpack.c.b16 %v558, %v557
    %563 = vmatprep.subr.bf16.mxu0 0
    %564 = vmatpush1.bf16.msra.mxu0 %v559
    %565 = vmatprep.subr.bf16.mxu0 0
    %566 = vmatpush1.bf16.msra.mxu0 %v560
    %567 = vmatprep.subr.bf16.mxu0 0
    %568 = vmatpush1.bf16.msra.mxu0 0
    %569 = vmatprep.subr.bf16.mxu0 0
    %570 = vmatpush1.bf16.msra.mxu0 0
    %571 = vmatprep.subr.bf16.mxu0 0
    %572 = vmatpush1.bf16.msra.mxu0 0
    %573 = vmatprep.subr.bf16.mxu0 0
    %574 = vmatpush1.bf16.msra.mxu0 0
    %575 = vmatprep.subr.bf16.mxu0 0
    %576 = vmatpush1.bf16.msra.mxu0 0
    %577 = vmatprep.subr.bf16.mxu0 0
    %578 = vmatpush1.bf16.msra.mxu0 0
    %579 = vmatprep.subr.bf16.mxu0 0
    %580 = vmatpush1.bf16.msra.mxu0 0
    %581 = vmatprep.subr.bf16.mxu0 0
    %582 = vmatpush1.bf16.msra.mxu0 0
    %583 = vmatprep.subr.bf16.mxu0 0
    %584 = vmatpush1.bf16.msra.mxu0 0
    %585 = vmatprep.subr.bf16.mxu0 0
    %586 = vmatpush1.bf16.msra.mxu0 0
    %587 = vmatprep.subr.bf16.mxu0 0
    %588 = vmatpush1.bf16.msra.mxu0 0
    %589 = vmatprep.subr.bf16.mxu0 0
    %590 = vmatpush1.bf16.msra.mxu0 0
    %591 = vmatprep.subr.bf16.mxu0 0
    %592 = vmatpush1.bf16.msra.mxu0 0
    %593 = vmatprep.subr.bf16.mxu0 0
    %594 = vmatpush1.bf16.msra.mxu0 0
    %595 = vmatprep.mubr.bf16.mxu0 0
    %596 = vmatmul.mubr.bf16.gmra.mrb[0].mxu0 %v48
    %v597 = vpop.f32.mrb[0].mxu0
    %v598 = vadd.f32 0.0, %v597
    %v599 = vpop.f32.mrb[0].mxu0
    %v600 = vpop.f32.mrb[0].mxu0
    %v601 = vpop.f32.mrb[0].mxu0
    %602 = vdwg.mxu0
    %s603 = scalar_lea.vmem [#allocation2], 160
    %v604 = vld [vmem:[%s603] sm:$0xf]
    %v605 = vld [vmem:[%s603 + $0x4] sm:$0xf]
    %v606 = vld [vmem:[%s603 + $0x8] sm:$0xf]
    %v607 = vld [vmem:[%s603 + $0xc] sm:$0xf]
    %v612 = vunpack.c.l.b16 %v604
    %v613 = vunpack.c.l.b16 %v605
    %v614 = vunpack.c.l.b16 %v606
    %v615 = vunpack.c.l.b16 %v607
    %v616 = vpack.c.b16 %v613, %v612
    %v617 = vpack.c.b16 %v615, %v614
    %620 = vmatprep.subr.bf16.mxu0 0
    %621 = vmatpush1.bf16.msra.mxu0 %v616
    %622 = vmatprep.subr.bf16.mxu0 0
    %623 = vmatpush1.bf16.msra.mxu0 %v617
    %624 = vmatprep.subr.bf16.mxu0 0
    %625 = vmatpush1.bf16.msra.mxu0 0
    %626 = vmatprep.subr.bf16.mxu0 0
    %627 = vmatpush1.bf16.msra.mxu0 0
    %628 = vmatprep.subr.bf16.mxu0 0
    %629 = vmatpush1.bf16.msra.mxu0 0
    %630 = vmatprep.subr.bf16.mxu0 0
    %631 = vmatpush1.bf16.msra.mxu0 0
    %632 = vmatprep.subr.bf16.mxu0 0
    %633 = vmatpush1.bf16.msra.mxu0 0
    %634 = vmatprep.subr.bf16.mxu0 0
    %635 = vmatpush1.bf16.msra.mxu0 0
    %636 = vmatprep.subr.bf16.mxu0 0
    %637 = vmatpush1.bf16.msra.mxu0 0
    %638 = vmatprep.subr.bf16.mxu0 0
    %639 = vmatpush1.bf16.msra.mxu0 0
    %640 = vmatprep.subr.bf16.mxu0 0
    %641 = vmatpush1.bf16.msra.mxu0 0
    %642 = vmatprep.subr.bf16.mxu0 0
    %643 = vmatpush1.bf16.msra.mxu0 0
    %644 = vmatprep.subr.bf16.mxu0 0
    %645 = vmatpush1.bf16.msra.mxu0 0
    %646 = vmatprep.subr.bf16.mxu0 0
    %647 = vmatpush1.bf16.msra.mxu0 0
    %648 = vmatprep.subr.bf16.mxu0 0
    %649 = vmatpush1.bf16.msra.mxu0 0
    %650 = vmatprep.subr.bf16.mxu0 0
    %651 = vmatpush1.bf16.msra.mxu0 0
    %652 = vmatprep.mubr.bf16.mxu0 0
    %653 = vmatmul.mubr.bf16.gmra.mrb[0].mxu0 %v48
    %v654 = vpop.f32.mrb[0].mxu0
    %v655 = vadd.f32 0.0, %v654
    %v656 = vpop.f32.mrb[0].mxu0
    %v657 = vpop.f32.mrb[0].mxu0
    %v658 = vpop.f32.mrb[0].mxu0
    %659 = vdwg.mxu0
    %s660 = scalar_lea.vmem [#allocation2], 176
    %v661 = vld [vmem:[%s660] sm:$0xf]
    %v662 = vld [vmem:[%s660 + $0x4] sm:$0xf]
    %v663 = vld [vmem:[%s660 + $0x8] sm:$0xf]
    %v664 = vld [vmem:[%s660 + $0xc] sm:$0xf]
    %v669 = vunpack.c.l.b16 %v661
    %v670 = vunpack.c.l.b16 %v662
    %v671 = vunpack.c.l.b16 %v663
    %v672 = vunpack.c.l.b16 %v664
    %v673 = vpack.c.b16 %v670, %v669
    %v674 = vpack.c.b16 %v672, %v671
    %677 = vmatprep.subr.bf16.mxu0 0
    %678 = vmatpush1.bf16.msra.mxu0 %v673
    %679 = vmatprep.subr.bf16.mxu0 0
    %680 = vmatpush1.bf16.msra.mxu0 %v674
    %681 = vmatprep.subr.bf16.mxu0 0
    %682 = vmatpush1.bf16.msra.mxu0 0
    %683 = vmatprep.subr.bf16.mxu0 0
    %684 = vmatpush1.bf16.msra.mxu0 0
    %685 = vmatprep.subr.bf16.mxu0 0
    %686 = vmatpush1.bf16.msra.mxu0 0
    %687 = vmatprep.subr.bf16.mxu0 0
    %688 = vmatpush1.bf16.msra.mxu0 0
    %689 = vmatprep.subr.bf16.mxu0 0
    %690 = vmatpush1.bf16.msra.mxu0 0
    %691 = vmatprep.subr.bf16.mxu0 0
    %692 = vmatpush1.bf16.msra.mxu0 0
    %693 = vmatprep.subr.bf16.mxu0 0
    %694 = vmatpush1.bf16.msra.mxu0 0
    %695 = vmatprep.subr.bf16.mxu0 0
    %696 = vmatpush1.bf16.msra.mxu0 0
    %697 = vmatprep.subr.bf16.mxu0 0
    %698 = vmatpush1.bf16.msra.mxu0 0
    %699 = vmatprep.subr.bf16.mxu0 0
    %700 = vmatpush1.bf16.msra.mxu0 0
    %701 = vmatprep.subr.bf16.mxu0 0
    %702 = vmatpush1.bf16.msra.mxu0 0
    %703 = vmatprep.subr.bf16.mxu0 0
    %704 = vmatpush1.bf16.msra.mxu0 0
    %705 = vmatprep.subr.bf16.mxu0 0
    %706 = vmatpush1.bf16.msra.mxu0 0
    %707 = vmatprep.subr.bf16.mxu0 0
    %708 = vmatpush1.bf16.msra.mxu0 0
    %709 = vmatprep.mubr.bf16.mxu0 0
    %710 = vmatmul.mubr.bf16.gmra.mrb[0].mxu0 %v48
    %v711 = vpop.f32.mrb[0].mxu0
    %v712 = vadd.f32 0.0, %v711
    %v713 = vpop.f32.mrb[0].mxu0
    %v714 = vpop.f32.mrb[0].mxu0
    %v715 = vpop.f32.mrb[0].mxu0
    %716 = vdwg.mxu0
    %s717 = scalar_lea.vmem [#allocation2], 192
    %v718 = vld [vmem:[%s717] sm:$0xf]
    %v719 = vld [vmem:[%s717 + $0x4] sm:$0xf]
    %v720 = vld [vmem:[%s717 + $0x8] sm:$0xf]
    %v721 = vld [vmem:[%s717 + $0xc] sm:$0xf]
    %v726 = vunpack.c.l.b16 %v718
    %v727 = vunpack.c.l.b16 %v719
    %v728 = vunpack.c.l.b16 %v720
    %v729 = vunpack.c.l.b16 %v721
    %v730 = vpack.c.b16 %v727, %v726
    %v731 = vpack.c.b16 %v729, %v728
    %734 = vmatprep.subr.bf16.mxu0 0
    %735 = vmatpush1.bf16.msra.mxu0 %v730
    %736 = vmatprep.subr.bf16.mxu0 0
    %737 = vmatpush1.bf16.msra.mxu0 %v731
    %738 = vmatprep.subr.bf16.mxu0 0
    %739 = vmatpush1.bf16.msra.mxu0 0
    %740 = vmatprep.subr.bf16.mxu0 0
    %741 = vmatpush1.bf16.msra.mxu0 0
    %742 = vmatprep.subr.bf16.mxu0 0
    %743 = vmatpush1.bf16.msra.mxu0 0
    %744 = vmatprep.subr.bf16.mxu0 0
    %745 = vmatpush1.bf16.msra.mxu0 0
    %746 = vmatprep.subr.bf16.mxu0 0
    %747 = vmatpush1.bf16.msra.mxu0 0
    %748 = vmatprep.subr.bf16.mxu0 0
    %749 = vmatpush1.bf16.msra.mxu0 0
    %750 = vmatprep.subr.bf16.mxu0 0
    %751 = vmatpush1.bf16.msra.mxu0 0
    %752 = vmatprep.subr.bf16.mxu0 0
    %753 = vmatpush1.bf16.msra.mxu0 0
    %754 = vmatprep.subr.bf16.mxu0 0
    %755 = vmatpush1.bf16.msra.mxu0 0
    %756 = vmatprep.subr.bf16.mxu0 0
    %757 = vmatpush1.bf16.msra.mxu0 0
    %758 = vmatprep.subr.bf16.mxu0 0
    %759 = vmatpush1.bf16.msra.mxu0 0
    %760 = vmatprep.subr.bf16.mxu0 0
    %761 = vmatpush1.bf16.msra.mxu0 0
    %762 = vmatprep.subr.bf16.mxu0 0
    %763 = vmatpush1.bf16.msra.mxu0 0
    %764 = vmatprep.subr.bf16.mxu0 0
    %765 = vmatpush1.bf16.msra.mxu0 0
    %766 = vmatprep.mubr.bf16.mxu0 0
    %767 = vmatmul.mubr.bf16.gmra.mrb[0].mxu0 %v48
    %v768 = vpop.f32.mrb[0].mxu0
    %v769 = vadd.f32 0.0, %v768
    %v770 = vpop.f32.mrb[0].mxu0
    %v771 = vpop.f32.mrb[0].mxu0
    %v772 = vpop.f32.mrb[0].mxu0
    %773 = vdwg.mxu0
    %s774 = scalar_lea.vmem [#allocation2], 208
    %v775 = vld [vmem:[%s774] sm:$0xf]
    %v776 = vld [vmem:[%s774 + $0x4] sm:$0xf]
    %v777 = vld [vmem:[%s774 + $0x8] sm:$0xf]
    %v778 = vld [vmem:[%s774 + $0xc] sm:$0xf]
    %v783 = vunpack.c.l.b16 %v775
    %v784 = vunpack.c.l.b16 %v776
    %v785 = vunpack.c.l.b16 %v777
    %v786 = vunpack.c.l.b16 %v778
    %v787 = vpack.c.b16 %v784, %v783
    %v788 = vpack.c.b16 %v786, %v785
    %791 = vmatprep.subr.bf16.mxu0 0
    %792 = vmatpush1.bf16.msra.mxu0 %v787
    %793 = vmatprep.subr.bf16.mxu0 0
    %794 = vmatpush1.bf16.msra.mxu0 %v788
    %795 = vmatprep.subr.bf16.mxu0 0
    %796 = vmatpush1.bf16.msra.mxu0 0
    %797 = vmatprep.subr.bf16.mxu0 0
    %798 = vmatpush1.bf16.msra.mxu0 0
    %799 = vmatprep.subr.bf16.mxu0 0
    %800 = vmatpush1.bf16.msra.mxu0 0
    %801 = vmatprep.subr.bf16.mxu0 0
    %802 = vmatpush1.bf16.msra.mxu0 0
    %803 = vmatprep.subr.bf16.mxu0 0
    %804 = vmatpush1.bf16.msra.mxu0 0
    %805 = vmatprep.subr.bf16.mxu0 0
    %806 = vmatpush1.bf16.msra.mxu0 0
    %807 = vmatprep.subr.bf16.mxu0 0
    %808 = vmatpush1.bf16.msra.mxu0 0
    %809 = vmatprep.subr.bf16.mxu0 0
    %810 = vmatpush1.bf16.msra.mxu0 0
    %811 = vmatprep.subr.bf16.mxu0 0
    %812 = vmatpush1.bf16.msra.mxu0 0
    %813 = vmatprep.subr.bf16.mxu0 0
    %814 = vmatpush1.bf16.msra.mxu0 0
    %815 = vmatprep.subr.bf16.mxu0 0
    %816 = vmatpush1.bf16.msra.mxu0 0
    %817 = vmatprep.subr.bf16.mxu0 0
    %818 = vmatpush1.bf16.msra.mxu0 0
    %819 = vmatprep.subr.bf16.mxu0 0
    %820 = vmatpush1.bf16.msra.mxu0 0
    %821 = vmatprep.subr.bf16.mxu0 0
    %822 = vmatpush1.bf16.msra.mxu0 0
    %823 = vmatprep.mubr.bf16.mxu0 0
    %824 = vmatmul.mubr.bf16.gmra.mrb[0].mxu0 %v48
    %v825 = vpop.f32.mrb[0].mxu0
    %v826 = vadd.f32 0.0, %v825
    %v827 = vpop.f32.mrb[0].mxu0
    %v828 = vpop.f32.mrb[0].mxu0
    %v829 = vpop.f32.mrb[0].mxu0
    %830 = vdwg.mxu0
    %s831 = scalar_lea.vmem [#allocation2], 224
    %v832 = vld [vmem:[%s831] sm:$0xf]
    %v833 = vld [vmem:[%s831 + $0x4] sm:$0xf]
    %v834 = vld [vmem:[%s831 + $0x8] sm:$0xf]
    %v835 = vld [vmem:[%s831 + $0xc] sm:$0xf]
    %v840 = vunpack.c.l.b16 %v832
    %v841 = vunpack.c.l.b16 %v833
    %v842 = vunpack.c.l.b16 %v834
    %v843 = vunpack.c.l.b16 %v835
    %v844 = vpack.c.b16 %v841, %v840
    %v845 = vpack.c.b16 %v843, %v842
    %848 = vmatprep.subr.bf16.mxu0 0
    %849 = vmatpush1.bf16.msra.mxu0 %v844
    %850 = vmatprep.subr.bf16.mxu0 0
    %851 = vmatpush1.bf16.msra.mxu0 %v845
    %852 = vmatprep.subr.bf16.mxu0 0
    %853 = vmatpush1.bf16.msra.mxu0 0
    %854 = vmatprep.subr.bf16.mxu0 0
    %855 = vmatpush1.bf16.msra.mxu0 0
    %856 = vmatprep.subr.bf16.mxu0 0
    %857 = vmatpush1.bf16.msra.mxu0 0
    %858 = vmatprep.subr.bf16.mxu0 0
    %859 = vmatpush1.bf16.msra.mxu0 0
    %860 = vmatprep.subr.bf16.mxu0 0
    %861 = vmatpush1.bf16.msra.mxu0 0
    %862 = vmatprep.subr.bf16.mxu0 0
    %863 = vmatpush1.bf16.msra.mxu0 0
    %864 = vmatprep.subr.bf16.mxu0 0
    %865 = vmatpush1.bf16.msra.mxu0 0
    %866 = vmatprep.subr.bf16.mxu0 0
    %867 = vmatpush1.bf16.msra.mxu0 0
    %868 = vmatprep.subr.bf16.mxu0 0
    %869 = vmatpush1.bf16.msra.mxu0 0
    %870 = vmatprep.subr.bf16.mxu0 0
    %871 = vmatpush1.bf16.msra.mxu0 0
    %872 = vmatprep.subr.bf16.mxu0 0
    %873 = vmatpush1.bf16.msra.mxu0 0
    %874 = vmatprep.subr.bf16.mxu0 0
    %875 = vmatpush1.bf16.msra.mxu0 0
    %876 = vmatprep.subr.bf16.mxu0 0
    %877 = vmatpush1.bf16.msra.mxu0 0
    %878 = vmatprep.subr.bf16.mxu0 0
    %879 = vmatpush1.bf16.msra.mxu0 0
    %880 = vmatprep.mubr.bf16.mxu0 0
    %881 = vmatmul.mubr.bf16.gmra.mrb[0].mxu0 %v48
    %v882 = vpop.f32.mrb[0].mxu0
    %v883 = vadd.f32 0.0, %v882
    %v884 = vpop.f32.mrb[0].mxu0
    %v885 = vpop.f32.mrb[0].mxu0
    %v886 = vpop.f32.mrb[0].mxu0
    %887 = vdwg.mxu0
    %s888 = scalar_lea.vmem [#allocation2], 240
    %v889 = vld [vmem:[%s888] sm:$0xf]
    %v890 = vld [vmem:[%s888 + $0x4] sm:$0xf]
    %v891 = vld [vmem:[%s888 + $0x8] sm:$0xf]
    %v892 = vld [vmem:[%s888 + $0xc] sm:$0xf]
    %v897 = vunpack.c.l.b16 %v889
    %v898 = vunpack.c.l.b16 %v890
    %v899 = vunpack.c.l.b16 %v891
    %v900 = vunpack.c.l.b16 %v892
    %v901 = vpack.c.b16 %v898, %v897
    %v902 = vpack.c.b16 %v900, %v899
    %905 = vmatprep.subr.bf16.mxu0 0
    %906 = vmatpush1.bf16.msra.mxu0 %v901
    %907 = vmatprep.subr.bf16.mxu0 0
    %908 = vmatpush1.bf16.msra.mxu0 %v902
    %909 = vmatprep.subr.bf16.mxu0 0
    %910 = vmatpush1.bf16.msra.mxu0 0
    %911 = vmatprep.subr.bf16.mxu0 0
    %912 = vmatpush1.bf16.msra.mxu0 0
    %913 = vmatprep.subr.bf16.mxu0 0
    %914 = vmatpush1.bf16.msra.mxu0 0
    %915 = vmatprep.subr.bf16.mxu0 0
    %916 = vmatpush1.bf16.msra.mxu0 0
    %917 = vmatprep.subr.bf16.mxu0 0
    %918 = vmatpush1.bf16.msra.mxu0 0
    %919 = vmatprep.subr.bf16.mxu0 0
    %920 = vmatpush1.bf16.msra.mxu0 0
    %921 = vmatprep.subr.bf16.mxu0 0
    %922 = vmatpush1.bf16.msra.mxu0 0
    %923 = vmatprep.subr.bf16.mxu0 0
    %924 = vmatpush1.bf16.msra.mxu0 0
    %925 = vmatprep.subr.bf16.mxu0 0
    %926 = vmatpush1.bf16.msra.mxu0 0
    %927 = vmatprep.subr.bf16.mxu0 0
    %928 = vmatpush1.bf16.msra.mxu0 0
    %929 = vmatprep.subr.bf16.mxu0 0
    %930 = vmatpush1.bf16.msra.mxu0 0
    %931 = vmatprep.subr.bf16.mxu0 0
    %932 = vmatpush1.bf16.msra.mxu0 0
    %933 = vmatprep.subr.bf16.mxu0 0
    %934 = vmatpush1.bf16.msra.mxu0 0
    %935 = vmatprep.subr.bf16.mxu0 0
    %936 = vmatpush1.bf16.msra.mxu0 0
    %937 = vmatprep.mubr.bf16.mxu0 0
    %938 = vmatmul.mubr.bf16.gmra.mrb[0].mxu0 %v48
    %v939 = vpop.f32.mrb[0].mxu0
    %v940 = vadd.f32 0.0, %v939
    %v941 = vpop.f32.mrb[0].mxu0
    %v942 = vpop.f32.mrb[0].mxu0
    %v943 = vpop.f32.mrb[0].mxu0
    %944 = vdwg.mxu0
    %vm945 = vcmask 130048
    %v946 = vsel %vm945, %v85, 0.0
    %v947 = vrot.slane %v946, 4
    %v948 = vadd.f32 %v946, %v947
    %v949 = vrot.slane %v948, 2
    %v950 = vadd.f32 %v948, %v949
    %v951 = vrot.slane %v950, 1
    %v952 = vadd.f32 %v950, %v951
    %v953 = vmul.f32 %v85, %v85
    %v954 = vsel %vm945, %v953, 0.0
    %v955 = vrot.slane %v954, 4
    %v956 = vadd.f32 %v954, %v955
    %v957 = vrot.slane %v956, 2
    %v958 = vadd.f32 %v956, %v957
    %v959 = vrot.slane %v958, 1
    %v960 = vadd.f32 %v958, %v959
    %v961 = vsel %vm945, %v142, 0.0
    %v962 = vrot.slane %v961, 4
    %v963 = vadd.f32 %v961, %v962
    %v964 = vrot.slane %v963, 2
    %v965 = vadd.f32 %v963, %v964
    %v966 = vrot.slane %v965, 1
    %v967 = vadd.f32 %v965, %v966
    %v968 = vadd.f32 %v952, %v967
    %v969 = vmul.f32 %v142, %v142
    %v970 = vsel %vm945, %v969, 0.0
    %v971 = vrot.slane %v970, 4
    %v972 = vadd.f32 %v970, %v971
    %v973 = vrot.slane %v972, 2
    %v974 = vadd.f32 %v972, %v973
    %v975 = vrot.slane %v974, 1
    %v976 = vadd.f32 %v974, %v975
    %v977 = vadd.f32 %v960, %v976
    %v978 = vsel %vm945, %v199, 0.0
    %v979 = vrot.slane %v978, 4
    %v980 = vadd.f32 %v978, %v979
    %v981 = vrot.slane %v980, 2
    %v982 = vadd.f32 %v980, %v981
    %v983 = vrot.slane %v982, 1
    %v984 = vadd.f32 %v982, %v983
    %v985 = vadd.f32 %v968, %v984
    %v986 = vmul.f32 %v199, %v199
    %v987 = vsel %vm945, %v986, 0.0
    %v988 = vrot.slane %v987, 4
    %v989 = vadd.f32 %v987, %v988
    %v990 = vrot.slane %v989, 2
    %v991 = vadd.f32 %v989, %v990
    %v992 = vrot.slane %v991, 1
    %v993 = vadd.f32 %v991, %v992
    %v994 = vadd.f32 %v977, %v993
    %v995 = vsel %vm945, %v256, 0.0
    %v996 = vrot.slane %v995, 4
    %v997 = vadd.f32 %v995, %v996
    %v998 = vrot.slane %v997, 2
    %v999 = vadd.f32 %v997, %v998
    %v1000 = vrot.slane %v999, 1
    %v1001 = vadd.f32 %v999, %v1000
    %v1002 = vadd.f32 %v985, %v1001
    %v1003 = vmul.f32 %v256, %v256
    %v1004 = vsel %vm945, %v1003, 0.0
    %v1005 = vrot.slane %v1004, 4
    %v1006 = vadd.f32 %v1004, %v1005
    %v1007 = vrot.slane %v1006, 2
    %v1008 = vadd.f32 %v1006, %v1007
    %v1009 = vrot.slane %v1008, 1
    %v1010 = vadd.f32 %v1008, %v1009
    %v1011 = vadd.f32 %v994, %v1010
    %v1012 = vsel %vm945, %v313, 0.0
    %v1013 = vrot.slane %v1012, 4
    %v1014 = vadd.f32 %v1012, %v1013
    %v1015 = vrot.slane %v1014, 2
    %v1016 = vadd.f32 %v1014, %v1015
    %v1017 = vrot.slane %v1016, 1
    %v1018 = vadd.f32 %v1016, %v1017
    %v1019 = vadd.f32 %v1002, %v1018
    %v1020 = vmul.f32 %v313, %v313
    %v1021 = vsel %vm945, %v1020, 0.0
    %v1022 = vrot.slane %v1021, 4
    %v1023 = vadd.f32 %v1021, %v1022
    %v1024 = vrot.slane %v1023, 2
    %v1025 = vadd.f32 %v1023, %v1024
    %v1026 = vrot.slane %v1025, 1
    %v1027 = vadd.f32 %v1025, %v1026
    %v1028 = vadd.f32 %v1011, %v1027
    %v1029 = vsel %vm945, %v370, 0.0
    %v1030 = vrot.slane %v1029, 4
    %v1031 = vadd.f32 %v1029, %v1030
    %v1032 = vrot.slane %v1031, 2
    %v1033 = vadd.f32 %v1031, %v1032
    %v1034 = vrot.slane %v1033, 1
    %v1035 = vadd.f32 %v1033, %v1034
    %v1036 = vadd.f32 %v1019, %v1035
    %v1037 = vmul.f32 %v370, %v370
    %v1038 = vsel %vm945, %v1037, 0.0
    %v1039 = vrot.slane %v1038, 4
    %v1040 = vadd.f32 %v1038, %v1039
    %v1041 = vrot.slane %v1040, 2
    %v1042 = vadd.f32 %v1040, %v1041
    %v1043 = vrot.slane %v1042, 1
    %v1044 = vadd.f32 %v1042, %v1043
    %v1045 = vadd.f32 %v1028, %v1044
    %v1046 = vsel %vm945, %v427, 0.0
    %v1047 = vrot.slane %v1046, 4
    %v1048 = vadd.f32 %v1046, %v1047
    %v1049 = vrot.slane %v1048, 2
    %v1050 = vadd.f32 %v1048, %v1049
    %v1051 = vrot.slane %v1050, 1
    %v1052 = vadd.f32 %v1050, %v1051
    %v1053 = vadd.f32 %v1036, %v1052
    %v1054 = vmul.f32 %v427, %v427
    %v1055 = vsel %vm945, %v1054, 0.0
    %v1056 = vrot.slane %v1055, 4
    %v1057 = vadd.f32 %v1055, %v1056
    %v1058 = vrot.slane %v1057, 2
    %v1059 = vadd.f32 %v1057, %v1058
    %v1060 = vrot.slane %v1059, 1
    %v1061 = vadd.f32 %v1059, %v1060
    %v1062 = vadd.f32 %v1045, %v1061
    %v1063 = vsel %vm945, %v484, 0.0
    %v1064 = vrot.slane %v1063, 4
    %v1065 = vadd.f32 %v1063, %v1064
    %v1066 = vrot.slane %v1065, 2
    %v1067 = vadd.f32 %v1065, %v1066
    %v1068 = vrot.slane %v1067, 1
    %v1069 = vadd.f32 %v1067, %v1068
    %v1070 = vadd.f32 %v1053, %v1069
    %v1071 = vmul.f32 %v484, %v484
    %v1072 = vsel %vm945, %v1071, 0.0
    %v1073 = vrot.slane %v1072, 4
    %v1074 = vadd.f32 %v1072, %v1073
    %v1075 = vrot.slane %v1074, 2
    %v1076 = vadd.f32 %v1074, %v1075
    %v1077 = vrot.slane %v1076, 1
    %v1078 = vadd.f32 %v1076, %v1077
    %v1079 = vadd.f32 %v1062, %v1078
    %v1080 = vsel %vm945, %v541, 0.0
    %v1081 = vrot.slane %v1080, 4
    %v1082 = vadd.f32 %v1080, %v1081
    %v1083 = vrot.slane %v1082, 2
    %v1084 = vadd.f32 %v1082, %v1083
    %v1085 = vrot.slane %v1084, 1
    %v1086 = vadd.f32 %v1084, %v1085
    %v1087 = vadd.f32 %v1070, %v1086
    %v1088 = vmul.f32 %v541, %v541
    %v1089 = vsel %vm945, %v1088, 0.0
    %v1090 = vrot.slane %v1089, 4
    %v1091 = vadd.f32 %v1089, %v1090
    %v1092 = vrot.slane %v1091, 2
    %v1093 = vadd.f32 %v1091, %v1092
    %v1094 = vrot.slane %v1093, 1
    %v1095 = vadd.f32 %v1093, %v1094
    %v1096 = vadd.f32 %v1079, %v1095
    %v1097 = vsel %vm945, %v598, 0.0
    %v1098 = vrot.slane %v1097, 4
    %v1099 = vadd.f32 %v1097, %v1098
    %v1100 = vrot.slane %v1099, 2
    %v1101 = vadd.f32 %v1099, %v1100
    %v1102 = vrot.slane %v1101, 1
    %v1103 = vadd.f32 %v1101, %v1102
    %v1104 = vadd.f32 %v1087, %v1103
    %v1105 = vmul.f32 %v598, %v598
    %v1106 = vsel %vm945, %v1105, 0.0
    %v1107 = vrot.slane %v1106, 4
    %v1108 = vadd.f32 %v1106, %v1107
    %v1109 = vrot.slane %v1108, 2
    %v1110 = vadd.f32 %v1108, %v1109
    %v1111 = vrot.slane %v1110, 1
    %v1112 = vadd.f32 %v1110, %v1111
    %v1113 = vadd.f32 %v1096, %v1112
    %v1114 = vsel %vm945, %v655, 0.0
    %v1115 = vrot.slane %v1114, 4
    %v1116 = vadd.f32 %v1114, %v1115
    %v1117 = vrot.slane %v1116, 2
    %v1118 = vadd.f32 %v1116, %v1117
    %v1119 = vrot.slane %v1118, 1
    %v1120 = vadd.f32 %v1118, %v1119
    %v1121 = vadd.f32 %v1104, %v1120
    %v1122 = vmul.f32 %v655, %v655
    %v1123 = vsel %vm945, %v1122, 0.0
    %v1124 = vrot.slane %v1123, 4
    %v1125 = vadd.f32 %v1123, %v1124
    %v1126 = vrot.slane %v1125, 2
    %v1127 = vadd.f32 %v1125, %v1126
    %v1128 = vrot.slane %v1127, 1
    %v1129 = vadd.f32 %v1127, %v1128
    %v1130 = vadd.f32 %v1113, %v1129
    %v1131 = vsel %vm945, %v712, 0.0
    %v1132 = vrot.slane %v1131, 4
    %v1133 = vadd.f32 %v1131, %v1132
    %v1134 = vrot.slane %v1133, 2
    %v1135 = vadd.f32 %v1133, %v1134
    %v1136 = vrot.slane %v1135, 1
    %v1137 = vadd.f32 %v1135, %v1136
    %v1138 = vadd.f32 %v1121, %v1137
    %v1139 = vmul.f32 %v712, %v712
    %v1140 = vsel %vm945, %v1139, 0.0
    %v1141 = vrot.slane %v1140, 4
    %v1142 = vadd.f32 %v1140, %v1141
    %v1143 = vrot.slane %v1142, 2
    %v1144 = vadd.f32 %v1142, %v1143
    %v1145 = vrot.slane %v1144, 1
    %v1146 = vadd.f32 %v1144, %v1145
    %v1147 = vadd.f32 %v1130, %v1146
    %v1148 = vsel %vm945, %v769, 0.0
    %v1149 = vrot.slane %v1148, 4
    %v1150 = vadd.f32 %v1148, %v1149
    %v1151 = vrot.slane %v1150, 2
    %v1152 = vadd.f32 %v1150, %v1151
    %v1153 = vrot.slane %v1152, 1
    %v1154 = vadd.f32 %v1152, %v1153
    %v1155 = vadd.f32 %v1138, %v1154
    %v1156 = vmul.f32 %v769, %v769
    %v1157 = vsel %vm945, %v1156, 0.0
    %v1158 = vrot.slane %v1157, 4
    %v1159 = vadd.f32 %v1157, %v1158
    %v1160 = vrot.slane %v1159, 2
    %v1161 = vadd.f32 %v1159, %v1160
    %v1162 = vrot.slane %v1161, 1
    %v1163 = vadd.f32 %v1161, %v1162
    %v1164 = vadd.f32 %v1147, %v1163
    %v1165 = vsel %vm945, %v826, 0.0
    %v1166 = vrot.slane %v1165, 4
    %v1167 = vadd.f32 %v1165, %v1166
    %v1168 = vrot.slane %v1167, 2
    %v1169 = vadd.f32 %v1167, %v1168
    %v1170 = vrot.slane %v1169, 1
    %v1171 = vadd.f32 %v1169, %v1170
    %v1172 = vadd.f32 %v1155, %v1171
    %v1173 = vmul.f32 %v826, %v826
    %v1174 = vsel %vm945, %v1173, 0.0
    %v1175 = vrot.slane %v1174, 4
    %v1176 = vadd.f32 %v1174, %v1175
    %v1177 = vrot.slane %v1176, 2
    %v1178 = vadd.f32 %v1176, %v1177
    %v1179 = vrot.slane %v1178, 1
    %v1180 = vadd.f32 %v1178, %v1179
    %v1181 = vadd.f32 %v1164, %v1180
    %v1182 = vsel %vm945, %v883, 0.0
    %v1183 = vrot.slane %v1182, 4
    %v1184 = vadd.f32 %v1182, %v1183
    %v1185 = vrot.slane %v1184, 2
    %v1186 = vadd.f32 %v1184, %v1185
    %v1187 = vrot.slane %v1186, 1
    %v1188 = vadd.f32 %v1186, %v1187
    %v1189 = vadd.f32 %v1172, %v1188
    %v1190 = vmul.f32 %v883, %v883
    %v1191 = vsel %vm945, %v1190, 0.0
    %v1192 = vrot.slane %v1191, 4
    %v1193 = vadd.f32 %v1191, %v1192
    %v1194 = vrot.slane %v1193, 2
    %v1195 = vadd.f32 %v1193, %v1194
    %v1196 = vrot.slane %v1195, 1
    %v1197 = vadd.f32 %v1195, %v1196
    %v1198 = vadd.f32 %v1181, %v1197
    %v1199 = vsel %vm945, %v940, 0.0
    %v1200 = vrot.slane %v1199, 4
    %v1201 = vadd.f32 %v1199, %v1200
    %v1202 = vrot.slane %v1201, 2
    %v1203 = vadd.f32 %v1201, %v1202
    %v1204 = vrot.slane %v1203, 1
    %v1205 = vadd.f32 %v1203, %v1204
    %v1206 = vadd.f32 %v1189, %v1205
    %v1207 = vmul.f32 %v940, %v940
    %v1208 = vsel %vm945, %v1207, 0.0
    %v1209 = vrot.slane %v1208, 4
    %v1210 = vadd.f32 %v1208, %v1209
    %v1211 = vrot.slane %v1210, 2
    %v1212 = vadd.f32 %v1210, %v1211
    %v1213 = vrot.slane %v1212, 1
    %v1214 = vadd.f32 %v1212, %v1213
    %v1215 = vadd.f32 %v1198, %v1214
    %v1216 = vmul.f32 %v1206, 0.03125
    %v1217 = vmul.f32 %v1215, 0.03125
    %v1218 = vmul.f32 %v1216, %v1216
    %v1219 = vsub.f32 %v1217, %v1218
    %v1220 = vmax.f32 %v1219, 0.0
    %v1221 = vld [vmem:[%s2] sm:$0x3]
    %v1222 = vadd.f32 %v1220, 1e-05
    %v1223 = vrsqrt.pop %v1222
    %v1224 = vmul.f32 %v1221, %v1223
    %v1225 = vmul.f32 %v1216, %v1224
    %v1227 = vrot.slane %v1225, 7
    %v1229 = vsub.f32 %v1221, %v1227
    %v1230 = vlaneseq
    %v1231 = vshrl.u32 %v1230, 7
    %v1232 = vsub.s32 0, %v1231
    %v1233 = vrot.slane %v1224, %v1232
    %v1234 = vmul.f32 %v85, %v1233
    %v1235 = vlaneseq
    %v1236 = vshrl.u32 %v1235, 7
    %v1237 = vsub.s32 1, %v1236
    %v1238 = vrot.slane %v1229, %v1237
    %v1239 = vadd.f32 %v1234, %v1238
    %v1240 = vmul.f32 %v142, %v1233
    %v1241 = vadd.f32 %v1240, %v1238
    %v1242 = vmul.f32 %v199, %v1233
    %v1243 = vadd.f32 %v1242, %v1238
    %v1244 = vmul.f32 %v256, %v1233
    %v1245 = vadd.f32 %v1244, %v1238
    %v1246 = vmul.f32 %v313, %v1233
    %v1247 = vadd.f32 %v1246, %v1238
    %v1248 = vmul.f32 %v370, %v1233
    %v1249 = vadd.f32 %v1248, %v1238
    %v1250 = vmul.f32 %v427, %v1233
    %v1251 = vadd.f32 %v1250, %v1238
    %v1252 = vmul.f32 %v484, %v1233
    %v1253 = vadd.f32 %v1252, %v1238
    %v1254 = vmul.f32 %v541, %v1233
    %v1255 = vadd.f32 %v1254, %v1238
    %v1256 = vmul.f32 %v598, %v1233
    %v1257 = vadd.f32 %v1256, %v1238
    %v1258 = vmul.f32 %v655, %v1233
    %v1259 = vadd.f32 %v1258, %v1238
    %v1260 = vmul.f32 %v712, %v1233
    %v1261 = vadd.f32 %v1260, %v1238
    %v1262 = vmul.f32 %v769, %v1233
    %v1263 = vadd.f32 %v1262, %v1238
    %v1264 = vmul.f32 %v826, %v1233
    %v1265 = vadd.f32 %v1264, %v1238
    %v1266 = vmul.f32 %v883, %v1233
    %v1267 = vadd.f32 %v1266, %v1238
    %v1268 = vmul.f32 %v940, %v1233
    %v1269 = vadd.f32 %v1268, %v1238
    %v1270 = vpack.c.bf16 %v1239, %v1239
    %vm1271 = vcmask 125952
    %1272 = vst.msk [vmem:[%s3] sm:$0xf] %vm1271, %v1270
    %v1273 = vpack.c.bf16 %v1241, %v1241
    %v1275 = vunpack.c.l.b16 %v1273
    %v1276 = vpack.c.b16 %v1275, %v1275
    %1277 = vrot.lane.b32.xlu0 %v1276, 16
    %v1278 = vpop.permute.xlu0 %1277
    %vm1280 = vcmask 257152
    %1281 = vst.msk [vmem:[%s3] sm:$0xf] %vm1280, %v1278
    %v1282 = vpack.c.bf16 %v1243, %v1243
    %v1284 = vunpack.c.l.b16 %v1282
    %v1285 = vpack.c.b16 %v1284, %v1284
    %1286 = vrot.lane.b32.xlu0 %v1285, 32
    %v1287 = vpop.permute.xlu0 %1286
    %vm1289 = vcmask 388352
    %1290 = vst.msk [vmem:[%s3] sm:$0xf] %vm1289, %v1287
    %v1291 = vpack.c.bf16 %v1245, %v1245
    %v1293 = vunpack.c.l.b16 %v1291
    %v1294 = vpack.c.b16 %v1293, %v1293
    %1295 = vrot.lane.b32.xlu0 %v1294, 48
    %v1296 = vpop.permute.xlu0 %1295
    %vm1298 = vcmask 519552
    %1299 = vst.msk [vmem:[%s3] sm:$0xf] %vm1298, %v1296
    %v1300 = vpack.c.bf16 %v1247, %v1247
    %v1302 = vunpack.c.l.b16 %v1300
    %v1303 = vpack.c.b16 %v1302, %v1302
    %1304 = vrot.lane.b32.xlu0 %v1303, 64
    %v1305 = vpop.permute.xlu0 %1304
    %vm1307 = vcmask 650752
    %1308 = vst.msk [vmem:[%s3] sm:$0xf] %vm1307, %v1305
    %v1309 = vpack.c.bf16 %v1249, %v1249
    %v1311 = vunpack.c.l.b16 %v1309
    %v1312 = vpack.c.b16 %v1311, %v1311
    %1313 = vrot.lane.b32.xlu0 %v1312, 80
    %v1314 = vpop.permute.xlu0 %1313
    %vm1316 = vcmask 781952
    %1317 = vst.msk [vmem:[%s3] sm:$0xf] %vm1316, %v1314
    %v1318 = vpack.c.bf16 %v1251, %v1251
    %v1320 = vunpack.c.l.b16 %v1318
    %v1321 = vpack.c.b16 %v1320, %v1320
    %1322 = vrot.lane.b32.xlu0 %v1321, 96
    %v1323 = vpop.permute.xlu0 %1322
    %vm1325 = vcmask 913152
    %1326 = vst.msk [vmem:[%s3] sm:$0xf] %vm1325, %v1323
    %v1327 = vpack.c.bf16 %v1253, %v1253
    %v1329 = vunpack.c.l.b16 %v1327
    %v1330 = vpack.c.b16 %v1329, %v1329
    %1331 = vrot.lane.b32.xlu0 %v1330, 112
    %v1332 = vpop.permute.xlu0 %1331
    %vm1334 = vcmask 1044352
    %1335 = vst.msk [vmem:[%s3] sm:$0xf] %vm1334, %v1332
    %v1336 = vpack.c.bf16 %v1255, %v1255
    %1337 = vst.msk [vmem:[%s3 + $0x4] sm:$0xf] %vm1271, %v1336
    %v1338 = vpack.c.bf16 %v1257, %v1257
    %v1340 = vunpack.c.l.b16 %v1338
    %v1341 = vpack.c.b16 %v1340, %v1340
    %1342 = vrot.lane.b32.xlu0 %v1341, 16
    %v1343 = vpop.permute.xlu0 %1342
    %1345 = vst.msk [vmem:[%s3 + $0x4] sm:$0xf] %vm1280, %v1343
    %v1346 = vpack.c.bf16 %v1259, %v1259
    %v1348 = vunpack.c.l.b16 %v1346
    %v1349 = vpack.c.b16 %v1348, %v1348
    %1350 = vrot.lane.b32.xlu0 %v1349, 32
    %v1351 = vpop.permute.xlu0 %1350
    %1353 = vst.msk [vmem:[%s3 + $0x4] sm:$0xf] %vm1289, %v1351
    %v1354 = vpack.c.bf16 %v1261, %v1261
    %v1356 = vunpack.c.l.b16 %v1354
    %v1357 = vpack.c.b16 %v1356, %v1356
    %1358 = vrot.lane.b32.xlu0 %v1357, 48
    %v1359 = vpop.permute.xlu0 %1358
    %1361 = vst.msk [vmem:[%s3 + $0x4] sm:$0xf] %vm1298, %v1359
    %v1362 = vpack.c.bf16 %v1263, %v1263
    %v1364 = vunpack.c.l.b16 %v1362
    %v1365 = vpack.c.b16 %v1364, %v1364
    %1366 = vrot.lane.b32.xlu0 %v1365, 64
    %v1367 = vpop.permute.xlu0 %1366
    %1369 = vst.msk [vmem:[%s3 + $0x4] sm:$0xf] %vm1307, %v1367
    %v1370 = vpack.c.bf16 %v1265, %v1265
    %v1372 = vunpack.c.l.b16 %v1370
    %v1373 = vpack.c.b16 %v1372, %v1372
    %1374 = vrot.lane.b32.xlu0 %v1373, 80
    %v1375 = vpop.permute.xlu0 %1374
    %1377 = vst.msk [vmem:[%s3 + $0x4] sm:$0xf] %vm1316, %v1375
    %v1378 = vpack.c.bf16 %v1267, %v1267
    %v1380 = vunpack.c.l.b16 %v1378
    %v1381 = vpack.c.b16 %v1380, %v1380
    %1382 = vrot.lane.b32.xlu0 %v1381, 96
    %v1383 = vpop.permute.xlu0 %1382
    %1385 = vst.msk [vmem:[%s3 + $0x4] sm:$0xf] %vm1325, %v1383
    %v1386 = vpack.c.bf16 %v1269, %v1269
    %v1388 = vunpack.c.l.b16 %v1386
    %v1389 = vpack.c.b16 %v1388, %v1388
    %1390 = vrot.lane.b32.xlu0 %v1389, 112
    %v1391 = vpop.permute.xlu0 %1390
    %1393 = vst.msk [vmem:[%s3 + $0x4] sm:$0xf] %vm1334, %v1391
    // Predicated region
    $region18: #{decoder_forward.4} parent=1 // pred_check
      _
    $region19: #{decoder_forward.4} parent=1 // pred_check_branch
      %1395 = sbr.rel (0) target = $region21
    $region20: #{decoder_forward.4} parent=1 // pred_region
      _
    $region21: #{decoder_forward.4} parent=1 // pred_fallthru
      _
    // Predicated region
    $region22: #{decoder_forward.4} parent=1 // pred_check
      _
    $region23: #{decoder_forward.4} parent=1 // pred_check_branch
      %1397 = sbr.rel (0) target = $region25
    $region24: #{decoder_forward.4} parent=1 // pred_region
      _
    $region25: #{decoder_forward.4} parent=1 // pred_fallthru
      _
    %1398 = vsyncpa [#allocation3], 1

// kernel: decoder_forward.6
$region0: #{decoder_forward.6}
  #allocation0 [shape = 'u32[]', space=smem, size = 0x4, offset = 0x4, fixed_abs, tag = 'smem constant byte address 0x4 - core index']
  #allocation1 [shape = 'u32[144,128]{1,0:T(1,128)}', space=vmem, size = 0x12000, scoped, tag = 'internal scratch']
  %s0 = inlined_call_operand.vmem [shape: bf16[1,128,72], index: 0, kind: input, shape index: {}]
  %s1 = inlined_call_operand.vmem [shape: bf16[1,72,8], index: 1, kind: input, shape index: {}]
  %s2 = inlined_call_operand.vmem [shape: f32[2,8], index: 2, kind: input, shape index: {}]
  %s3 = inlined_call_operand.vmem [shape: bf16[128,8], index: 3, kind: output, shape index: {}]
  %s4 = sld [smem:[#allocation0]]
  $region22: #{decoder_forward.6} parent=0
    _
  %s6 = ssub.s32 1, %s4
  %s7 = scalar_select 0, %s6, %s4
  // Predicated region
  $region2: #{decoder_forward.6} parent=0 // pred_check
    _
  $region3: #{decoder_forward.6} parent=0 // pred_check_branch
    %9 = sbr.rel (0) target = $region5
  $region4: #{decoder_forward.6} parent=0 // pred_region
    _
  $region5: #{decoder_forward.6} parent=0 // pred_fallthru
    _
  // Predicated region
  $region6: #{decoder_forward.6} parent=0 // pred_check
    _
  $region7: #{decoder_forward.6} parent=0 // pred_check_branch
    %11 = sbr.rel (0) target = $region9
  $region8: #{decoder_forward.6} parent=0 // pred_region
    _
  $region9: #{decoder_forward.6} parent=0 // pred_fallthru
    _
  // Predicated region
  $region10: #{decoder_forward.6} parent=0 // pred_check
    _
  $region11: #{decoder_forward.6} parent=0 // pred_check_branch
    %13 = sbr.rel (0) target = $region13
  $region12: #{decoder_forward.6} parent=0 // pred_region
    _
  $region13: #{decoder_forward.6} parent=0 // pred_fallthru
    _
  %v15 = vld [vmem:[%s0] sm:$0xf]
  %v16 = vld [vmem:[%s0 + $0x4] sm:$0xf]
  %v17 = vld [vmem:[%s0 + $0x8] sm:$0xf]
  %v18 = vld [vmem:[%s0 + $0xc] sm:$0xf]
  %v19 = vld [vmem:[%s0 + $0x10] sm:$0xf]
  %v20 = vld [vmem:[%s0 + $0x14] sm:$0xf]
  %v21 = vld [vmem:[%s0 + $0x18] sm:$0xf]
  %v22 = vld [vmem:[%s0 + $0x1c] sm:$0xf]
  %v23 = vld [vmem:[%s0 + $0x20] sm:$0xf]
  %v24 = vld [vmem:[%s0 + $0x24] sm:$0xf]
  %v25 = vld [vmem:[%s0 + $0x28] sm:$0xf]
  %v26 = vld [vmem:[%s0 + $0x2c] sm:$0xf]
  %v27 = vld [vmem:[%s0 + $0x30] sm:$0xf]
  %v28 = vld [vmem:[%s0 + $0x34] sm:$0xf]
  %v29 = vld [vmem:[%s0 + $0x38] sm:$0xf]
  %v30 = vld [vmem:[%s0 + $0x3c] sm:$0xf]
  %v31 = vld [vmem:[%s1] sm:$0xf]
  %v32 = vld [vmem:[%s1 + $0x4] sm:$0xf]
  %v33 = vld [vmem:[%s1 + $0x8] sm:$0xf]
  %v34 = vld [vmem:[%s1 + $0xc] sm:$0xf]
  %v35 = vld [vmem:[%s1 + $0x10] sm:$0xf]
  %v36 = vld [vmem:[%s1 + $0x14] sm:$0xf]
  %v37 = vld [vmem:[%s1 + $0x18] sm:$0xf]
  %v38 = vld [vmem:[%s1 + $0x1c] sm:$0xf]
  %v39 = vld [vmem:[%s1 + $0x20] sm:$0xf]
  %v56 = vunpack.c.l.b16 %v15
  %v57 = vunpack.c.l.b16 %v16
  %v58 = vunpack.c.l.b16 %v17
  %v59 = vunpack.c.l.b16 %v18
  %v60 = vunpack.c.l.b16 %v19
  %v61 = vunpack.c.l.b16 %v20
  %v62 = vunpack.c.l.b16 %v21
  %v63 = vunpack.c.l.b16 %v22
  %v64 = vunpack.c.l.b16 %v23
  %v65 = vunpack.c.l.b16 %v24
  %v66 = vunpack.c.l.b16 %v25
  %v67 = vunpack.c.l.b16 %v26
  %v68 = vunpack.c.l.b16 %v27
  %v69 = vunpack.c.l.b16 %v28
  %v70 = vunpack.c.l.b16 %v29
  %v71 = vunpack.c.l.b16 %v30
  %v72 = vpack.c.b16 %v57, %v56
  %v73 = vpack.c.b16 %v59, %v58
  %v74 = vpack.c.b16 %v61, %v60
  %v75 = vpack.c.b16 %v63, %v62
  %v76 = vpack.c.b16 %v65, %v64
  %v77 = vpack.c.b16 %v67, %v66
  %v78 = vpack.c.b16 %v69, %v68
  %v79 = vpack.c.b16 %v71, %v70
  %v89 = vunpack.c.l.b16 %v31
  %v90 = vunpack.c.l.b16 %v32
  %v91 = vunpack.c.l.b16 %v33
  %v92 = vunpack.c.l.b16 %v34
  %v93 = vunpack.c.l.b16 %v35
  %v94 = vunpack.c.l.b16 %v36
  %v95 = vunpack.c.l.b16 %v37
  %v96 = vunpack.c.l.b16 %v38
  %v97 = vunpack.c.l.b16 %v39
  %v98 = vpack.c.b16 %v90, %v89
  %v99 = vpack.c.b16 %v92, %v91
  %v100 = vpack.c.b16 %v94, %v93
  %v101 = vpack.c.b16 %v96, %v95
  %v102 = vpack.c.b16 %v97, %v97
  %vm107 = vcmask 588800
  %v109 = vsel %vm107, %v72, 0
  %v112 = vsel %vm107, %v73, 0
  %v115 = vsel %vm107, %v74, 0
  %v118 = vsel %vm107, %v75, 0
  %v121 = vsel %vm107, %v76, 0
  %v124 = vsel %vm107, %v77, 0
  %v127 = vsel %vm107, %v78, 0
  %v130 = vsel %vm107, %v79, 0
  %vm132 = vcmask 1043456
  %v134 = vsel %vm132, %v102, 0
  %136 = vmatprep.subr.bf16.mxu0 0
  %137 = vmatpush1.bf16.msra.mxu0 %v98
  %138 = vmatprep.subr.bf16.mxu0 0
  %139 = vmatpush1.bf16.msra.mxu0 %v99
  %140 = vmatprep.subr.bf16.mxu0 0
  %141 = vmatpush1.bf16.msra.mxu0 %v100
  %142 = vmatprep.subr.bf16.mxu0 0
  %143 = vmatpush1.bf16.msra.mxu0 %v101
  %144 = vmatprep.subr.bf16.mxu0 0
  %145 = vmatpush1.bf16.msra.mxu0 %v134
  %146 = vmatprep.subr.bf16.mxu0 0
  %147 = vmatpush1.bf16.msra.mxu0 0
  %148 = vmatprep.subr.bf16.mxu0 0
  %149 = vmatpush1.bf16.msra.mxu0 0
  %150 = vmatprep.subr.bf16.mxu0 0
  %151 = vmatpush1.bf16.msra.mxu0 0
  %152 = vmatprep.subr.bf16.mxu0 0
  %153 = vmatpush1.bf16.msra.mxu0 0
  %154 = vmatprep.subr.bf16.mxu0 0
  %155 = vmatpush1.bf16.msra.mxu0 0
  %156 = vmatprep.subr.bf16.mxu0 0
  %157 = vmatpush1.bf16.msra.mxu0 0
  %158 = vmatprep.subr.bf16.mxu0 0
  %159 = vmatpush1.bf16.msra.mxu0 0
  %160 = vmatprep.subr.bf16.mxu0 0
  %161 = vmatpush1.bf16.msra.mxu0 0
  %162 = vmatprep.subr.bf16.mxu0 0
  %163 = vmatpush1.bf16.msra.mxu0 0
  %164 = vmatprep.subr.bf16.mxu0 0
  %165 = vmatpush1.bf16.msra.mxu0 0
  %166 = vmatprep.subr.bf16.mxu0 0
  %167 = vmatpush1.bf16.msra.mxu0 0
  %168 = vmatprep.mubr.bf16.mxu0 0
  %169 = vmatmul.mubr.bf16.gmra.mrb[0].mxu0 %v109
  %v170 = vpop.f32.mrb[0].mxu0
  %v171 = vadd.f32 0.0, %v170
  %v172 = vpop.f32.mrb[0].mxu0
  %v173 = vpop.f32.mrb[0].mxu0
  %v174 = vadd.f32 0.0, %v173
  %v175 = vpop.f32.mrb[0].mxu0
  %176 = vmatprep.mubr.bf16.mxu0 0
  %177 = vmatmul.mubr.bf16.gmra.mrb[0].mxu0 %v112
  %v178 = vpop.f32.mrb[0].mxu0
  %v179 = vadd.f32 0.0, %v178
  %v180 = vpop.f32.mrb[0].mxu0
  %v181 = vpop.f32.mrb[0].mxu0
  %v182 = vadd.f32 0.0, %v181
  %v183 = vpop.f32.mrb[0].mxu0
  %184 = vmatprep.mubr.bf16.mxu0 0
  %185 = vmatmul.mubr.bf16.gmra.mrb[0].mxu0 %v115
  %v186 = vpop.f32.mrb[0].mxu0
  %v187 = vadd.f32 0.0, %v186
  %v188 = vpop.f32.mrb[0].mxu0
  %v189 = vpop.f32.mrb[0].mxu0
  %v190 = vadd.f32 0.0, %v189
  %v191 = vpop.f32.mrb[0].mxu0
  %192 = vmatprep.mubr.bf16.mxu0 0
  %193 = vmatmul.mubr.bf16.gmra.mrb[0].mxu0 %v118
  %v194 = vpop.f32.mrb[0].mxu0
  %v195 = vadd.f32 0.0, %v194
  %v196 = vpop.f32.mrb[0].mxu0
  %v197 = vpop.f32.mrb[0].mxu0
  %v198 = vadd.f32 0.0, %v197
  %v199 = vpop.f32.mrb[0].mxu0
  %200 = vmatprep.mubr.bf16.mxu0 0
  %201 = vmatmul.mubr.bf16.gmra.mrb[0].mxu0 %v121
  %v202 = vpop.f32.mrb[0].mxu0
  %v203 = vadd.f32 0.0, %v202
  %v204 = vpop.f32.mrb[0].mxu0
  %v205 = vpop.f32.mrb[0].mxu0
  %v206 = vadd.f32 0.0, %v205
  %v207 = vpop.f32.mrb[0].mxu0
  %208 = vmatprep.mubr.bf16.mxu0 0
  %209 = vmatmul.mubr.bf16.gmra.mrb[0].mxu0 %v124
  %v210 = vpop.f32.mrb[0].mxu0
  %v211 = vadd.f32 0.0, %v210
  %v212 = vpop.f32.mrb[0].mxu0
  %v213 = vpop.f32.mrb[0].mxu0
  %v214 = vadd.f32 0.0, %v213
  %v215 = vpop.f32.mrb[0].mxu0
  %216 = vmatprep.mubr.bf16.mxu0 0
  %217 = vmatmul.mubr.bf16.gmra.mrb[0].mxu0 %v127
  %v218 = vpop.f32.mrb[0].mxu0
  %v219 = vadd.f32 0.0, %v218
  %v220 = vpop.f32.mrb[0].mxu0
  %v221 = vpop.f32.mrb[0].mxu0
  %v222 = vadd.f32 0.0, %v221
  %v223 = vpop.f32.mrb[0].mxu0
  %224 = vmatprep.mubr.bf16.mxu0 0
  %225 = vmatmul.mubr.bf16.gmra.mrb[0].mxu0 %v130
  %v226 = vpop.f32.mrb[0].mxu0
  %v227 = vadd.f32 0.0, %v226
  %v228 = vpop.f32.mrb[0].mxu0
  %v229 = vpop.f32.mrb[0].mxu0
  %v230 = vadd.f32 0.0, %v229
  %v231 = vpop.f32.mrb[0].mxu0
  %232 = vdwg.mxu0
  %vm233 = vcmask 64512
  %v234 = vsel %vm233, %v171, 0.0
  %v235 = vsel %vm233, %v174, 0.0
  %v236 = vadd.f32 %v234, %v235
  %v237 = vsel %vm233, %v179, 0.0
  %v238 = vadd.f32 %v236, %v237
  %v239 = vsel %vm233, %v182, 0.0
  %v240 = vadd.f32 %v238, %v239
  %v241 = vsel %vm233, %v187, 0.0
  %v242 = vadd.f32 %v240, %v241
  %v243 = vsel %vm233, %v190, 0.0
  %v244 = vadd.f32 %v242, %v243
  %v245 = vsel %vm233, %v195, 0.0
  %v246 = vadd.f32 %v244, %v245
  %v247 = vsel %vm233, %v198, 0.0
  %v248 = vadd.f32 %v246, %v247
  %v249 = vsel %vm233, %v203, 0.0
  %v250 = vadd.f32 %v248, %v249
  %v251 = vsel %vm233, %v206, 0.0
  %v252 = vadd.f32 %v250, %v251
  %v253 = vsel %vm233, %v211, 0.0
  %v254 = vadd.f32 %v252, %v253
  %v255 = vsel %vm233, %v214, 0.0
  %v256 = vadd.f32 %v254, %v255
  %v257 = vsel %vm233, %v219, 0.0
  %v258 = vadd.f32 %v256, %v257
  %v259 = vsel %vm233, %v222, 0.0
  %v260 = vadd.f32 %v258, %v259
  %v261 = vsel %vm233, %v227, 0.0
  %v262 = vadd.f32 %v260, %v261
  %v263 = vsel %vm233, %v230, 0.0
  %v264 = vadd.f32 %v262, %v263
  %v265 = vrot.slane %v264, 4
  %v266 = vadd.f32 %v264, %v265
  %v267 = vrot.slane %v266, 2
  %v268 = vadd.f32 %v266, %v267
  %v269 = vrot.slane %v268, 1
  %v270 = vadd.f32 %v268, %v269
  %v271 = vmul.f32 %v171, %v171
  %v272 = vmul.f32 %v174, %v174
  %v273 = vmul.f32 %v179, %v179
  %v274 = vmul.f32 %v182, %v182
  %v275 = vmul.f32 %v187, %v187
  %v276 = vmul.f32 %v190, %v190
  %v277 = vmul.f32 %v195, %v195
  %v278 = vmul.f32 %v198, %v198
  %v279 = vmul.f32 %v203, %v203
  %v280 = vmul.f32 %v206, %v206
  %v281 = vmul.f32 %v211, %v211
  %v282 = vmul.f32 %v214, %v214
  %v283 = vmul.f32 %v219, %v219
  %v284 = vmul.f32 %v222, %v222
  %v285 = vmul.f32 %v227, %v227
  %v286 = vmul.f32 %v230, %v230
  %v287 = vsel %vm233, %v271, 0.0
  %v288 = vsel %vm233, %v272, 0.0
  %v289 = vadd.f32 %v287, %v288
  %v290 = vsel %vm233, %v273, 0.0
  %v291 = vadd.f32 %v289, %v290
  %v292 = vsel %vm233, %v274, 0.0
  %v293 = vadd.f32 %v291, %v292
  %v294 = vsel %vm233, %v275, 0.0
  %v295 = vadd.f32 %v293, %v294
  %v296 = vsel %vm233, %v276, 0.0
  %v297 = vadd.f32 %v295, %v296
  %v298 = vsel %vm233, %v277, 0.0
  %v299 = vadd.f32 %v297, %v298
  %v300 = vsel %vm233, %v278, 0.0
  %v301 = vadd.f32 %v299, %v300
  %v302 = vsel %vm233, %v279, 0.0
  %v303 = vadd.f32 %v301, %v302
  %v304 = vsel %vm233, %v280, 0.0
  %v305 = vadd.f32 %v303, %v304
  %v306 = vsel %vm233, %v281, 0.0
  %v307 = vadd.f32 %v305, %v306
  %v308 = vsel %vm233, %v282, 0.0
  %v309 = vadd.f32 %v307, %v308
  %v310 = vsel %vm233, %v283, 0.0
  %v311 = vadd.f32 %v309, %v310
  %v312 = vsel %vm233, %v284, 0.0
  %v313 = vadd.f32 %v311, %v312
  %v314 = vsel %vm233, %v285, 0.0
  %v315 = vadd.f32 %v313, %v314
  %v316 = vsel %vm233, %v286, 0.0
  %v317 = vadd.f32 %v315, %v316
  %v318 = vrot.slane %v317, 4
  %v319 = vadd.f32 %v317, %v318
  %v320 = vrot.slane %v319, 2
  %v321 = vadd.f32 %v319, %v320
  %v322 = vrot.slane %v321, 1
  %v323 = vadd.f32 %v321, %v322
  %v324 = vmul.f32 %v270, 0.0078125
  %v325 = vmul.f32 %v323, 0.0078125
  %v326 = vmul.f32 %v324, %v324
  %v327 = vsub.f32 %v325, %v326
  %v328 = vmax.f32 %v327, 0.0
  %v329 = vld [vmem:[%s2] sm:$0x3]
  %v330 = vadd.f32 %v328, 1e-05
  %v331 = vrsqrt.pop %v330
  %v332 = vmul.f32 %v329, %v331
  %v333 = vmul.f32 %v324, %v332
  %v335 = vrot.slane %v333, 7
  %v337 = vsub.f32 %v329, %v335
  %v338 = vlaneseq
  %v339 = vshrl.u32 %v338, 7
  %v340 = vsub.s32 0, %v339
  %v341 = vrot.slane %v332, %v340
  %v342 = vmul.f32 %v171, %v341
  %v343 = vmul.f32 %v174, %v341
  %v344 = vmul.f32 %v179, %v341
  %v345 = vmul.f32 %v182, %v341
  %v346 = vmul.f32 %v187, %v341
  %v347 = vmul.f32 %v190, %v341
  %v348 = vmul.f32 %v195, %v341
  %v349 = vmul.f32 %v198, %v341
  %v350 = vmul.f32 %v203, %v341
  %v351 = vmul.f32 %v206, %v341
  %v352 = vmul.f32 %v211, %v341
  %v353 = vmul.f32 %v214, %v341
  %v354 = vmul.f32 %v219, %v341
  %v355 = vmul.f32 %v222, %v341
  %v356 = vmul.f32 %v227, %v341
  %v357 = vmul.f32 %v230, %v341
  %v358 = vlaneseq
  %v359 = vshrl.u32 %v358, 7
  %v360 = vsub.s32 1, %v359
  %v361 = vrot.slane %v337, %v360
  %v362 = vadd.f32 %v342, %v361
  %v363 = vadd.f32 %v343, %v361
  %v364 = vadd.f32 %v344, %v361
  %v365 = vadd.f32 %v345, %v361
  %v366 = vadd.f32 %v346, %v361
  %v367 = vadd.f32 %v347, %v361
  %v368 = vadd.f32 %v348, %v361
  %v369 = vadd.f32 %v349, %v361
  %v370 = vadd.f32 %v350, %v361
  %v371 = vadd.f32 %v351, %v361
  %v372 = vadd.f32 %v352, %v361
  %v373 = vadd.f32 %v353, %v361
  %v374 = vadd.f32 %v354, %v361
  %v375 = vadd.f32 %v355, %v361
  %v376 = vadd.f32 %v356, %v361
  %v377 = vadd.f32 %v357, %v361
  %v378 = vpack.c.bf16 %v363, %v362
  %v379 = vpack.c.bf16 %v365, %v364
  %v380 = vpack.c.bf16 %v367, %v366
  %v381 = vpack.c.bf16 %v369, %v368
  %v382 = vpack.c.bf16 %v371, %v370
  %v383 = vpack.c.bf16 %v373, %v372
  %v384 = vpack.c.bf16 %v375, %v374
  %v385 = vpack.c.bf16 %v377, %v376
  %v394 = vunpack.c.l.b16 %v378
  %v395 = vunpack.c.h.b16 %v378
  %v396 = vunpack.c.l.b16 %v379
  %v397 = vunpack.c.h.b16 %v379
  %v398 = vunpack.c.l.b16 %v380
  %v399 = vunpack.c.h.b16 %v380
  %v400 = vunpack.c.l.b16 %v381
  %v401 = vunpack.c.h.b16 %v381
  %v402 = vunpack.c.l.b16 %v382
  %v403 = vunpack.c.h.b16 %v382
  %v404 = vunpack.c.l.b16 %v383
  %v405 = vunpack.c.h.b16 %v383
  %v406 = vunpack.c.l.b16 %v384
  %v407 = vunpack.c.h.b16 %v384
  %v408 = vunpack.c.l.b16 %v385
  %v409 = vunpack.c.h.b16 %v385
  %v410 = vpack.c.b16 %v394, %v394
  %v411 = vpack.c.b16 %v395, %v395
  %v412 = vpack.c.b16 %v396, %v396
  %v413 = vpack.c.b16 %v397, %v397
  %v414 = vpack.c.b16 %v398, %v398
  %v415 = vpack.c.b16 %v399, %v399
  %v416 = vpack.c.b16 %v400, %v400
  %v417 = vpack.c.b16 %v401, %v401
  %v418 = vpack.c.b16 %v402, %v402
  %v419 = vpack.c.b16 %v403, %v403
  %v420 = vpack.c.b16 %v404, %v404
  %v421 = vpack.c.b16 %v405, %v405
  %v422 = vpack.c.b16 %v406, %v406
  %v423 = vpack.c.b16 %v407, %v407
  %v424 = vpack.c.b16 %v408, %v408
  %v425 = vpack.c.b16 %v409, %v409
  %vm442 = vcmask 60416
  %443 = vst.msk [vmem:[%s3] sm:$0xf] %vm442, %v410
  %444 = vst.msk [vmem:[%s3 + $0x4] sm:$0xf] %vm442, %v411
  %445 = vst.msk [vmem:[%s3 + $0x8] sm:$0xf] %vm442, %v412
  %446 = vst.msk [vmem:[%s3 + $0xc] sm:$0xf] %vm442, %v413
  %447 = vst.msk [vmem:[%s3 + $0x10] sm:$0xf] %vm442, %v414
  %448 = vst.msk [vmem:[%s3 + $0x14] sm:$0xf] %vm442, %v415
  %449 = vst.msk [vmem:[%s3 + $0x18] sm:$0xf] %vm442, %v416
  %450 = vst.msk [vmem:[%s3 + $0x1c] sm:$0xf] %vm442, %v417
  %451 = vst.msk [vmem:[%s3 + $0x20] sm:$0xf] %vm442, %v418
  %452 = vst.msk [vmem:[%s3 + $0x24] sm:$0xf] %vm442, %v419
  %453 = vst.msk [vmem:[%s3 + $0x28] sm:$0xf] %vm442, %v420
  %454 = vst.msk [vmem:[%s3 + $0x2c] sm:$0xf] %vm442, %v421
  %455 = vst.msk [vmem:[%s3 + $0x30] sm:$0xf] %vm442, %v422
  %456 = vst.msk [vmem:[%s3 + $0x34] sm:$0xf] %vm442, %v423
  %457 = vst.msk [vmem:[%s3 + $0x38] sm:$0xf] %vm442, %v424
  %458 = vst.msk [vmem:[%s3 + $0x3c] sm:$0xf] %vm442, %v425
  // Predicated region
  $region14: #{decoder_forward.6} parent=0 // pred_check
    _
  $region15: #{decoder_forward.6} parent=0 // pred_check_branch
    %460 = sbr.rel (0) target = $region17
  $region16: #{decoder_forward.6} parent=0 // pred_region
    _
  $region17: #{decoder_forward.6} parent=0 // pred_fallthru
    _
  // Predicated region
  $region18: #{decoder_forward.6} parent=0 // pred_check
    _
  $region19: #{decoder_forward.6} parent=0 // pred_check_branch
    %462 = sbr.rel (0) target = $region21
  $region20: #{decoder_forward.6} parent=0 // pred_region
    _
  $region21: #{decoder_forward.6} parent=0 // pred_fallthru
    _

// kernel: decoder_forward.7
$region0: #{decoder_forward.7}
  #allocation0 [shape = 'u32[]', space=smem, size = 0x4, offset = 0x4, fixed_abs, tag = 'smem constant byte address 0x4 - core index']
  #allocation1 [shape = 'u32[144,128]{1,0:T(1,128)}', space=vmem, size = 0x12000, scoped, tag = 'internal scratch']
  %s0 = inlined_call_operand.vmem [shape: bf16[4,128,32], index: 0, kind: input, shape index: {}]
  %s1 = inlined_call_operand.vmem [shape: bf16[4,32,4], index: 1, kind: input, shape index: {}]
  %s2 = inlined_call_operand.vmem [shape: f32[128,16], index: 2, kind: output, shape index: {}]
  %s3 = sld [smem:[#allocation0]]
  $region18: #{decoder_forward.7} parent=0
    _
  %s5 = ssub.s32 1, %s3
  %s6 = scalar_select 0, %s5, %s3
  // Predicated region
  $region2: #{decoder_forward.7} parent=0 // pred_check
    _
  $region3: #{decoder_forward.7} parent=0 // pred_check_branch
    %8 = sbr.rel (0) target = $region5
  $region4: #{decoder_forward.7} parent=0 // pred_region
    _
  $region5: #{decoder_forward.7} parent=0 // pred_fallthru
    _
  // Predicated region
  $region6: #{decoder_forward.7} parent=0 // pred_check
    _
  $region7: #{decoder_forward.7} parent=0 // pred_check_branch
    %10 = sbr.rel (0) target = $region9
  $region8: #{decoder_forward.7} parent=0 // pred_region
    _
  $region9: #{decoder_forward.7} parent=0 // pred_fallthru
    _
  %v12 = vld [vmem:[%s0] sm:$0xf]
  %v13 = vld [vmem:[%s0 + $0x4] sm:$0xf]
  %v14 = vld [vmem:[%s0 + $0x8] sm:$0xf]
  %v15 = vld [vmem:[%s0 + $0xc] sm:$0xf]
  %v16 = vld [vmem:[%s0 + $0x10] sm:$0xf]
  %v17 = vld [vmem:[%s0 + $0x14] sm:$0xf]
  %v18 = vld [vmem:[%s0 + $0x18] sm:$0xf]
  %v19 = vld [vmem:[%s0 + $0x1c] sm:$0xf]
  %v20 = vld [vmem:[%s0 + $0x20] sm:$0xf]
  %v21 = vld [vmem:[%s0 + $0x24] sm:$0xf]
  %v22 = vld [vmem:[%s0 + $0x28] sm:$0xf]
  %v23 = vld [vmem:[%s0 + $0x2c] sm:$0xf]
  %v24 = vld [vmem:[%s0 + $0x30] sm:$0xf]
  %v25 = vld [vmem:[%s0 + $0x34] sm:$0xf]
  %v26 = vld [vmem:[%s0 + $0x38] sm:$0xf]
  %v27 = vld [vmem:[%s0 + $0x3c] sm:$0xf]
  %v28 = vld [vmem:[%s1] sm:$0xf]
  %v29 = vld [vmem:[%s1 + $0x4] sm:$0xf]
  %v30 = vld [vmem:[%s1 + $0x8] sm:$0xf]
  %v31 = vld [vmem:[%s1 + $0xc] sm:$0xf]
  %v48 = vunpack.c.l.b16 %v12
  %v49 = vunpack.c.l.b16 %v13
  %v50 = vunpack.c.l.b16 %v14
  %v51 = vunpack.c.l.b16 %v15
  %v52 = vunpack.c.l.b16 %v16
  %v53 = vunpack.c.l.b16 %v17
  %v54 = vunpack.c.l.b16 %v18
  %v55 = vunpack.c.l.b16 %v19
  %v56 = vunpack.c.l.b16 %v20
  %v57 = vunpack.c.l.b16 %v21
  %v58 = vunpack.c.l.b16 %v22
  %v59 = vunpack.c.l.b16 %v23
  %v60 = vunpack.c.l.b16 %v24
  %v61 = vunpack.c.l.b16 %v25
  %v62 = vunpack.c.l.b16 %v26
  %v63 = vunpack.c.l.b16 %v27
  %v64 = vpack.c.b16 %v49, %v48
  %v65 = vpack.c.b16 %v51, %v50
  %v66 = vpack.c.b16 %v53, %v52
  %v67 = vpack.c.b16 %v55, %v54
  %v68 = vpack.c.b16 %v57, %v56
  %v69 = vpack.c.b16 %v59, %v58
  %v70 = vpack.c.b16 %v61, %v60
  %v71 = vpack.c.b16 %v63, %v62
  %v76 = vunpack.c.l.b16 %v28
  %v77 = vunpack.c.l.b16 %v29
  %v78 = vunpack.c.l.b16 %v30
  %v79 = vunpack.c.l.b16 %v31
  %v80 = vpack.c.b16 %v77, %v76
  %v81 = vpack.c.b16 %v79, %v78
  %vm84 = vcmask 261120
  %v86 = vsel %vm84, %v64, 0
  %v89 = vsel %vm84, %v65, 0
  %v92 = vsel %vm84, %v66, 0
  %v95 = vsel %vm84, %v67, 0
  %v98 = vsel %vm84, %v68, 0
  %v101 = vsel %vm84, %v69, 0
  %v104 = vsel %vm84, %v70, 0
  %v107 = vsel %vm84, %v71, 0
  %109 = vmatprep.subr.bf16.mxu0 0
  %110 = vmatpush1.bf16.msra.mxu0 %v80
  %111 = vmatprep.subr.bf16.mxu0 0
  %112 = vmatpush1.bf16.msra.mxu0 %v81
  %113 = vmatprep.subr.bf16.mxu0 0
  %114 = vmatpush1.bf16.msra.mxu0 0
  %115 = vmatprep.subr.bf16.mxu0 0
  %116 = vmatpush1.bf16.msra.mxu0 0
  %117 = vmatprep.subr.bf16.mxu0 0
  %118 = vmatpush1.bf16.msra.mxu0 0
  %119 = vmatprep.subr.bf16.mxu0 0
  %120 = vmatpush1.bf16.msra.mxu0 0
  %121 = vmatprep.subr.bf16.mxu0 0
  %122 = vmatpush1.bf16.msra.mxu0 0
  %123 = vmatprep.subr.bf16.mxu0 0
  %124 = vmatpush1.bf16.msra.mxu0 0
  %125 = vmatprep.subr.bf16.mxu0 0
  %126 = vmatpush1.bf16.msra.mxu0 0
  %127 = vmatprep.subr.bf16.mxu0 0
  %128 = vmatpush1.bf16.msra.mxu0 0
  %129 = vmatprep.subr.bf16.mxu0 0
  %130 = vmatpush1.bf16.msra.mxu0 0
  %131 = vmatprep.subr.bf16.mxu0 0
  %132 = vmatpush1.bf16.msra.mxu0 0
  %133 = vmatprep.subr.bf16.mxu0 0
  %134 = vmatpush1.bf16.msra.mxu0 0
  %135 = vmatprep.subr.bf16.mxu0 0
  %136 = vmatpush1.bf16.msra.mxu0 0
  %137 = vmatprep.subr.bf16.mxu0 0
  %138 = vmatpush1.bf16.msra.mxu0 0
  %139 = vmatprep.subr.bf16.mxu0 0
  %140 = vmatpush1.bf16.msra.mxu0 0
  %141 = vmatprep.mubr.bf16.mxu0 0
  %142 = vmatmul.mubr.bf16.gmra.mrb[0].mxu0 %v86
  %v143 = vpop.f32.mrb[0].mxu0
  %v144 = vadd.f32 0.0, %v143
  %v145 = vpop.f32.mrb[0].mxu0
  %v146 = vpop.f32.mrb[0].mxu0
  %v147 = vadd.f32 0.0, %v146
  %v148 = vpop.f32.mrb[0].mxu0
  %149 = vmatprep.mubr.bf16.mxu0 0
  %150 = vmatmul.mubr.bf16.gmra.mrb[0].mxu0 %v89
  %v151 = vpop.f32.mrb[0].mxu0
  %v152 = vadd.f32 0.0, %v151
  %v153 = vpop.f32.mrb[0].mxu0
  %v154 = vpop.f32.mrb[0].mxu0
  %v155 = vadd.f32 0.0, %v154
  %v156 = vpop.f32.mrb[0].mxu0
  %157 = vmatprep.mubr.bf16.mxu0 0
  %158 = vmatmul.mubr.bf16.gmra.mrb[0].mxu0 %v92
  %v159 = vpop.f32.mrb[0].mxu0
  %v160 = vadd.f32 0.0, %v159
  %v161 = vpop.f32.mrb[0].mxu0
  %v162 = vpop.f32.mrb[0].mxu0
  %v163 = vadd.f32 0.0, %v162
  %v164 = vpop.f32.mrb[0].mxu0
  %165 = vmatprep.mubr.bf16.mxu0 0
  %166 = vmatmul.mubr.bf16.gmra.mrb[0].mxu0 %v95
  %v167 = vpop.f32.mrb[0].mxu0
  %v168 = vadd.f32 0.0, %v167
  %v169 = vpop.f32.mrb[0].mxu0
  %v170 = vpop.f32.mrb[0].mxu0
  %v171 = vadd.f32 0.0, %v170
  %v172 = vpop.f32.mrb[0].mxu0
  %173 = vmatprep.mubr.bf16.mxu0 0
  %174 = vmatmul.mubr.bf16.gmra.mrb[0].mxu0 %v98
  %v175 = vpop.f32.mrb[0].mxu0
  %v176 = vadd.f32 0.0, %v175
  %v177 = vpop.f32.mrb[0].mxu0
  %v178 = vpop.f32.mrb[0].mxu0
  %v179 = vadd.f32 0.0, %v178
  %v180 = vpop.f32.mrb[0].mxu0
  %181 = vmatprep.mubr.bf16.mxu0 0
  %182 = vmatmul.mubr.bf16.gmra.mrb[0].mxu0 %v101
  %v183 = vpop.f32.mrb[0].mxu0
  %v184 = vadd.f32 0.0, %v183
  %v185 = vpop.f32.mrb[0].mxu0
  %v186 = vpop.f32.mrb[0].mxu0
  %v187 = vadd.f32 0.0, %v186
  %v188 = vpop.f32.mrb[0].mxu0
  %189 = vmatprep.mubr.bf16.mxu0 0
  %190 = vmatmul.mubr.bf16.gmra.mrb[0].mxu0 %v104
  %v191 = vpop.f32.mrb[0].mxu0
  %v192 = vadd.f32 0.0, %v191
  %v193 = vpop.f32.mrb[0].mxu0
  %v194 = vpop.f32.mrb[0].mxu0
  %v195 = vadd.f32 0.0, %v194
  %v196 = vpop.f32.mrb[0].mxu0
  %197 = vmatprep.mubr.bf16.mxu0 0
  %198 = vmatmul.mubr.bf16.gmra.mrb[0].mxu0 %v107
  %v199 = vpop.f32.mrb[0].mxu0
  %v200 = vadd.f32 0.0, %v199
  %v201 = vpop.f32.mrb[0].mxu0
  %v202 = vpop.f32.mrb[0].mxu0
  %v203 = vadd.f32 0.0, %v202
  %v204 = vpop.f32.mrb[0].mxu0
  %205 = vdwg.mxu0
  %s206 = scalar_lea.vmem %s0, 64
  %v207 = vld [vmem:[%s206] sm:$0xf]
  %v208 = vld [vmem:[%s206 + $0x4] sm:$0xf]
  %v209 = vld [vmem:[%s206 + $0x8] sm:$0xf]
  %v210 = vld [vmem:[%s206 + $0xc] sm:$0xf]
  %v211 = vld [vmem:[%s206 + $0x10] sm:$0xf]
  %v212 = vld [vmem:[%s206 + $0x14] sm:$0xf]
  %v213 = vld [vmem:[%s206 + $0x18] sm:$0xf]
  %v214 = vld [vmem:[%s206 + $0x1c] sm:$0xf]
  %v215 = vld [vmem:[%s206 + $0x20] sm:$0xf]
  %v216 = vld [vmem:[%s206 + $0x24] sm:$0xf]
  %v217 = vld [vmem:[%s206 + $0x28] sm:$0xf]
  %v218 = vld [vmem:[%s206 + $0x2c] sm:$0xf]
  %v219 = vld [vmem:[%s206 + $0x30] sm:$0xf]
  %v220 = vld [vmem:[%s206 + $0x34] sm:$0xf]
  %v221 = vld [vmem:[%s206 + $0x38] sm:$0xf]
  %v222 = vld [vmem:[%s206 + $0x3c] sm:$0xf]
  %s223 = scalar_lea.vmem %s1, 16
  %v224 = vld [vmem:[%s223] sm:$0xf]
  %v225 = vld [vmem:[%s223 + $0x4] sm:$0xf]
  %v226 = vld [vmem:[%s223 + $0x8] sm:$0xf]
  %v227 = vld [vmem:[%s223 + $0xc] sm:$0xf]
  %v244 = vunpack.c.l.b16 %v207
  %v245 = vunpack.c.l.b16 %v208
  %v246 = vunpack.c.l.b16 %v209
  %v247 = vunpack.c.l.b16 %v210
  %v248 = vunpack.c.l.b16 %v211
  %v249 = vunpack.c.l.b16 %v212
  %v250 = vunpack.c.l.b16 %v213
  %v251 = vunpack.c.l.b16 %v214
  %v252 = vunpack.c.l.b16 %v215
  %v253 = vunpack.c.l.b16 %v216
  %v254 = vunpack.c.l.b16 %v217
  %v255 = vunpack.c.l.b16 %v218
  %v256 = vunpack.c.l.b16 %v219
  %v257 = vunpack.c.l.b16 %v220
  %v258 = vunpack.c.l.b16 %v221
  %v259 = vunpack.c.l.b16 %v222
  %v260 = vpack.c.b16 %v245, %v244
  %v261 = vpack.c.b16 %v247, %v246
  %v262 = vpack.c.b16 %v249, %v248
  %v263 = vpack.c.b16 %v251, %v250
  %v264 = vpack.c.b16 %v253, %v252
  %v265 = vpack.c.b16 %v255, %v254
  %v266 = vpack.c.b16 %v257, %v256
  %v267 = vpack.c.b16 %v259, %v258
  %v272 = vunpack.c.l.b16 %v224
  %v273 = vunpack.c.l.b16 %v225
  %v274 = vunpack.c.l.b16 %v226
  %v275 = vunpack.c.l.b16 %v227
  %v276 = vpack.c.b16 %v273, %v272
  %v277 = vpack.c.b16 %v275, %v274
  %v281 = vsel %vm84, %v260, 0
  %v284 = vsel %vm84, %v261, 0
  %v287 = vsel %vm84, %v262, 0
  %v290 = vsel %vm84, %v263, 0
  %v293 = vsel %vm84, %v264, 0
  %v296 = vsel %vm84, %v265, 0
  %v299 = vsel %vm84, %v266, 0
  %v302 = vsel %vm84, %v267, 0
  %304 = vmatprep.subr.bf16.mxu0 0
  %305 = vmatpush1.bf16.msra.mxu0 %v276
  %306 = vmatprep.subr.bf16.mxu0 0
  %307 = vmatpush1.bf16.msra.mxu0 %v277
  %308 = vmatprep.subr.bf16.mxu0 0
  %309 = vmatpush1.bf16.msra.mxu0 0
  %310 = vmatprep.subr.bf16.mxu0 0
  %311 = vmatpush1.bf16.msra.mxu0 0
  %312 = vmatprep.subr.bf16.mxu0 0
  %313 = vmatpush1.bf16.msra.mxu0 0
  %314 = vmatprep.subr.bf16.mxu0 0
  %315 = vmatpush1.bf16.msra.mxu0 0
  %316 = vmatprep.subr.bf16.mxu0 0
  %317 = vmatpush1.bf16.msra.mxu0 0
  %318 = vmatprep.subr.bf16.mxu0 0
  %319 = vmatpush1.bf16.msra.mxu0 0
  %320 = vmatprep.subr.bf16.mxu0 0
  %321 = vmatpush1.bf16.msra.mxu0 0
  %322 = vmatprep.subr.bf16.mxu0 0
  %323 = vmatpush1.bf16.msra.mxu0 0
  %324 = vmatprep.subr.bf16.mxu0 0
  %325 = vmatpush1.bf16.msra.mxu0 0
  %326 = vmatprep.subr.bf16.mxu0 0
  %327 = vmatpush1.bf16.msra.mxu0 0
  %328 = vmatprep.subr.bf16.mxu0 0
  %329 = vmatpush1.bf16.msra.mxu0 0
  %330 = vmatprep.subr.bf16.mxu0 0
  %331 = vmatpush1.bf16.msra.mxu0 0
  %332 = vmatprep.subr.bf16.mxu0 0
  %333 = vmatpush1.bf16.msra.mxu0 0
  %334 = vmatprep.subr.bf16.mxu0 0
  %335 = vmatpush1.bf16.msra.mxu0 0
  %336 = vmatprep.mubr.bf16.mxu0 0
  %337 = vmatmul.mubr.bf16.gmra.mrb[0].mxu0 %v281
  %v338 = vpop.f32.mrb[0].mxu0
  %v339 = vadd.f32 0.0, %v338
  %v340 = vpop.f32.mrb[0].mxu0
  %v341 = vpop.f32.mrb[0].mxu0
  %v342 = vadd.f32 0.0, %v341
  %v343 = vpop.f32.mrb[0].mxu0
  %344 = vmatprep.mubr.bf16.mxu0 0
  %345 = vmatmul.mubr.bf16.gmra.mrb[0].mxu0 %v284
  %v346 = vpop.f32.mrb[0].mxu0
  %v347 = vadd.f32 0.0, %v346
  %v348 = vpop.f32.mrb[0].mxu0
  %v349 = vpop.f32.mrb[0].mxu0
  %v350 = vadd.f32 0.0, %v349
  %v351 = vpop.f32.mrb[0].mxu0
  %352 = vmatprep.mubr.bf16.mxu0 0
  %353 = vmatmul.mubr.bf16.gmra.mrb[0].mxu0 %v287
  %v354 = vpop.f32.mrb[0].mxu0
  %v355 = vadd.f32 0.0, %v354
  %v356 = vpop.f32.mrb[0].mxu0
  %v357 = vpop.f32.mrb[0].mxu0
  %v358 = vadd.f32 0.0, %v357
  %v359 = vpop.f32.mrb[0].mxu0
  %360 = vmatprep.mubr.bf16.mxu0 0
  %361 = vmatmul.mubr.bf16.gmra.mrb[0].mxu0 %v290
  %v362 = vpop.f32.mrb[0].mxu0
  %v363 = vadd.f32 0.0, %v362
  %v364 = vpop.f32.mrb[0].mxu0
  %v365 = vpop.f32.mrb[0].mxu0
  %v366 = vadd.f32 0.0, %v365
  %v367 = vpop.f32.mrb[0].mxu0
  %368 = vmatprep.mubr.bf16.mxu0 0
  %369 = vmatmul.mubr.bf16.gmra.mrb[0].mxu0 %v293
  %v370 = vpop.f32.mrb[0].mxu0
  %v371 = vadd.f32 0.0, %v370
  %v372 = vpop.f32.mrb[0].mxu0
  %v373 = vpop.f32.mrb[0].mxu0
  %v374 = vadd.f32 0.0, %v373
  %v375 = vpop.f32.mrb[0].mxu0
  %376 = vmatprep.mubr.bf16.mxu0 0
  %377 = vmatmul.mubr.bf16.gmra.mrb[0].mxu0 %v296
  %v378 = vpop.f32.mrb[0].mxu0
  %v379 = vadd.f32 0.0, %v378
  %v380 = vpop.f32.mrb[0].mxu0
  %v381 = vpop.f32.mrb[0].mxu0
  %v382 = vadd.f32 0.0, %v381
  %v383 = vpop.f32.mrb[0].mxu0
  %384 = vmatprep.mubr.bf16.mxu0 0
  %385 = vmatmul.mubr.bf16.gmra.mrb[0].mxu0 %v299
  %v386 = vpop.f32.mrb[0].mxu0
  %v387 = vadd.f32 0.0, %v386
  %v388 = vpop.f32.mrb[0].mxu0
  %v389 = vpop.f32.mrb[0].mxu0
  %v390 = vadd.f32 0.0, %v389
  %v391 = vpop.f32.mrb[0].mxu0
  %392 = vmatprep.mubr.bf16.mxu0 0
  %393 = vmatmul.mubr.bf16.gmra.mrb[0].mxu0 %v302
  %v394 = vpop.f32.mrb[0].mxu0
  %v395 = vadd.f32 0.0, %v394
  %v396 = vpop.f32.mrb[0].mxu0
  %v397 = vpop.f32.mrb[0].mxu0
  %v398 = vadd.f32 0.0, %v397
  %v399 = vpop.f32.mrb[0].mxu0
  %400 = vdwg.mxu0
  %s401 = scalar_lea.vmem %s0, 128
  %v402 = vld [vmem:[%s401] sm:$0xf]
  %v403 = vld [vmem:[%s401 + $0x4] sm:$0xf]
  %v404 = vld [vmem:[%s401 + $0x8] sm:$0xf]
  %v405 = vld [vmem:[%s401 + $0xc] sm:$0xf]
  %v406 = vld [vmem:[%s401 + $0x10] sm:$0xf]
  %v407 = vld [vmem:[%s401 + $0x14] sm:$0xf]
  %v408 = vld [vmem:[%s401 + $0x18] sm:$0xf]
  %v409 = vld [vmem:[%s401 + $0x1c] sm:$0xf]
  %v410 = vld [vmem:[%s401 + $0x20] sm:$0xf]
  %v411 = vld [vmem:[%s401 + $0x24] sm:$0xf]
  %v412 = vld [vmem:[%s401 + $0x28] sm:$0xf]
  %v413 = vld [vmem:[%s401 + $0x2c] sm:$0xf]
  %v414 = vld [vmem:[%s401 + $0x30] sm:$0xf]
  %v415 = vld [vmem:[%s401 + $0x34] sm:$0xf]
  %v416 = vld [vmem:[%s401 + $0x38] sm:$0xf]
  %v417 = vld [vmem:[%s401 + $0x3c] sm:$0xf]
  %s418 = scalar_lea.vmem %s1, 32
  %v419 = vld [vmem:[%s418] sm:$0xf]
  %v420 = vld [vmem:[%s418 + $0x4] sm:$0xf]
  %v421 = vld [vmem:[%s418 + $0x8] sm:$0xf]
  %v422 = vld [vmem:[%s418 + $0xc] sm:$0xf]
  %v439 = vunpack.c.l.b16 %v402
  %v440 = vunpack.c.l.b16 %v403
  %v441 = vunpack.c.l.b16 %v404
  %v442 = vunpack.c.l.b16 %v405
  %v443 = vunpack.c.l.b16 %v406
  %v444 = vunpack.c.l.b16 %v407
  %v445 = vunpack.c.l.b16 %v408
  %v446 = vunpack.c.l.b16 %v409
  %v447 = vunpack.c.l.b16 %v410
  %v448 = vunpack.c.l.b16 %v411
  %v449 = vunpack.c.l.b16 %v412
  %v450 = vunpack.c.l.b16 %v413
  %v451 = vunpack.c.l.b16 %v414
  %v452 = vunpack.c.l.b16 %v415
  %v453 = vunpack.c.l.b16 %v416
  %v454 = vunpack.c.l.b16 %v417
  %v455 = vpack.c.b16 %v440, %v439
  %v456 = vpack.c.b16 %v442, %v441
  %v457 = vpack.c.b16 %v444, %v443
  %v458 = vpack.c.b16 %v446, %v445
  %v459 = vpack.c.b16 %v448, %v447
  %v460 = vpack.c.b16 %v450, %v449
  %v461 = vpack.c.b16 %v452, %v451
  %v462 = vpack.c.b16 %v454, %v453
  %v467 = vunpack.c.l.b16 %v419
  %v468 = vunpack.c.l.b16 %v420
  %v469 = vunpack.c.l.b16 %v421
  %v470 = vunpack.c.l.b16 %v422
  %v471 = vpack.c.b16 %v468, %v467
  %v472 = vpack.c.b16 %v470, %v469
  %v476 = vsel %vm84, %v455, 0
  %v479 = vsel %vm84, %v456, 0
  %v482 = vsel %vm84, %v457, 0
  %v485 = vsel %vm84, %v458, 0
  %v488 = vsel %vm84, %v459, 0
  %v491 = vsel %vm84, %v460, 0
  %v494 = vsel %vm84, %v461, 0
  %v497 = vsel %vm84, %v462, 0
  %499 = vmatprep.subr.bf16.mxu0 0
  %500 = vmatpush1.bf16.msra.mxu0 %v471
  %501 = vmatprep.subr.bf16.mxu0 0
  %502 = vmatpush1.bf16.msra.mxu0 %v472
  %503 = vmatprep.subr.bf16.mxu0 0
  %504 = vmatpush1.bf16.msra.mxu0 0
  %505 = vmatprep.subr.bf16.mxu0 0
  %506 = vmatpush1.bf16.msra.mxu0 0
  %507 = vmatprep.subr.bf16.mxu0 0
  %508 = vmatpush1.bf16.msra.mxu0 0
  %509 = vmatprep.subr.bf16.mxu0 0
  %510 = vmatpush1.bf16.msra.mxu0 0
  %511 = vmatprep.subr.bf16.mxu0 0
  %512 = vmatpush1.bf16.msra.mxu0 0
  %513 = vmatprep.subr.bf16.mxu0 0
  %514 = vmatpush1.bf16.msra.mxu0 0
  %515 = vmatprep.subr.bf16.mxu0 0
  %516 = vmatpush1.bf16.msra.mxu0 0
  %517 = vmatprep.subr.bf16.mxu0 0
  %518 = vmatpush1.bf16.msra.mxu0 0
  %519 = vmatprep.subr.bf16.mxu0 0
  %520 = vmatpush1.bf16.msra.mxu0 0
  %521 = vmatprep.subr.bf16.mxu0 0
  %522 = vmatpush1.bf16.msra.mxu0 0
  %523 = vmatprep.subr.bf16.mxu0 0
  %524 = vmatpush1.bf16.msra.mxu0 0
  %525 = vmatprep.subr.bf16.mxu0 0
  %526 = vmatpush1.bf16.msra.mxu0 0
  %527 = vmatprep.subr.bf16.mxu0 0
  %528 = vmatpush1.bf16.msra.mxu0 0
  %529 = vmatprep.subr.bf16.mxu0 0
  %530 = vmatpush1.bf16.msra.mxu0 0
  %531 = vmatprep.mubr.bf16.mxu0 0
  %532 = vmatmul.mubr.bf16.gmra.mrb[0].mxu0 %v476
  %v533 = vpop.f32.mrb[0].mxu0
  %v534 = vadd.f32 0.0, %v533
  %v535 = vpop.f32.mrb[0].mxu0
  %v536 = vpop.f32.mrb[0].mxu0
  %v537 = vadd.f32 0.0, %v536
  %v538 = vpop.f32.mrb[0].mxu0
  %539 = vmatprep.mubr.bf16.mxu0 0
  %540 = vmatmul.mubr.bf16.gmra.mrb[0].mxu0 %v479
  %v541 = vpop.f32.mrb[0].mxu0
  %v542 = vadd.f32 0.0, %v541
  %v543 = vpop.f32.mrb[0].mxu0
  %v544 = vpop.f32.mrb[0].mxu0
  %v545 = vadd.f32 0.0, %v544
  %v546 = vpop.f32.mrb[0].mxu0
  %547 = vmatprep.mubr.bf16.mxu0 0
  %548 = vmatmul.mubr.bf16.gmra.mrb[0].mxu0 %v482
  %v549 = vpop.f32.mrb[0].mxu0
  %v550 = vadd.f32 0.0, %v549
  %v551 = vpop.f32.mrb[0].mxu0
  %v552 = vpop.f32.mrb[0].mxu0
  %v553 = vadd.f32 0.0, %v552
  %v554 = vpop.f32.mrb[0].mxu0
  %555 = vmatprep.mubr.bf16.mxu0 0
  %556 = vmatmul.mubr.bf16.gmra.mrb[0].mxu0 %v485
  %v557 = vpop.f32.mrb[0].mxu0
  %v558 = vadd.f32 0.0, %v557
  %v559 = vpop.f32.mrb[0].mxu0
  %v560 = vpop.f32.mrb[0].mxu0
  %v561 = vadd.f32 0.0, %v560
  %v562 = vpop.f32.mrb[0].mxu0
  %563 = vmatprep.mubr.bf16.mxu0 0
  %564 = vmatmul.mubr.bf16.gmra.mrb[0].mxu0 %v488
  %v565 = vpop.f32.mrb[0].mxu0
  %v566 = vadd.f32 0.0, %v565
  %v567 = vpop.f32.mrb[0].mxu0
  %v568 = vpop.f32.mrb[0].mxu0
  %v569 = vadd.f32 0.0, %v568
  %v570 = vpop.f32.mrb[0].mxu0
  %571 = vmatprep.mubr.bf16.mxu0 0
  %572 = vmatmul.mubr.bf16.gmra.mrb[0].mxu0 %v491
  %v573 = vpop.f32.mrb[0].mxu0
  %v574 = vadd.f32 0.0, %v573
  %v575 = vpop.f32.mrb[0].mxu0
  %v576 = vpop.f32.mrb[0].mxu0
  %v577 = vadd.f32 0.0, %v576
  %v578 = vpop.f32.mrb[0].mxu0
  %579 = vmatprep.mubr.bf16.mxu0 0
  %580 = vmatmul.mubr.bf16.gmra.mrb[0].mxu0 %v494
  %v581 = vpop.f32.mrb[0].mxu0
  %v582 = vadd.f32 0.0, %v581
  %v583 = vpop.f32.mrb[0].mxu0
  %v584 = vpop.f32.mrb[0].mxu0
  %v585 = vadd.f32 0.0, %v584
  %v586 = vpop.f32.mrb[0].mxu0
  %587 = vmatprep.mubr.bf16.mxu0 0
  %588 = vmatmul.mubr.bf16.gmra.mrb[0].mxu0 %v497
  %v589 = vpop.f32.mrb[0].mxu0
  %v590 = vadd.f32 0.0, %v589
  %v591 = vpop.f32.mrb[0].mxu0
  %v592 = vpop.f32.mrb[0].mxu0
  %v593 = vadd.f32 0.0, %v592
  %v594 = vpop.f32.mrb[0].mxu0
  %595 = vdwg.mxu0
  %s596 = scalar_lea.vmem %s0, 192
  %v597 = vld [vmem:[%s596] sm:$0xf]
  %v598 = vld [vmem:[%s596 + $0x4] sm:$0xf]
  %v599 = vld [vmem:[%s596 + $0x8] sm:$0xf]
  %v600 = vld [vmem:[%s596 + $0xc] sm:$0xf]
  %v601 = vld [vmem:[%s596 + $0x10] sm:$0xf]
  %v602 = vld [vmem:[%s596 + $0x14] sm:$0xf]
  %v603 = vld [vmem:[%s596 + $0x18] sm:$0xf]
  %v604 = vld [vmem:[%s596 + $0x1c] sm:$0xf]
  %v605 = vld [vmem:[%s596 + $0x20] sm:$0xf]
  %v606 = vld [vmem:[%s596 + $0x24] sm:$0xf]
  %v607 = vld [vmem:[%s596 + $0x28] sm:$0xf]
  %v608 = vld [vmem:[%s596 + $0x2c] sm:$0xf]
  %v609 = vld [vmem:[%s596 + $0x30] sm:$0xf]
  %v610 = vld [vmem:[%s596 + $0x34] sm:$0xf]
  %v611 = vld [vmem:[%s596 + $0x38] sm:$0xf]
  %v612 = vld [vmem:[%s596 + $0x3c] sm:$0xf]
  %s613 = scalar_lea.vmem %s1, 48
  %v614 = vld [vmem:[%s613] sm:$0xf]
  %v615 = vld [vmem:[%s613 + $0x4] sm:$0xf]
  %v616 = vld [vmem:[%s613 + $0x8] sm:$0xf]
  %v617 = vld [vmem:[%s613 + $0xc] sm:$0xf]
  %v634 = vunpack.c.l.b16 %v597
  %v635 = vunpack.c.l.b16 %v598
  %v636 = vunpack.c.l.b16 %v599
  %v637 = vunpack.c.l.b16 %v600
  %v638 = vunpack.c.l.b16 %v601
  %v639 = vunpack.c.l.b16 %v602
  %v640 = vunpack.c.l.b16 %v603
  %v641 = vunpack.c.l.b16 %v604
  %v642 = vunpack.c.l.b16 %v605
  %v643 = vunpack.c.l.b16 %v606
  %v644 = vunpack.c.l.b16 %v607
  %v645 = vunpack.c.l.b16 %v608
  %v646 = vunpack.c.l.b16 %v609
  %v647 = vunpack.c.l.b16 %v610
  %v648 = vunpack.c.l.b16 %v611
  %v649 = vunpack.c.l.b16 %v612
  %v650 = vpack.c.b16 %v635, %v634
  %v651 = vpack.c.b16 %v637, %v636
  %v652 = vpack.c.b16 %v639, %v638
  %v653 = vpack.c.b16 %v641, %v640
  %v654 = vpack.c.b16 %v643, %v642
  %v655 = vpack.c.b16 %v645, %v644
  %v656 = vpack.c.b16 %v647, %v646
  %v657 = vpack.c.b16 %v649, %v648
  %v662 = vunpack.c.l.b16 %v614
  %v663 = vunpack.c.l.b16 %v615
  %v664 = vunpack.c.l.b16 %v616
  %v665 = vunpack.c.l.b16 %v617
  %v666 = vpack.c.b16 %v663, %v662
  %v667 = vpack.c.b16 %v665, %v664
  %v671 = vsel %vm84, %v650, 0
  %v674 = vsel %vm84, %v651, 0
  %v677 = vsel %vm84, %v652, 0
  %v680 = vsel %vm84, %v653, 0
  %v683 = vsel %vm84, %v654, 0
  %v686 = vsel %vm84, %v655, 0
  %v689 = vsel %vm84, %v656, 0
  %v692 = vsel %vm84, %v657, 0
  %694 = vmatprep.subr.bf16.mxu0 0
  %695 = vmatpush1.bf16.msra.mxu0 %v666
  %696 = vmatprep.subr.bf16.mxu0 0
  %697 = vmatpush1.bf16.msra.mxu0 %v667
  %698 = vmatprep.subr.bf16.mxu0 0
  %699 = vmatpush1.bf16.msra.mxu0 0
  %700 = vmatprep.subr.bf16.mxu0 0
  %701 = vmatpush1.bf16.msra.mxu0 0
  %702 = vmatprep.subr.bf16.mxu0 0
  %703 = vmatpush1.bf16.msra.mxu0 0
  %704 = vmatprep.subr.bf16.mxu0 0
  %705 = vmatpush1.bf16.msra.mxu0 0
  %706 = vmatprep.subr.bf16.mxu0 0
  %707 = vmatpush1.bf16.msra.mxu0 0
  %708 = vmatprep.subr.bf16.mxu0 0
  %709 = vmatpush1.bf16.msra.mxu0 0
  %710 = vmatprep.subr.bf16.mxu0 0
  %711 = vmatpush1.bf16.msra.mxu0 0
  %712 = vmatprep.subr.bf16.mxu0 0
  %713 = vmatpush1.bf16.msra.mxu0 0
  %714 = vmatprep.subr.bf16.mxu0 0
  %715 = vmatpush1.bf16.msra.mxu0 0
  %716 = vmatprep.subr.bf16.mxu0 0
  %717 = vmatpush1.bf16.msra.mxu0 0
  %718 = vmatprep.subr.bf16.mxu0 0
  %719 = vmatpush1.bf16.msra.mxu0 0
  %720 = vmatprep.subr.bf16.mxu0 0
  %721 = vmatpush1.bf16.msra.mxu0 0
  %722 = vmatprep.subr.bf16.mxu0 0
  %723 = vmatpush1.bf16.msra.mxu0 0
  %724 = vmatprep.subr.bf16.mxu0 0
  %725 = vmatpush1.bf16.msra.mxu0 0
  %726 = vmatprep.mubr.bf16.mxu0 0
  %727 = vmatmul.mubr.bf16.gmra.mrb[0].mxu0 %v671
  %v728 = vpop.f32.mrb[0].mxu0
  %v729 = vadd.f32 0.0, %v728
  %v730 = vpop.f32.mrb[0].mxu0
  %v731 = vpop.f32.mrb[0].mxu0
  %v732 = vadd.f32 0.0, %v731
  %v733 = vpop.f32.mrb[0].mxu0
  %734 = vmatprep.mubr.bf16.mxu0 0
  %735 = vmatmul.mubr.bf16.gmra.mrb[0].mxu0 %v674
  %v736 = vpop.f32.mrb[0].mxu0
  %v737 = vadd.f32 0.0, %v736
  %v738 = vpop.f32.mrb[0].mxu0
  %v739 = vpop.f32.mrb[0].mxu0
  %v740 = vadd.f32 0.0, %v739
  %v741 = vpop.f32.mrb[0].mxu0
  %742 = vmatprep.mubr.bf16.mxu0 0
  %743 = vmatmul.mubr.bf16.gmra.mrb[0].mxu0 %v677
  %v744 = vpop.f32.mrb[0].mxu0
  %v745 = vadd.f32 0.0, %v744
  %v746 = vpop.f32.mrb[0].mxu0
  %v747 = vpop.f32.mrb[0].mxu0
  %v748 = vadd.f32 0.0, %v747
  %v749 = vpop.f32.mrb[0].mxu0
  %750 = vmatprep.mubr.bf16.mxu0 0
  %751 = vmatmul.mubr.bf16.gmra.mrb[0].mxu0 %v680
  %v752 = vpop.f32.mrb[0].mxu0
  %v753 = vadd.f32 0.0, %v752
  %v754 = vpop.f32.mrb[0].mxu0
  %v755 = vpop.f32.mrb[0].mxu0
  %v756 = vadd.f32 0.0, %v755
  %v757 = vpop.f32.mrb[0].mxu0
  %758 = vmatprep.mubr.bf16.mxu0 0
  %759 = vmatmul.mubr.bf16.gmra.mrb[0].mxu0 %v683
  %v760 = vpop.f32.mrb[0].mxu0
  %v761 = vadd.f32 0.0, %v760
  %v762 = vpop.f32.mrb[0].mxu0
  %v763 = vpop.f32.mrb[0].mxu0
  %v764 = vadd.f32 0.0, %v763
  %v765 = vpop.f32.mrb[0].mxu0
  %766 = vmatprep.mubr.bf16.mxu0 0
  %767 = vmatmul.mubr.bf16.gmra.mrb[0].mxu0 %v686
  %v768 = vpop.f32.mrb[0].mxu0
  %v769 = vadd.f32 0.0, %v768
  %v770 = vpop.f32.mrb[0].mxu0
  %v771 = vpop.f32.mrb[0].mxu0
  %v772 = vadd.f32 0.0, %v771
  %v773 = vpop.f32.mrb[0].mxu0
  %774 = vmatprep.mubr.bf16.mxu0 0
  %775 = vmatmul.mubr.bf16.gmra.mrb[0].mxu0 %v689
  %v776 = vpop.f32.mrb[0].mxu0
  %v777 = vadd.f32 0.0, %v776
  %v778 = vpop.f32.mrb[0].mxu0
  %v779 = vpop.f32.mrb[0].mxu0
  %v780 = vadd.f32 0.0, %v779
  %v781 = vpop.f32.mrb[0].mxu0
  %782 = vmatprep.mubr.bf16.mxu0 0
  %783 = vmatmul.mubr.bf16.gmra.mrb[0].mxu0 %v692
  %v784 = vpop.f32.mrb[0].mxu0
  %v785 = vadd.f32 0.0, %v784
  %v786 = vpop.f32.mrb[0].mxu0
  %v787 = vpop.f32.mrb[0].mxu0
  %v788 = vadd.f32 0.0, %v787
  %v789 = vpop.f32.mrb[0].mxu0
  %790 = vdwg.mxu0
  %v791 = vtanh.pop %v144
  %v792 = vtanh.pop %v147
  %v793 = vtanh.pop %v152
  %v794 = vtanh.pop %v155
  %v795 = vtanh.pop %v160
  %v796 = vtanh.pop %v163
  %v797 = vtanh.pop %v168
  %v798 = vtanh.pop %v171
  %v799 = vtanh.pop %v176
  %v800 = vtanh.pop %v179
  %v801 = vtanh.pop %v184
  %v802 = vtanh.pop %v187
  %v803 = vtanh.pop %v192
  %v804 = vtanh.pop %v195
  %v805 = vtanh.pop %v200
  %v806 = vtanh.pop %v203
  %v807 = vtanh.pop %v339
  %v808 = vtanh.pop %v342
  %v809 = vtanh.pop %v347
  %v810 = vtanh.pop %v350
  %v811 = vtanh.pop %v355
  %v812 = vtanh.pop %v358
  %v813 = vtanh.pop %v363
  %v814 = vtanh.pop %v366
  %v815 = vtanh.pop %v371
  %v816 = vtanh.pop %v374
  %v817 = vtanh.pop %v379
  %v818 = vtanh.pop %v382
  %v819 = vtanh.pop %v387
  %v820 = vtanh.pop %v390
  %v821 = vtanh.pop %v395
  %v822 = vtanh.pop %v398
  %v823 = vtanh.pop %v534
  %v824 = vtanh.pop %v537
  %v825 = vtanh.pop %v542
  %v826 = vtanh.pop %v545
  %v827 = vtanh.pop %v550
  %v828 = vtanh.pop %v553
  %v829 = vtanh.pop %v558
  %v830 = vtanh.pop %v561
  %v831 = vtanh.pop %v566
  %v832 = vtanh.pop %v569
  %v833 = vtanh.pop %v574
  %v834 = vtanh.pop %v577
  %v835 = vtanh.pop %v582
  %v836 = vtanh.pop %v585
  %v837 = vtanh.pop %v590
  %v838 = vtanh.pop %v593
  %v839 = vtanh.pop %v729
  %v840 = vtanh.pop %v732
  %v841 = vtanh.pop %v737
  %v842 = vtanh.pop %v740
  %v843 = vtanh.pop %v745
  %v844 = vtanh.pop %v748
  %v845 = vtanh.pop %v753
  %v846 = vtanh.pop %v756
  %v847 = vtanh.pop %v761
  %v848 = vtanh.pop %v764
  %v849 = vtanh.pop %v769
  %v850 = vtanh.pop %v772
  %v851 = vtanh.pop %v777
  %v852 = vtanh.pop %v780
  %v853 = vtanh.pop %v785
  %v854 = vtanh.pop %v788
  %vm855 = vcmask 31744
  %856 = vst.msk [vmem:[%s2] sm:$0xff] %vm855, %v791
  %857 = vst.msk [vmem:[%s2 + $0x8] sm:$0xff] %vm855, %v792
  %858 = vst.msk [vmem:[%s2 + $0x10] sm:$0xff] %vm855, %v793
  %859 = vst.msk [vmem:[%s2 + $0x18] sm:$0xff] %vm855, %v794
  %860 = vst.msk [vmem:[%s2 + $0x20] sm:$0xff] %vm855, %v795
  %861 = vst.msk [vmem:[%s2 + $0x28] sm:$0xff] %vm855, %v796
  %862 = vst.msk [vmem:[%s2 + $0x30] sm:$0xff] %vm855, %v797
  %863 = vst.msk [vmem:[%s2 + $0x38] sm:$0xff] %vm855, %v798
  %864 = vst.msk [vmem:[%s2 + $0x40] sm:$0xff] %vm855, %v799
  %865 = vst.msk [vmem:[%s2 + $0x48] sm:$0xff] %vm855, %v800
  %866 = vst.msk [vmem:[%s2 + $0x50] sm:$0xff] %vm855, %v801
  %867 = vst.msk [vmem:[%s2 + $0x58] sm:$0xff] %vm855, %v802
  %868 = vst.msk [vmem:[%s2 + $0x60] sm:$0xff] %vm855, %v803
  %869 = vst.msk [vmem:[%s2 + $0x68] sm:$0xff] %vm855, %v804
  %870 = vst.msk [vmem:[%s2 + $0x70] sm:$0xff] %vm855, %v805
  %871 = vst.msk [vmem:[%s2 + $0x78] sm:$0xff] %vm855, %v806
  %888 = vrot.lane.b32.xlu0 %v807, 4
  %v889 = vpop.permute.xlu0 %888
  %890 = vrot.lane.b32.xlu0 %v808, 4
  %v891 = vpop.permute.xlu0 %890
  %892 = vrot.lane.b32.xlu0 %v809, 4
  %v893 = vpop.permute.xlu0 %892
  %894 = vrot.lane.b32.xlu0 %v810, 4
  %v895 = vpop.permute.xlu0 %894
  %896 = vrot.lane.b32.xlu0 %v811, 4
  %v897 = vpop.permute.xlu0 %896
  %898 = vrot.lane.b32.xlu0 %v812, 4
  %v899 = vpop.permute.xlu0 %898
  %900 = vrot.lane.b32.xlu0 %v813, 4
  %v901 = vpop.permute.xlu0 %900
  %902 = vrot.lane.b32.xlu0 %v814, 4
  %v903 = vpop.permute.xlu0 %902
  %904 = vrot.lane.b32.xlu0 %v815, 4
  %v905 = vpop.permute.xlu0 %904
  %906 = vrot.lane.b32.xlu0 %v816, 4
  %v907 = vpop.permute.xlu0 %906
  %908 = vrot.lane.b32.xlu0 %v817, 4
  %v909 = vpop.permute.xlu0 %908
  %910 = vrot.lane.b32.xlu0 %v818, 4
  %v911 = vpop.permute.xlu0 %910
  %912 = vrot.lane.b32.xlu0 %v819, 4
  %v913 = vpop.permute.xlu0 %912
  %914 = vrot.lane.b32.xlu0 %v820, 4
  %v915 = vpop.permute.xlu0 %914
  %916 = vrot.lane.b32.xlu0 %v821, 4
  %v917 = vpop.permute.xlu0 %916
  %918 = vrot.lane.b32.xlu0 %v822, 4
  %v919 = vpop.permute.xlu0 %918
  %vm936 = vcmask 64544
  %937 = vst.msk [vmem:[%s2] sm:$0xff] %vm936, %v889
  %938 = vst.msk [vmem:[%s2 + $0x8] sm:$0xff] %vm936, %v891
  %939 = vst.msk [vmem:[%s2 + $0x10] sm:$0xff] %vm936, %v893
  %940 = vst.msk [vmem:[%s2 + $0x18] sm:$0xff] %vm936, %v895
  %941 = vst.msk [vmem:[%s2 + $0x20] sm:$0xff] %vm936, %v897
  %942 = vst.msk [vmem:[%s2 + $0x28] sm:$0xff] %vm936, %v899
  %943 = vst.msk [vmem:[%s2 + $0x30] sm:$0xff] %vm936, %v901
  %944 = vst.msk [vmem:[%s2 + $0x38] sm:$0xff] %vm936, %v903
  %945 = vst.msk [vmem:[%s2 + $0x40] sm:$0xff] %vm936, %v905
  %946 = vst.msk [vmem:[%s2 + $0x48] sm:$0xff] %vm936, %v907
  %947 = vst.msk [vmem:[%s2 + $0x50] sm:$0xff] %vm936, %v909
  %948 = vst.msk [vmem:[%s2 + $0x58] sm:$0xff] %vm936, %v911
  %949 = vst.msk [vmem:[%s2 + $0x60] sm:$0xff] %vm936, %v913
  %950 = vst.msk [vmem:[%s2 + $0x68] sm:$0xff] %vm936, %v915
  %951 = vst.msk [vmem:[%s2 + $0x70] sm:$0xff] %vm936, %v917
  %952 = vst.msk [vmem:[%s2 + $0x78] sm:$0xff] %vm936, %v919
  %969 = vrot.lane.b32.xlu0 %v823, 8
  %v970 = vpop.permute.xlu0 %969
  %971 = vrot.lane.b32.xlu0 %v824, 8
  %v972 = vpop.permute.xlu0 %971
  %973 = vrot.lane.b32.xlu0 %v825, 8
  %v974 = vpop.permute.xlu0 %973
  %975 = vrot.lane.b32.xlu0 %v826, 8
  %v976 = vpop.permute.xlu0 %975
  %977 = vrot.lane.b32.xlu0 %v827, 8
  %v978 = vpop.permute.xlu0 %977
  %979 = vrot.lane.b32.xlu0 %v828, 8
  %v980 = vpop.permute.xlu0 %979
  %981 = vrot.lane.b32.xlu0 %v829, 8
  %v982 = vpop.permute.xlu0 %981
  %983 = vrot.lane.b32.xlu0 %v830, 8
  %v984 = vpop.permute.xlu0 %983
  %985 = vrot.lane.b32.xlu0 %v831, 8
  %v986 = vpop.permute.xlu0 %985
  %987 = vrot.lane.b32.xlu0 %v832, 8
  %v988 = vpop.permute.xlu0 %987
  %989 = vrot.lane.b32.xlu0 %v833, 8
  %v990 = vpop.permute.xlu0 %989
  %991 = vrot.lane.b32.xlu0 %v834, 8
  %v992 = vpop.permute.xlu0 %991
  %993 = vrot.lane.b32.xlu0 %v835, 8
  %v994 = vpop.permute.xlu0 %993
  %995 = vrot.lane.b32.xlu0 %v836, 8
  %v996 = vpop.permute.xlu0 %995
  %997 = vrot.lane.b32.xlu0 %v837, 8
  %v998 = vpop.permute.xlu0 %997
  %999 = vrot.lane.b32.xlu0 %v838, 8
  %v1000 = vpop.permute.xlu0 %999
  %vm1017 = vcmask 97344
  %1018 = vst.msk [vmem:[%s2] sm:$0xff] %vm1017, %v970
  %1019 = vst.msk [vmem:[%s2 + $0x8] sm:$0xff] %vm1017, %v972
  %1020 = vst.msk [vmem:[%s2 + $0x10] sm:$0xff] %vm1017, %v974
  %1021 = vst.msk [vmem:[%s2 + $0x18] sm:$0xff] %vm1017, %v976
  %1022 = vst.msk [vmem:[%s2 + $0x20] sm:$0xff] %vm1017, %v978
  %1023 = vst.msk [vmem:[%s2 + $0x28] sm:$0xff] %vm1017, %v980
  %1024 = vst.msk [vmem:[%s2 + $0x30] sm:$0xff] %vm1017, %v982
  %1025 = vst.msk [vmem:[%s2 + $0x38] sm:$0xff] %vm1017, %v984
  %1026 = vst.msk [vmem:[%s2 + $0x40] sm:$0xff] %vm1017, %v986
  %1027 = vst.msk [vmem:[%s2 + $0x48] sm:$0xff] %vm1017, %v988
  %1028 = vst.msk [vmem:[%s2 + $0x50] sm:$0xff] %vm1017, %v990
  %1029 = vst.msk [vmem:[%s2 + $0x58] sm:$0xff] %vm1017, %v992
  %1030 = vst.msk [vmem:[%s2 + $0x60] sm:$0xff] %vm1017, %v994
  %1031 = vst.msk [vmem:[%s2 + $0x68] sm:$0xff] %vm1017, %v996
  %1032 = vst.msk [vmem:[%s2 + $0x70] sm:$0xff] %vm1017, %v998
  %1033 = vst.msk [vmem:[%s2 + $0x78] sm:$0xff] %vm1017, %v1000
  %1050 = vrot.lane.b32.xlu0 %v839, 12
  %v1051 = vpop.permute.xlu0 %1050
  %1052 = vrot.lane.b32.xlu0 %v840, 12
  %v1053 = vpop.permute.xlu0 %1052
  %1054 = vrot.lane.b32.xlu0 %v841, 12
  %v1055 = vpop.permute.xlu0 %1054
  %1056 = vrot.lane.b32.xlu0 %v842, 12
  %v1057 = vpop.permute.xlu0 %1056
  %1058 = vrot.lane.b32.xlu0 %v843, 12
  %v1059 = vpop.permute.xlu0 %1058
  %1060 = vrot.lane.b32.xlu0 %v844, 12
  %v1061 = vpop.permute.xlu0 %1060
  %1062 = vrot.lane.b32.xlu0 %v845, 12
  %v1063 = vpop.permute.xlu0 %1062
  %1064 = vrot.lane.b32.xlu0 %v846, 12
  %v1065 = vpop.permute.xlu0 %1064
  %1066 = vrot.lane.b32.xlu0 %v847, 12
  %v1067 = vpop.permute.xlu0 %1066
  %1068 = vrot.lane.b32.xlu0 %v848, 12
  %v1069 = vpop.permute.xlu0 %1068
  %1070 = vrot.lane.b32.xlu0 %v849, 12
  %v1071 = vpop.permute.xlu0 %1070
  %1072 = vrot.lane.b32.xlu0 %v850, 12
  %v1073 = vpop.permute.xlu0 %1072
  %1074 = vrot.lane.b32.xlu0 %v851, 12
  %v1075 = vpop.permute.xlu0 %1074
  %1076 = vrot.lane.b32.xlu0 %v852, 12
  %v1077 = vpop.permute.xlu0 %1076
  %1078 = vrot.lane.b32.xlu0 %v853, 12
  %v1079 = vpop.permute.xlu0 %1078
  %1080 = vrot.lane.b32.xlu0 %v854, 12
  %v1081 = vpop.permute.xlu0 %1080
  %vm1098 = vcmask 130144
  %1099 = vst.msk [vmem:[%s2] sm:$0xff] %vm1098, %v1051
  %1100 = vst.msk [vmem:[%s2 + $0x8] sm:$0xff] %vm1098, %v1053
  %1101 = vst.msk [vmem:[%s2 + $0x10] sm:$0xff] %vm1098, %v1055
  %1102 = vst.msk [vmem:[%s2 + $0x18] sm:$0xff] %vm1098, %v1057
  %1103 = vst.msk [vmem:[%s2 + $0x20] sm:$0xff] %vm1098, %v1059
  %1104 = vst.msk [vmem:[%s2 + $0x28] sm:$0xff] %vm1098, %v1061
  %1105 = vst.msk [vmem:[%s2 + $0x30] sm:$0xff] %vm1098, %v1063
  %1106 = vst.msk [vmem:[%s2 + $0x38] sm:$0xff] %vm1098, %v1065
  %1107 = vst.msk [vmem:[%s2 + $0x40] sm:$0xff] %vm1098, %v1067
  %1108 = vst.msk [vmem:[%s2 + $0x48] sm:$0xff] %vm1098, %v1069
  %1109 = vst.msk [vmem:[%s2 + $0x50] sm:$0xff] %vm1098, %v1071
  %1110 = vst.msk [vmem:[%s2 + $0x58] sm:$0xff] %vm1098, %v1073
  %1111 = vst.msk [vmem:[%s2 + $0x60] sm:$0xff] %vm1098, %v1075
  %1112 = vst.msk [vmem:[%s2 + $0x68] sm:$0xff] %vm1098, %v1077
  %1113 = vst.msk [vmem:[%s2 + $0x70] sm:$0xff] %vm1098, %v1079
  %1114 = vst.msk [vmem:[%s2 + $0x78] sm:$0xff] %vm1098, %v1081
  // Predicated region
  $region10: #{decoder_forward.7} parent=0 // pred_check
    _
  $region11: #{decoder_forward.7} parent=0 // pred_check_branch
    %1116 = sbr.rel (0) target = $region13
  $region12: #{decoder_forward.7} parent=0 // pred_region
    _
  $region13: #{decoder_forward.7} parent=0 // pred_fallthru
    _
  // Predicated region
  $region14: #{decoder_forward.7} parent=0 // pred_check
    _
  $region15: #{decoder_forward.7} parent=0 // pred_check_branch
    %1118 = sbr.rel (0) target = $region17
  $region16: #{decoder_forward.7} parent=0 // pred_region
    _
  $region17: #{decoder_forward.7} parent=0 // pred_fallthru
    _

</llo_original>
